<compile_context>
chip_gen: v5e
topology: v5e:2x2
jax: 0.10.0
libtpu: 0.0.40
codegen_flags: <defaults>
</compile_context>

<pallas_src>
import functools
import numpy as np

import jax
import jax.numpy as jnp
from jax.experimental import pallas as pl
from jax.experimental.pallas import tpu as pltpu

# ----------------------------- config ---------------------------------------
IN_CH = 20            # in_channels
OUT_CH = 8            # out_channels
NUM_HEADS = 1         # AttentiveBP num_heads (Attention modules)
PREFIX = 4            # prefix_dim
MSG_DIM = 15          # msg_dim (== factor domain size)
DP = 16               # MSG_DIM padded to a multiple of 8
MAX_COLOR = 100
HID = IN_CH - PREFIX  # 16 : GRU hidden / color-embedding dim
GAT_HEADS = 4
BIG = 1e9             # padding sentinel for min-reductions

VAR_ID = np.array([1.0, 0.0, 0.0, 0.0], np.float32)
V2F_ID = np.array([0.0, 1.0, 0.0, 0.0], np.float32)
F2V_ID = np.array([0.0, 0.0, 1.0, 0.0], np.float32)

# Ordered operand names for the fused kernel (all whole-array VMEM residents).
OPERANDS = [
    # graph constants
    "cost", "costT", "adjb4", "x_top", "pref_bot",
    # initial recurrent state
    "msgs0", "v2f_h0", "f2v_h0",
    # fused one-hot gather / scatter / segment matrices (host precomputed)
    "GA1", "S_f2", "keep_f2", "GA2", "S_trg", "keep_trg",
    "G_embed", "G_rep", "SEG", "SEG_deg", "inv_deg", "G_dist",
    # GRU params (fused [x | h] @ blockdiag(Wih, Whh))
    "gru1_w", "gru1_b", "gru2_w", "gru2_b",
    # GAT params per layer (attention vectors pre-stacked to [H*N, H*C])
    "w1", "adstR1", "asrcR1", "b1",
    "w2", "adstR2", "asrcR2", "b2",
    "w3", "adstR3", "asrcR3", "b3",
    "w4", "adstR4", "asrcR4", "b4",
    # attention (num_heads = 1), Wq/Wk folded into the score projection
    "w_att",          # [OUT_CH, 3]  columns: wk_s, wq_s, wq_s + wk_s
    "att_b",          # (1, 1) scalar bias
]


# ============================ fused Pallas kernel ============================
def _attentive_bp_kernel(*refs, n_iter, msg_dim, n_graphs):
    n_in = len(OPERANDS)
    r = dict(zip(OPERANDS, refs[:n_in]))
    out_ref = refs[n_in]                                   # [n_iter, 1, 2]
    f32 = jnp.float32

    Fn, DPk = r["cost"].shape[0], r["cost"].shape[1]
    N = r["adjb4"].shape[1]
    H = GAT_HEADS
    n_vars = r["G_dist"].shape[1]
    P, T = r["G_rep"].shape
    n_v2f = r["v2f_h0"].shape[0]
    n_f2v = r["f2v_h0"].shape[0]
    n_gru = n_v2f + n_f2v

    lane = jax.lax.broadcasted_iota(jnp.int32, (1, DPk), 1)
    lane_ok = lane < msg_dim                               # mask of real lanes
    iota_f = jax.lax.broadcasted_iota(jnp.int32, (Fn, DPk), 1).astype(f32)

    # -------- PyTorch GRUCell (gate order r, z, n) ---------------------------
    def gru_cell(x, h, w, b):
        Hh = h.shape[1]
        g = jnp.dot(jnp.concatenate([x, h], axis=1), w,
                    preferred_element_type=f32) + b        # [rows, 6H]
        gi, gh = g[:, :3 * Hh], g[:, 3 * Hh:]
        rg = jax.nn.sigmoid(gi[:, :Hh] + gh[:, :Hh])
        zg = jax.nn.sigmoid(gi[:, Hh:2 * Hh] + gh[:, Hh:2 * Hh])
        ng = jnp.tanh(gi[:, 2 * Hh:] + rg * gh[:, 2 * Hh:])
        return (1.0 - zg) * ng + zg * h

    # -------- GAT layer with all heads batched along the sublane axis --------
    def gat_layer(x_in, w, adstR, asrcR, bias, adjb4, concat):
        HC = w.shape[1]
        C = HC // H
        xp = jnp.dot(x_in, w, preferred_element_type=f32)          # [N, HC]
        xp4 = jnp.concatenate([xp] * H, axis=0)                    # [H*N, HC]
        sd = jnp.sum(xp4 * adstR, axis=1, keepdims=True)           # [H*N, 1]
        ss = jax.lax.dot_general(asrcR, xp, (((1,), (1,)), ((), ())),
                                 preferred_element_type=f32)       # [H*N, N]
        e = jax.nn.leaky_relu(sd + ss, negative_slope=0.2) + adjb4
        e = e - jnp.max(e, axis=1, keepdims=True)
        p = jnp.exp(e)                                             # masked -> 0
        alpha = p / jnp.sum(p, axis=1, keepdims=True)
        of = jnp.dot(alpha, xp, preferred_element_type=f32)        # [H*N, HC]
        blocks = [of[h * N:(h + 1) * N, h * C:(h + 1) * C] for h in range(H)]
        if concat:
            o = jnp.concatenate(blocks, axis=1)
        else:
            o = blocks[0]
            for blk in blocks[1:]:
                o = o + blk
            o = o * (1.0 / H)
        return jax.nn.leaky_relu(o + bias, negative_slope=0.01)    # F.leaky_relu

    # -------------------------- one BP + GNN iteration -----------------------
    def body(it, carry):
        msgs, v2f_h, f2v_h = carry
        cost = r["cost"][...]                               # [F, DP, DP]
        costT = r["costT"][...]                             # [F, DP, DP]

        # ---- BP min-sum factor -> variable update (lane-axis reductions only)
        rvcv = jnp.dot(r["GA1"][...], msgs, preferred_element_type=f32)  # [2F, DP]
        rv2f, cv2f = rvcv[:Fn], rvcv[Fn:]
        f2rv = jnp.min(cost + cv2f[:, None, :], axis=2)               # [F, DP]
        f2cv = jnp.min(costT + rv2f[:, None, :], axis=2)              # [F, DP]
        f2rv = jnp.where(lane_ok, f2rv, 0.0)
        f2cv = jnp.where(lane_ok, f2cv, 0.0)
        f2cat = jnp.concatenate([f2rv, f2cv], axis=0)                 # [2F, DP]
        msgs = (msgs * r["keep_f2"][...]
                + jnp.dot(r["S_f2"][...], f2cat, preferred_element_type=f32))

        # ---- one fused gather from the updated msgs --------------------------
        gath = jnp.dot(r["GA2"][...], msgs, preferred_element_type=f32)
        gru_in = gath[:n_gru]                                         # [16, DP]
        msg_src = gath[n_gru:n_gru + P]                               # [P, DP]
        msg_trg = gath[n_gru + P:n_gru + P + T]                       # [T, DP]
        belief = gath[n_gru + P + T:]                                 # [V, DP]

        # ---- GRU message encoders --------------------------------------------
        v2f_h = gru_cell(gru_in[:n_v2f], v2f_h, r["gru1_w"][...], r["gru1_b"][...])
        f2v_h = gru_cell(gru_in[n_v2f:], f2v_h, r["gru2_w"][...], r["gru2_b"][...])

        # ---- node features (column layout [hidden(16) | prefix(4)]) ---------
        h_all = jnp.concatenate([v2f_h, f2v_h], axis=0)               # [16, HID]
        x_bot = jnp.concatenate([h_all, r["pref_bot"][...]], axis=1)  # [16, IN_CH]
        x = jnp.concatenate([r["x_top"][...], x_bot], axis=0)         # [N, IN_CH]

        # ---- 4 GAT layers + leaky_relu ---------------------------------------
        adjb4 = r["adjb4"][...]
        for nw, na, ns, nb, cc in (("w1", "adstR1", "asrcR1", "b1", True),
                                   ("w2", "adstR2", "asrcR2", "b2", True),
                                   ("w3", "adstR3", "asrcR3", "b3", True),
                                   ("w4", "adstR4", "asrcR4", "b4", False)):
            x = gat_layer(x, r[nw][...], r[na][...], r[ns][...], r[nb][...],
                          adjb4, cc)                                  # -> [N, OUT_CH]

        # ---- attentive variable -> factor message combination ----------------
        sc_nodes = jnp.dot(x, r["w_att"][...], preferred_element_type=f32)   # [N, 3]
        scores = jnp.dot(r["G_embed"][...], sc_nodes,
                         preferred_element_type=f32)                  # [P+T, 3]
        bs = r["att_b"][...]                                          # (1, 1)
        ks = scores[:P, 0:1]
        qs = scores[P:, 1:2]
        att_trg = jax.nn.sigmoid(scores[P:, 2:3] + bs)                # [T, 1]
        att = jax.nn.sigmoid(
            jnp.dot(r["G_rep"][...], qs, preferred_element_type=f32) + ks + bs)

        # scatter_softmax: sigmoid outputs are in (0,1), so no max-shift needed
        expd = jnp.exp(att)
        segin = jnp.concatenate([expd, att], axis=1)                  # [P, 2]
        segout = jnp.dot(r["SEG"][...], segin, preferred_element_type=f32)   # [T, 2]
        seg_sum = segout[:, 0:1]
        att_mean = segout[:, 1:2] * r["inv_deg"][...]                 # scatter_mean
        att_w = expd / jnp.dot(r["G_rep"][...], seg_sum, preferred_element_type=f32)
        weighted = jnp.dot(r["SEG_deg"][...], msg_src * att_w,
                           preferred_element_type=f32)                # [T, DP]

        dm = jnp.maximum(att_mean, att_trg)
        e0 = jnp.exp(att_mean - dm)
        e1 = jnp.exp(att_trg - dm)
        inv_den = 1.0 / (e0 + e1)
        v2f = weighted * (e0 * inv_den) + msg_trg * (e1 * inv_den)    # [T, DP]
        vmin = jnp.min(jnp.where(lane_ok, v2f, BIG), axis=1, keepdims=True)
        v2f = jnp.where(lane_ok, v2f - vmin, 0.0)
        msgs = (msgs * r["keep_trg"][...]
                + jnp.dot(r["S_trg"][...], v2f, preferred_element_type=f32))

        # ---- beliefs, entropy, loss, cost ------------------------------------
        nb_ = jnp.where(lane_ok, -belief, -1e30)
        nb_ = nb_ - jnp.max(nb_, axis=1, keepdims=True)
        pb = jnp.exp(nb_)
        dist = pb / jnp.sum(pb, axis=1, keepdims=True)                # [V, DP]
        ent = dist * (jnp.log(dist + 1e-6) * 1.4426950408889634)      # log2
        entropy = jnp.sum(-jnp.sum(ent, axis=1, keepdims=True), axis=0,
                          keepdims=True) / float(n_vars)              # [1, 1]

        dsel = jnp.dot(r["G_dist"][...], dist, preferred_element_type=f32)  # [2F, DP]
        dist_rv, dist_cv = dsel[:Fn], dsel[Fn:]
        inner = jnp.sum(cost * dist_cv[:, None, :], axis=2)           # [F, DP]
        per_f = jnp.sum(inner * dist_rv, axis=1, keepdims=True)       # [F, 1]
        loss = (jnp.sum(per_f, axis=0, keepdims=True) / float(n_graphs)
                + 0.1 * entropy)                                      # [1, 1]

        def argmax_onehot(d):
            mx = jnp.max(d, axis=1, keepdims=True)
            first = jnp.min(jnp.where(d >= mx, iota_f, float(DPk)),
                            axis=1, keepdims=True)
            return (iota_f == first).astype(f32)

        oh_rv = argmax_onehot(dist_rv)
        oh_cv = argmax_onehot(dist_cv)
        inner_c = jnp.sum(cost * oh_cv[:, None, :], axis=2)           # [F, DP]
        cost_val = jnp.sum(inner_c * oh_rv, axis=1, keepdims=True)    # [F, 1]
        cost_tot = jnp.sum(cost_val, axis=0, keepdims=True) / float(n_graphs)

        out_ref[it] = jnp.concatenate([loss, cost_tot], axis=1)       # [1, 2]
        return (msgs, v2f_h, f2v_h)

    jax.lax.fori_loop(
        0, n_iter, body,
        (r["msgs0"][...], r["v2f_h0"][...], r["f2v_h0"][...]))


# ============================== parameters ===================================
def init_params(key):
    keys = jax.random.split(key, 40)
    k_iter = iter(keys)

    def rnd(shape, scale=0.1):
        return (scale * jax.random.normal(next(k_iter), shape)).astype(jnp.float32)

    p = {}
    p["embed"] = rnd((MAX_COLOR, HID))                          # vn_color_embed
    for name in ("gru1", "gru2"):                               # GRUCell(msg_dim, HID)
        p[name] = dict(wih_t=rnd((MSG_DIM, 3 * HID)), whh_t=rnd((HID, 3 * HID)),
                       bih=rnd((1, 3 * HID)), bhh=rnd((1, 3 * HID)))

    def gat(fin, c, heads, concat):
        return dict(w=rnd((fin, heads * c)), asrc=rnd((heads, c)), adst=rnd((heads, c)),
                    bias=rnd((1, heads * c if concat else c)),
                    heads=heads, out_ch=c, concat=concat)

    p["conv1"] = gat(IN_CH, 8, 4, True)
    p["conv2"] = gat(32, 8, 4, True)
    p["conv3"] = gat(32, 8, 4, True)
    p["conv4"] = gat(32, OUT_CH, 4, False)
    p["att"] = [dict(wq=rnd((OUT_CH, OUT_CH)), wk=rnd((OUT_CH, OUT_CH)),
                     ws=rnd((2 * OUT_CH, 1)), bs=rnd((1, 1)))
                for _ in range(NUM_HEADS)]
    return p


# ======================== synthetic factor-graph data ========================
def build_example(key):
    # 4 variables, 4 pairwise factors, domain size 15, single graph (bs = 1)
    n_vars, Fn = 4, 4
    factors = [(0, 1), (0, 2), (1, 3), (2, 3)]                 # (row var, col var)

    msg_rv2f = np.array([4 * f + 0 for f in range(Fn)])
    msg_cv2f = np.array([4 * f + 1 for f in range(Fn)])
    msg_f2rv = np.array([4 * f + 2 for f in range(Fn)])
    msg_f2cv = np.array([4 * f + 3 for f in range(Fn)])
    msg_v2f = np.array([0, 1, 4, 5, 8, 9, 12, 13])
    msg_f2v = np.array([2, 3, 6, 7, 10, 11, 14, 15])

    v2f_pairs = [(0, 0), (1, 0), (0, 1), (2, 1), (1, 2), (3, 2), (2, 3), (3, 3)]
    f2v_pairs = [(0, 0), (0, 1), (1, 0), (1, 2), (2, 1), (2, 3), (3, 2), (3, 3)]
    f2v_into_var = {0: [2, 6], 1: [3, 10], 2: [7, 14], 3: [11, 15]}

    msg_trg_idxes = msg_v2f.copy()
    msg_src_idxes, v2f_scatter = [], []
    for t, (v, f) in enumerate(v2f_pairs):
        for s in f2v_into_var[v]:
            msg_src_idxes.append(s)
            v2f_scatter.append(t)
    msg_src_idxes = np.array(msg_src_idxes)
    v2f_scatter = np.array(v2f_scatter)

    msg_f2v_per_v, f2v_per_v_scatter = [], []
    for v in range(n_vars):
        for s in f2v_into_var[v]:
            msg_f2v_per_v.append(s)
            f2v_per_v_scatter.append(v)
    msg_f2v_per_v = np.array(msg_f2v_per_v)
    f2v_per_v_scatter = np.array(f2v_per_v_scatter)

    # node layout in x: vars 0..3, factors 4..7, v2f-hidden 8..15, f2v-hidden 16..23
    N = n_vars + Fn + 8 + 8
    embed_trg_idxes = np.array([8 + t for t in range(8)])
    node_of_f2v_msg = {m: 16 + k for k, m in enumerate(msg_f2v)}
    embed_src_idxes = np.array([node_of_f2v_msg[m] for m in msg_src_idxes])

    edges = []
    for t, (v, f) in enumerate(v2f_pairs):
        edges += [(v, 8 + t), (8 + t, v), (8 + t, 4 + f), (4 + f, 8 + t)]
    for k, (f, v) in enumerate(f2v_pairs):
        edges += [(4 + f, 16 + k), (16 + k, 4 + f), (16 + k, v), (v, 16 + k)]
    edge_index = np.array(edges, np.int32).T
    adj = np.zeros((N, N), np.float32)
    adj[edge_index[1], edge_index[0]] = 1.0
    adj[np.arange(N), np.arange(N)] = 1.0                      # self loops

    k1, k2, k3, k4, k5 = jax.random.split(key, 5)
    cost = (5.0 * jax.random.uniform(k1, (Fn, MSG_DIM, MSG_DIM))).astype(jnp.float32)
    func_embed = (0.1 * jax.random.normal(k2, (Fn, IN_CH))).astype(jnp.float32)
    msgs0 = jax.random.uniform(k3, (4 * Fn, MSG_DIM)).astype(jnp.float32)
    v2f_hidden0 = (0.1 * jax.random.normal(k4, (8, HID))).astype(jnp.float32)
    f2v_hidden0 = (0.1 * jax.random.normal(k5, (8, HID))).astype(jnp.float32)
    var_colors = np.array([3, 17, 42, 99], np.int32)

    graph = dict(
        adj=np.asarray(adj), cost=cost,
        var_colors=[var_colors], func_embed=[func_embed],
        msg_rv2f_idxes=msg_rv2f, msg_cv2f_idxes=msg_cv2f,
        msg_f2rv_idxes=msg_f2rv, msg_f2cv_idxes=msg_f2cv,
        msg_v2f_idxes=[msg_v2f], msg_f2v_idxes=[msg_f2v],
        msg_trg_idxes=msg_trg_idxes, msg_src_idxes=msg_src_idxes,
        msg_f2v_per_v_idxes=msg_f2v_per_v,
        embed_trg_idxes=embed_trg_idxes, embed_src_idxes=embed_src_idxes,
        v2f_scatter_idxes=v2f_scatter,
        f2v_per_v_scatter_idxes=f2v_per_v_scatter,
        f_batch=np.zeros(Fn, np.int32),
        rv_idxes=np.array([rv for rv, _ in factors]),
        cv_idxes=np.array([cv for _, cv in factors]),
    )
    msg_hidden0 = [[v2f_hidden0, f2v_hidden0]]
    return graph, msgs0, msg_hidden0


# ===================== host-side operand preparation =========================
def build_operands(params, g, msgs0, msg_hidden0):
    assert NUM_HEADS == 1
    Fn = int(np.asarray(g["cost"]).shape[0])
    M = int(np.asarray(msgs0).shape[0])
    N = int(np.asarray(g["adj"]).shape[0])
    ops = {}

    # cost tensors padded D=15 -> 16 with BIG; pre-transposed copy for the
    # lane-axis-only min reduction (review: avoid axis=1 reductions)
    cost = np.full((Fn, DP, DP), BIG, np.float32)
    cost[:, :MSG_DIM, :MSG_DIM] = np.asarray(g["cost"], np.float32)
    ops["cost"] = cost
    ops["costT"] = np.ascontiguousarray(np.swapaxes(cost, 1, 2))

    # adjacency bias, stacked once per GAT head (review: hoist mask out of loop)
    adj = np.asarray(g["adj"], np.float32)
    adj_bias = np.where(adj > 0.0, 0.0, -1e30).astype(np.float32)
    ops["adjb4"] = np.concatenate([adj_bias] * GAT_HEADS, axis=0)

    m0 = np.zeros((M, DP), np.float32)
    m0[:, :MSG_DIM] = np.asarray(msgs0, np.float32)
    ops["msgs0"] = m0
    v2f_h0, f2v_h0 = msg_hidden0[0]
    ops["v2f_h0"] = np.asarray(v2f_h0, np.float32)
    ops["f2v_h0"] = np.asarray(f2v_h0, np.float32)
    n_v2f = ops["v2f_h0"].shape[0]
    n_f2v = ops["f2v_h0"].shape[0]

    # static node-feature pieces; column layout [hidden(16) | prefix(4)]
    # (column permutation of the original [prefix | hidden]; conv1.W permuted)
    perm = np.concatenate([np.arange(PREFIX, IN_CH), np.arange(0, PREFIX)])
    var_colors = np.asarray(g["var_colors"][0])
    var_embed = np.asarray(params["embed"])[var_colors]          # host embedding lookup
    func_embed = np.asarray(g["func_embed"][0], np.float32)
    n_vars = var_embed.shape[0]
    x_top = np.zeros((n_vars + Fn, IN_CH), np.float32)
    x_top[:n_vars, :HID] = var_embed
    x_top[:n_vars, HID:] = VAR_ID[None, :]
    x_top[n_vars:, :] = func_embed[:, perm]
    ops["x_top"] = x_top
    pref_bot = np.zeros((n_v2f + n_f2v, PREFIX), np.float32)
    pref_bot[:n_v2f, :] = V2F_ID[None, :]
    pref_bot[n_v2f:, :] = F2V_ID[None, :]
    ops["pref_bot"] = pref_bot

    def onehot_rows(idx, ncols):
        idx = np.asarray(idx)
        m = np.zeros((len(idx), ncols), np.float32)
        m[np.arange(len(idx)), idx] = 1.0
        return m

    # fused gather / scatter matrices
    ops["GA1"] = np.concatenate([onehot_rows(g["msg_rv2f_idxes"], M),
                                 onehot_rows(g["msg_cv2f_idxes"], M)], axis=0)
    ops["S_f2"] = np.concatenate([onehot_rows(g["msg_f2rv_idxes"], M).T,
                                  onehot_rows(g["msg_f2cv_idxes"], M).T],
                                 axis=1).copy()
    keep_f2 = np.ones((M, 1), np.float32)
    keep_f2[np.asarray(g["msg_f2rv_idxes"])] = 0.0
    keep_f2[np.asarray(g["msg_f2cv_idxes"])] = 0.0
    ops["keep_f2"] = keep_f2

    f2v_pv = np.asarray(g["msg_f2v_per_v_idxes"])
    f2v_sc = np.asarray(g["f2v_per_v_scatter_idxes"])
    B = np.zeros((int(f2v_sc.max()) + 1, M), np.float32)
    np.add.at(B, (f2v_sc, f2v_pv), 1.0)
    # belief is gathered before the trg scatter; valid because trg (v2f) slots
    # and f2v belief slots are disjoint in the factor graph.
    assert not (set(np.asarray(g["msg_trg_idxes"]).tolist()) & set(f2v_pv.tolist()))
    ops["GA2"] = np.concatenate([onehot_rows(g["msg_v2f_idxes"][0], M),
                                 onehot_rows(g["msg_f2v_idxes"][0], M),
                                 onehot_rows(g["msg_src_idxes"], M),
                                 onehot_rows(g["msg_trg_idxes"], M),
                                 B], axis=0)

    ops["S_trg"] = onehot_rows(g["msg_trg_idxes"], M).T.copy()
    keep_trg = np.ones((M, 1), np.float32)
    keep_trg[np.asarray(g["msg_trg_idxes"])] = 0.0
    ops["keep_trg"] = keep_trg

    ops["G_embed"] = np.concatenate([onehot_rows(g["embed_src_idxes"], N),
                                     onehot_rows(g["embed_trg_idxes"], N)], axis=0)

    v2f_sc = np.asarray(g["v2f_scatter_idxes"])
    T = int(v2f_sc.max()) + 1
    G_rep = np.zeros((len(v2f_sc), T), np.float32)
    G_rep[np.arange(len(v2f_sc)), v2f_sc] = 1.0
    ops["G_rep"] = G_rep
    SEG = G_rep.T.copy()
    ops["SEG"] = SEG
    deg = np.bincount(v2f_sc, minlength=T).astype(np.float32)[:, None]
    ops["SEG_deg"] = (deg * SEG).astype(np.float32)          # deg folded (review)
    ops["inv_deg"] = (1.0 / deg).astype(np.float32)

    ops["G_dist"] = np.concatenate([onehot_rows(g["rv_idxes"], n_vars),
                                    onehot_rows(g["cv_idxes"], n_vars)], axis=0)

    # GRU fused weights: [x(DP) | h(HID)] @ blockdiag(Wih^T, Whh^T), bias [bih|bhh]
    def gru_pack(p):
        wih_t = np.zeros((DP, 3 * HID), np.float32)
        wih_t[:MSG_DIM, :] = np.asarray(p["wih_t"])
        whh_t = np.asarray(p["whh_t"], dtype=np.float32)
        w = np.zeros((DP + HID, 6 * HID), np.float32)
        w[:DP, :3 * HID] = wih_t
        w[DP:, 3 * HID:] = whh_t
        b = np.concatenate([np.asarray(p["bih"]), np.asarray(p["bhh"])],
                           axis=1).astype(np.float32)
        return w, b

    ops["gru1_w"], ops["gru1_b"] = gru_pack(params["gru1"])
    ops["gru2_w"], ops["gru2_b"] = gru_pack(params["gru2"])

    # GAT params: per-head attention vectors pre-stacked to [H*N, H*C]
    def gat_pack(p, permute_rows=False):
        assert p["heads"] == GAT_HEADS
        w = np.asarray(p["w"], dtype=np.float32)
        if permute_rows:
            w = w[perm, :]
        heads, c = p["heads"], p["out_ch"]
        asrc = np.asarray(p["asrc"], dtype=np.float32)
        adst = np.asarray(p["adst"], dtype=np.float32)
        A_src = np.zeros((heads, heads * c), np.float32)
        A_dst = np.zeros((heads, heads * c), np.float32)
        for h in range(heads):
            A_src[h, h * c:(h + 1) * c] = asrc[h]
            A_dst[h, h * c:(h + 1) * c] = adst[h]
        adstR = np.repeat(A_dst, N, axis=0)
        asrcR = np.repeat(A_src, N, axis=0)
        bias = np.asarray(p["bias"], dtype=np.float32)
        return w, adstR, asrcR, bias

    ops["w1"], ops["adstR1"], ops["asrcR1"], ops["b1"] = gat_pack(params["conv1"], True)
    ops["w2"], ops["adstR2"], ops["asrcR2"], ops["b2"] = gat_pack(params["conv2"])
    ops["w3"], ops["adstR3"], ops["asrcR3"], ops["b3"] = gat_pack(params["conv3"])
    ops["w4"], ops["adstR4"], ops["asrcR4"], ops["b4"] = gat_pack(params["conv4"])

    # Attention: fold Wq/Wk into the score projection (exact algebra)
    a = params["att"][0]
    wq = np.asarray(a["wq"], np.float32)
    wk = np.asarray(a["wk"], np.float32)
    ws = np.asarray(a["ws"], np.float32)
    wq_s = wq @ ws[:OUT_CH, :]
    wk_s = wk @ ws[OUT_CH:, :]
    ops["w_att"] = np.concatenate([wk_s, wq_s, wq_s + wk_s], axis=1).astype(np.float32)
    ops["att_b"] = np.asarray(a["bs"], np.float32).reshape(1, 1)
    return ops


# ============================ forward (single kernel) ========================
def attentive_bp_forward(params, graph, msgs0, msg_hidden0, n_iter=3):
    ops = build_operands(params, graph, msgs0, msg_hidden0)
    operands = [jnp.asarray(ops[name], jnp.float32) for name in OPERANDS]
    n_graphs = int(np.asarray(graph["f_batch"]).max()) + 1

    kern = functools.partial(_attentive_bp_kernel, n_iter=n_iter,
                             msg_dim=MSG_DIM, n_graphs=n_graphs)
    vmem_spec = pl.BlockSpec(memory_space=pltpu.MemorySpace.VMEM)
    out = pl.pallas_call(
        kern,
        out_shape=jax.ShapeDtypeStruct((n_iter, 1, 2), jnp.float32),
        in_specs=[pl.BlockSpec(memory_space=pltpu.MemorySpace.VMEM)
                  for _ in OPERANDS],
        out_specs=vmem_spec,
    )(*operands)

    # match torch forward(): results are recorded only for iterations > 0
    losses = [out[i, 0, 0] for i in range(1, n_iter)]
    costs = [out[i, 0, 1] for i in range(1, n_iter)]
    return losses, costs


# ================================== main =====================================
if __name__ == "__main__":
    key = jax.random.PRNGKey(0)
    k_params, k_data = jax.random.split(key)
    params = init_params(k_params)
    graph, msgs0, hidden0 = build_example(k_data)
    losses, costs = attentive_bp_forward(params, graph, msgs0, hidden0, n_iter=3)
    jax.block_until_ready(losses[-1])
    jax.block_until_ready(costs[-1])
    print("KERNEL_OK")
</pallas_src>

<mosaic_0001>
module attributes {stable_mosaic.version = 11 : i64} {
  func.func @_attentive_bp_kernel(%arg0: memref<4x16x16xf32, #tpu.memory_space<vmem>>, %arg1: memref<4x16x16xf32, #tpu.memory_space<vmem>>, %arg2: memref<96x24xf32, #tpu.memory_space<vmem>>, %arg3: memref<8x20xf32, #tpu.memory_space<vmem>>, %arg4: memref<16x4xf32, #tpu.memory_space<vmem>>, %arg5: memref<16x16xf32, #tpu.memory_space<vmem>>, %arg6: memref<8x16xf32, #tpu.memory_space<vmem>>, %arg7: memref<8x16xf32, #tpu.memory_space<vmem>>, %arg8: memref<8x16xf32, #tpu.memory_space<vmem>>, %arg9: memref<16x8xf32, #tpu.memory_space<vmem>>, %arg10: memref<16x1xf32, #tpu.memory_space<vmem>>, %arg11: memref<44x16xf32, #tpu.memory_space<vmem>>, %arg12: memref<16x8xf32, #tpu.memory_space<vmem>>, %arg13: memref<16x1xf32, #tpu.memory_space<vmem>>, %arg14: memref<24x24xf32, #tpu.memory_space<vmem>>, %arg15: memref<16x8xf32, #tpu.memory_space<vmem>>, %arg16: memref<8x16xf32, #tpu.memory_space<vmem>>, %arg17: memref<8x16xf32, #tpu.memory_space<vmem>>, %arg18: memref<8x1xf32, #tpu.memory_space<vmem>>, %arg19: memref<8x4xf32, #tpu.memory_space<vmem>>, %arg20: memref<32x96xf32, #tpu.memory_space<vmem>>, %arg21: memref<1x96xf32, #tpu.memory_space<vmem>>, %arg22: memref<32x96xf32, #tpu.memory_space<vmem>>, %arg23: memref<1x96xf32, #tpu.memory_space<vmem>>, %arg24: memref<20x32xf32, #tpu.memory_space<vmem>>, %arg25: memref<96x32xf32, #tpu.memory_space<vmem>>, %arg26: memref<96x32xf32, #tpu.memory_space<vmem>>, %arg27: memref<1x32xf32, #tpu.memory_space<vmem>>, %arg28: memref<32x32xf32, #tpu.memory_space<vmem>>, %arg29: memref<96x32xf32, #tpu.memory_space<vmem>>, %arg30: memref<96x32xf32, #tpu.memory_space<vmem>>, %arg31: memref<1x32xf32, #tpu.memory_space<vmem>>, %arg32: memref<32x32xf32, #tpu.memory_space<vmem>>, %arg33: memref<96x32xf32, #tpu.memory_space<vmem>>, %arg34: memref<96x32xf32, #tpu.memory_space<vmem>>, %arg35: memref<1x32xf32, #tpu.memory_space<vmem>>, %arg36: memref<32x32xf32, #tpu.memory_space<vmem>>, %arg37: memref<96x32xf32, #tpu.memory_space<vmem>>, %arg38: memref<96x32xf32, #tpu.memory_space<vmem>>, %arg39: memref<1x8xf32, #tpu.memory_space<vmem>>, %arg40: memref<8x3xf32, #tpu.memory_space<vmem>>, %arg41: memref<1x1xf32, #tpu.memory_space<vmem>>, %arg42: memref<3x1x2xf32, #tpu.memory_space<vmem>>) attributes {dimension_semantics = [], scalar_prefetch = 0 : i64, scratch_operands = 0 : i64, tpu.core_type = #tpu.core_type<tc>} {
    %0 = tpu.iota {dimensions = array<i32: 1>} : vector<1x16xi32>
    %c15_i32 = arith.constant 15 : i32
    %1 = vector.broadcast %c15_i32 : i32 to vector<1x16xi32>
    %2 = arith.cmpi slt, %0, %1 : vector<1x16xi32>
    %3 = tpu.iota {dimensions = array<i32: 1>} : vector<4x16xi32>
    %4 = arith.sitofp %3 : vector<4x16xi32> to vector<4x16xf32>
    %c0 = arith.constant 0 : index
    %c0_0 = arith.constant 0 : index
    %5 = vector.load %arg5[%c0, %c0_0] : memref<16x16xf32, #tpu.memory_space<vmem>>, vector<16x16xf32>
    %c0_1 = arith.constant 0 : index
    %c0_2 = arith.constant 0 : index
    %6 = vector.load %arg6[%c0_1, %c0_2] : memref<8x16xf32, #tpu.memory_space<vmem>>, vector<8x16xf32>
    %c0_3 = arith.constant 0 : index
    %c0_4 = arith.constant 0 : index
    %7 = vector.load %arg7[%c0_3, %c0_4] : memref<8x16xf32, #tpu.memory_space<vmem>>, vector<8x16xf32>
    %c0_i32 = arith.constant 0 : i32
    %c3_i32 = arith.constant 3 : i32
    %8 = arith.addi %c0_i32, %c3_i32 : i32
    %c1_i32 = arith.constant 1 : i32
    %9:3 = scf.for %arg43 = %c0_i32 to %8 step %c1_i32 iter_args(%arg44 = %5, %arg45 = %6, %arg46 = %7) -> (vector<16x16xf32>, vector<8x16xf32>, vector<8x16xf32>)  : i32 {
      %c0_6 = arith.constant 0 : index
      %c0_7 = arith.constant 0 : index
      %c0_8 = arith.constant 0 : index
      %10 = vector.load %arg0[%c0_6, %c0_7, %c0_8] : memref<4x16x16xf32, #tpu.memory_space<vmem>>, vector<4x16x16xf32>
      %c0_9 = arith.constant 0 : index
      %c0_10 = arith.constant 0 : index
      %c0_11 = arith.constant 0 : index
      %11 = vector.load %arg1[%c0_9, %c0_10, %c0_11] : memref<4x16x16xf32, #tpu.memory_space<vmem>>, vector<4x16x16xf32>
      %c0_12 = arith.constant 0 : index
      %c0_13 = arith.constant 0 : index
      %12 = vector.load %arg8[%c0_12, %c0_13] : memref<8x16xf32, #tpu.memory_space<vmem>>, vector<8x16xf32>
      %cst = arith.constant dense<0.000000e+00> : vector<8x16xf32>
      %13 = tpu.matmul %12, %arg44, %cst {dimension_numbers = #tpu.dot_dimension_numbers<[1], [0], [0], [1], [0, 0, 1, 1], [], []>} : vector<8x16xf32>, vector<16x16xf32>, vector<8x16xf32> -> vector<8x16xf32>
      %14 = vector.extract_strided_slice %13 {offsets = [0, 0], sizes = [4, 16], strides = [1, 1]} : vector<8x16xf32> to vector<4x16xf32>
      %15 = vector.extract_strided_slice %13 {offsets = [4, 0], sizes = [4, 16], strides = [1, 1]} : vector<8x16xf32> to vector<4x16xf32>
      %16 = vector.shape_cast %15 : vector<4x16xf32> to vector<4x1x16xf32>
      %17 = vector.broadcast %16 : vector<4x1x16xf32> to vector<4x16x16xf32>
      %18 = arith.addf %10, %17 : vector<4x16x16xf32>
      %cst_14 = arith.constant dense<0x7F800000> : vector<4x16xf32>
      %19 = vector.multi_reduction <minimumf>, %18, %cst_14 [2] : vector<4x16x16xf32> to vector<4x16xf32>
      %20 = vector.shape_cast %14 : vector<4x16xf32> to vector<4x1x16xf32>
      %21 = vector.broadcast %20 : vector<4x1x16xf32> to vector<4x16x16xf32>
      %22 = arith.addf %11, %21 : vector<4x16x16xf32>
      %cst_15 = arith.constant dense<0x7F800000> : vector<4x16xf32>
      %23 = vector.multi_reduction <minimumf>, %22, %cst_15 [2] : vector<4x16x16xf32> to vector<4x16xf32>
      %cst_16 = arith.constant 0.000000e+00 : f32
      %24 = vector.shape_cast %2 : vector<1x16xi1> to vector<1x16xi1>
      %25 = vector.broadcast %24 : vector<1x16xi1> to vector<4x16xi1>
      %26 = vector.broadcast %cst_16 : f32 to vector<4x16xf32>
      %27 = arith.select %25, %19, %26 : vector<4x16xi1>, vector<4x16xf32>
      %cst_17 = arith.constant 0.000000e+00 : f32
      %28 = vector.shape_cast %2 : vector<1x16xi1> to vector<1x16xi1>
      %29 = vector.broadcast %28 : vector<1x16xi1> to vector<4x16xi1>
      %30 = vector.broadcast %cst_17 : f32 to vector<4x16xf32>
      %31 = arith.select %29, %23, %30 : vector<4x16xi1>, vector<4x16xf32>
      %32 = tpu.concatenate %27, %31 in 0 : vector<4x16xf32>, vector<4x16xf32> -> vector<8x16xf32>
      %c0_18 = arith.constant 0 : index
      %c0_19 = arith.constant 0 : index
      %33 = vector.load %arg10[%c0_18, %c0_19] : memref<16x1xf32, #tpu.memory_space<vmem>>, vector<16x1xf32>
      %34 = vector.broadcast %33 : vector<16x1xf32> to vector<16x16xf32>
      %35 = arith.mulf %arg44, %34 : vector<16x16xf32>
      %c0_20 = arith.constant 0 : index
      %c0_21 = arith.constant 0 : index
      %36 = vector.load %arg9[%c0_20, %c0_21] : memref<16x8xf32, #tpu.memory_space<vmem>>, vector<16x8xf32>
      %cst_22 = arith.constant dense<0.000000e+00> : vector<16x16xf32>
      %37 = tpu.matmul %36, %32, %cst_22 {dimension_numbers = #tpu.dot_dimension_numbers<[1], [0], [0], [1], [0, 0, 1, 1], [], []>} : vector<16x8xf32>, vector<8x16xf32>, vector<16x16xf32> -> vector<16x16xf32>
      %38 = arith.addf %35, %37 : vector<16x16xf32>
      %c0_23 = arith.constant 0 : index
      %c0_24 = arith.constant 0 : index
      %39 = vector.load %arg11[%c0_23, %c0_24] : memref<44x16xf32, #tpu.memory_space<vmem>>, vector<44x16xf32>
      %cst_25 = arith.constant dense<0.000000e+00> : vector<44x16xf32>
      %40 = tpu.matmul %39, %38, %cst_25 {dimension_numbers = #tpu.dot_dimension_numbers<[1], [0], [0], [1], [0, 0, 1, 1], [], []>} : vector<44x16xf32>, vector<16x16xf32>, vector<44x16xf32> -> vector<44x16xf32>
      %41 = vector.extract_strided_slice %40 {offsets = [0, 0], sizes = [16, 16], strides = [1, 1]} : vector<44x16xf32> to vector<16x16xf32>
      %42 = vector.extract_strided_slice %40 {offsets = [16, 0], sizes = [16, 16], strides = [1, 1]} : vector<44x16xf32> to vector<16x16xf32>
      %43 = vector.extract_strided_slice %40 {offsets = [32, 0], sizes = [8, 16], strides = [1, 1]} : vector<44x16xf32> to vector<8x16xf32>
      %44 = vector.extract_strided_slice %40 {offsets = [40, 0], sizes = [4, 16], strides = [1, 1]} : vector<44x16xf32> to vector<4x16xf32>
      %45 = vector.extract_strided_slice %41 {offsets = [0, 0], sizes = [8, 16], strides = [1, 1]} : vector<16x16xf32> to vector<8x16xf32>
      %c0_26 = arith.constant 0 : index
      %c0_27 = arith.constant 0 : index
      %46 = vector.load %arg20[%c0_26, %c0_27] : memref<32x96xf32, #tpu.memory_space<vmem>>, vector<32x96xf32>
      %c0_28 = arith.constant 0 : index
      %c0_29 = arith.constant 0 : index
      %47 = vector.load %arg21[%c0_28, %c0_29] : memref<1x96xf32, #tpu.memory_space<vmem>>, vector<1x96xf32>
      %48 = tpu.concatenate %45, %arg45 in 1 : vector<8x16xf32>, vector<8x16xf32> -> vector<8x32xf32>
      %cst_30 = arith.constant dense<0.000000e+00> : vector<8x96xf32>
      %49 = tpu.matmul %48, %46, %cst_30 {dimension_numbers = #tpu.dot_dimension_numbers<[1], [0], [0], [1], [0, 0, 1, 1], [], []>} : vector<8x32xf32>, vector<32x96xf32>, vector<8x96xf32> -> vector<8x96xf32>
      %50 = vector.broadcast %47 : vector<1x96xf32> to vector<8x96xf32>
      %51 = arith.addf %49, %50 : vector<8x96xf32>
      %52 = vector.extract_strided_slice %51 {offsets = [0, 0], sizes = [8, 48], strides = [1, 1]} : vector<8x96xf32> to vector<8x48xf32>
      %53 = vector.extract_strided_slice %51 {offsets = [0, 48], sizes = [8, 48], strides = [1, 1]} : vector<8x96xf32> to vector<8x48xf32>
      %54 = vector.extract_strided_slice %52 {offsets = [0, 0], sizes = [8, 16], strides = [1, 1]} : vector<8x48xf32> to vector<8x16xf32>
      %55 = vector.extract_strided_slice %53 {offsets = [0, 0], sizes = [8, 16], strides = [1, 1]} : vector<8x48xf32> to vector<8x16xf32>
      %56 = arith.addf %54, %55 : vector<8x16xf32>
      %57 = arith.negf %56 : vector<8x16xf32>
      %58 = math.exp %57 : vector<8x16xf32>
      %cst_31 = arith.constant 1.000000e+00 : f32
      %59 = vector.broadcast %cst_31 : f32 to vector<8x16xf32>
      %60 = arith.addf %59, %58 : vector<8x16xf32>
      %61 = arith.divf %59, %60 : vector<8x16xf32>
      %62 = vector.extract_strided_slice %52 {offsets = [0, 16], sizes = [8, 16], strides = [1, 1]} : vector<8x48xf32> to vector<8x16xf32>
      %63 = vector.extract_strided_slice %53 {offsets = [0, 16], sizes = [8, 16], strides = [1, 1]} : vector<8x48xf32> to vector<8x16xf32>
      %64 = arith.addf %62, %63 : vector<8x16xf32>
      %65 = arith.negf %64 : vector<8x16xf32>
      %66 = math.exp %65 : vector<8x16xf32>
      %cst_32 = arith.constant 1.000000e+00 : f32
      %67 = vector.broadcast %cst_32 : f32 to vector<8x16xf32>
      %68 = arith.addf %67, %66 : vector<8x16xf32>
      %69 = arith.divf %67, %68 : vector<8x16xf32>
      %70 = vector.extract_strided_slice %52 {offsets = [0, 32], sizes = [8, 16], strides = [1, 1]} : vector<8x48xf32> to vector<8x16xf32>
      %71 = vector.extract_strided_slice %53 {offsets = [0, 32], sizes = [8, 16], strides = [1, 1]} : vector<8x48xf32> to vector<8x16xf32>
      %72 = arith.mulf %61, %71 : vector<8x16xf32>
      %73 = arith.addf %70, %72 : vector<8x16xf32>
      %74 = math.tanh %73 : vector<8x16xf32>
      %cst_33 = arith.constant 1.000000e+00 : f32
      %75 = vector.broadcast %cst_33 : f32 to vector<8x16xf32>
      %76 = arith.subf %75, %69 : vector<8x16xf32>
      %77 = arith.mulf %76, %74 : vector<8x16xf32>
      %78 = arith.mulf %69, %arg45 : vector<8x16xf32>
      %79 = arith.addf %77, %78 : vector<8x16xf32>
      %80 = vector.extract_strided_slice %41 {offsets = [8, 0], sizes = [8, 16], strides = [1, 1]} : vector<16x16xf32> to vector<8x16xf32>
      %c0_34 = arith.constant 0 : index
      %c0_35 = arith.constant 0 : index
      %81 = vector.load %arg22[%c0_34, %c0_35] : memref<32x96xf32, #tpu.memory_space<vmem>>, vector<32x96xf32>
      %c0_36 = arith.constant 0 : index
      %c0_37 = arith.constant 0 : index
      %82 = vector.load %arg23[%c0_36, %c0_37] : memref<1x96xf32, #tpu.memory_space<vmem>>, vector<1x96xf32>
      %83 = tpu.concatenate %80, %arg46 in 1 : vector<8x16xf32>, vector<8x16xf32> -> vector<8x32xf32>
      %cst_38 = arith.constant dense<0.000000e+00> : vector<8x96xf32>
      %84 = tpu.matmul %83, %81, %cst_38 {dimension_numbers = #tpu.dot_dimension_numbers<[1], [0], [0], [1], [0, 0, 1, 1], [], []>} : vector<8x32xf32>, vector<32x96xf32>, vector<8x96xf32> -> vector<8x96xf32>
      %85 = vector.broadcast %82 : vector<1x96xf32> to vector<8x96xf32>
      %86 = arith.addf %84, %85 : vector<8x96xf32>
      %87 = vector.extract_strided_slice %86 {offsets = [0, 0], sizes = [8, 48], strides = [1, 1]} : vector<8x96xf32> to vector<8x48xf32>
      %88 = vector.extract_strided_slice %86 {offsets = [0, 48], sizes = [8, 48], strides = [1, 1]} : vector<8x96xf32> to vector<8x48xf32>
      %89 = vector.extract_strided_slice %87 {offsets = [0, 0], sizes = [8, 16], strides = [1, 1]} : vector<8x48xf32> to vector<8x16xf32>
      %90 = vector.extract_strided_slice %88 {offsets = [0, 0], sizes = [8, 16], strides = [1, 1]} : vector<8x48xf32> to vector<8x16xf32>
      %91 = arith.addf %89, %90 : vector<8x16xf32>
      %92 = arith.negf %91 : vector<8x16xf32>
      %93 = math.exp %92 : vector<8x16xf32>
      %cst_39 = arith.constant 1.000000e+00 : f32
      %94 = vector.broadcast %cst_39 : f32 to vector<8x16xf32>
      %95 = arith.addf %94, %93 : vector<8x16xf32>
      %96 = arith.divf %94, %95 : vector<8x16xf32>
      %97 = vector.extract_strided_slice %87 {offsets = [0, 16], sizes = [8, 16], strides = [1, 1]} : vector<8x48xf32> to vector<8x16xf32>
      %98 = vector.extract_strided_slice %88 {offsets = [0, 16], sizes = [8, 16], strides = [1, 1]} : vector<8x48xf32> to vector<8x16xf32>
      %99 = arith.addf %97, %98 : vector<8x16xf32>
      %100 = arith.negf %99 : vector<8x16xf32>
      %101 = math.exp %100 : vector<8x16xf32>
      %cst_40 = arith.constant 1.000000e+00 : f32
      %102 = vector.broadcast %cst_40 : f32 to vector<8x16xf32>
      %103 = arith.addf %102, %101 : vector<8x16xf32>
      %104 = arith.divf %102, %103 : vector<8x16xf32>
      %105 = vector.extract_strided_slice %87 {offsets = [0, 32], sizes = [8, 16], strides = [1, 1]} : vector<8x48xf32> to vector<8x16xf32>
      %106 = vector.extract_strided_slice %88 {offsets = [0, 32], sizes = [8, 16], strides = [1, 1]} : vector<8x48xf32> to vector<8x16xf32>
      %107 = arith.mulf %96, %106 : vector<8x16xf32>
      %108 = arith.addf %105, %107 : vector<8x16xf32>
      %109 = math.tanh %108 : vector<8x16xf32>
      %cst_41 = arith.constant 1.000000e+00 : f32
      %110 = vector.broadcast %cst_41 : f32 to vector<8x16xf32>
      %111 = arith.subf %110, %104 : vector<8x16xf32>
      %112 = arith.mulf %111, %109 : vector<8x16xf32>
      %113 = arith.mulf %104, %arg46 : vector<8x16xf32>
      %114 = arith.addf %112, %113 : vector<8x16xf32>
      %115 = tpu.concatenate %79, %114 in 0 : vector<8x16xf32>, vector<8x16xf32> -> vector<16x16xf32>
      %c0_42 = arith.constant 0 : index
      %c0_43 = arith.constant 0 : index
      %116 = vector.load %arg4[%c0_42, %c0_43] : memref<16x4xf32, #tpu.memory_space<vmem>>, vector<16x4xf32>
      %117 = tpu.concatenate %115, %116 in 1 : vector<16x16xf32>, vector<16x4xf32> -> vector<16x20xf32>
      %c0_44 = arith.constant 0 : index
      %c0_45 = arith.constant 0 : index
      %118 = vector.load %arg3[%c0_44, %c0_45] : memref<8x20xf32, #tpu.memory_space<vmem>>, vector<8x20xf32>
      %119 = tpu.concatenate %118, %117 in 0 : vector<8x20xf32>, vector<16x20xf32> -> vector<24x20xf32>
      %c0_46 = arith.constant 0 : index
      %c0_47 = arith.constant 0 : index
      %120 = vector.load %arg2[%c0_46, %c0_47] : memref<96x24xf32, #tpu.memory_space<vmem>>, vector<96x24xf32>
      %c0_48 = arith.constant 0 : index
      %c0_49 = arith.constant 0 : index
      %121 = vector.load %arg24[%c0_48, %c0_49] : memref<20x32xf32, #tpu.memory_space<vmem>>, vector<20x32xf32>
      %c0_50 = arith.constant 0 : index
      %c0_51 = arith.constant 0 : index
      %122 = vector.load %arg25[%c0_50, %c0_51] : memref<96x32xf32, #tpu.memory_space<vmem>>, vector<96x32xf32>
      %c0_52 = arith.constant 0 : index
      %c0_53 = arith.constant 0 : index
      %123 = vector.load %arg26[%c0_52, %c0_53] : memref<96x32xf32, #tpu.memory_space<vmem>>, vector<96x32xf32>
      %c0_54 = arith.constant 0 : index
      %c0_55 = arith.constant 0 : index
      %124 = vector.load %arg27[%c0_54, %c0_55] : memref<1x32xf32, #tpu.memory_space<vmem>>, vector<1x32xf32>
      %cst_56 = arith.constant dense<0.000000e+00> : vector<24x32xf32>
      %125 = tpu.matmul %119, %121, %cst_56 {dimension_numbers = #tpu.dot_dimension_numbers<[1], [0], [0], [1], [0, 0, 1, 1], [], []>} : vector<24x20xf32>, vector<20x32xf32>, vector<24x32xf32> -> vector<24x32xf32>
      %126 = tpu.concatenate %125, %125, %125, %125 in 0 : vector<24x32xf32>, vector<24x32xf32>, vector<24x32xf32>, vector<24x32xf32> -> vector<96x32xf32>
      %127 = arith.mulf %126, %122 : vector<96x32xf32>
      %cst_57 = arith.constant dense<0.000000e+00> : vector<96xf32>
      %128 = vector.multi_reduction <add>, %127, %cst_57 [1] : vector<96x32xf32> to vector<96xf32>
      %129 = vector.shape_cast %128 : vector<96xf32> to vector<96x1xf32>
      %cst_58 = arith.constant dense<0.000000e+00> : vector<96x24xf32>
      %130 = tpu.matmul %123, %125, %cst_58 {dimension_numbers = #tpu.dot_dimension_numbers<[1], [1], [0], [0], [0, 0, 1, 0], [], []>} : vector<96x32xf32>, vector<24x32xf32>, vector<96x24xf32> -> vector<96x24xf32>
      %131 = vector.broadcast %129 : vector<96x1xf32> to vector<96x24xf32>
      %132 = arith.addf %131, %130 : vector<96x24xf32>
      %cst_59 = arith.constant 2.000000e-01 : f32
      %cst_60 = arith.constant 0.000000e+00 : f32
      %133 = vector.broadcast %cst_60 : f32 to vector<96x24xf32>
      %134 = arith.cmpf oge, %132, %133 : vector<96x24xf32>
      %135 = vector.broadcast %cst_59 : f32 to vector<96x24xf32>
      %136 = arith.mulf %135, %132 : vector<96x24xf32>
      %137 = arith.select %134, %132, %136 : vector<96x24xi1>, vector<96x24xf32>
      %138 = arith.addf %137, %120 : vector<96x24xf32>
      %cst_61 = arith.constant dense<0xFF800000> : vector<96xf32>
      %139 = vector.multi_reduction <maximumf>, %138, %cst_61 [1] : vector<96x24xf32> to vector<96xf32>
      %140 = vector.shape_cast %139 : vector<96xf32> to vector<96x1xf32>
      %141 = vector.broadcast %140 : vector<96x1xf32> to vector<96x24xf32>
      %142 = arith.subf %138, %141 : vector<96x24xf32>
      %143 = math.exp %142 : vector<96x24xf32>
      %cst_62 = arith.constant dense<0.000000e+00> : vector<96xf32>
      %144 = vector.multi_reduction <add>, %143, %cst_62 [1] : vector<96x24xf32> to vector<96xf32>
      %145 = vector.shape_cast %144 : vector<96xf32> to vector<96x1xf32>
      %146 = vector.broadcast %145 : vector<96x1xf32> to vector<96x24xf32>
      %147 = arith.divf %143, %146 : vector<96x24xf32>
      %cst_63 = arith.constant dense<0.000000e+00> : vector<96x32xf32>
      %148 = tpu.matmul %147, %125, %cst_63 {dimension_numbers = #tpu.dot_dimension_numbers<[1], [0], [0], [1], [0, 0, 1, 1], [], []>} : vector<96x24xf32>, vector<24x32xf32>, vector<96x32xf32> -> vector<96x32xf32>
      %149 = vector.extract_strided_slice %148 {offsets = [0, 0], sizes = [24, 8], strides = [1, 1]} : vector<96x32xf32> to vector<24x8xf32>
      %150 = vector.extract_strided_slice %148 {offsets = [24, 8], sizes = [24, 8], strides = [1, 1]} : vector<96x32xf32> to vector<24x8xf32>
      %151 = vector.extract_strided_slice %148 {offsets = [48, 16], sizes = [24, 8], strides = [1, 1]} : vector<96x32xf32> to vector<24x8xf32>
      %152 = vector.extract_strided_slice %148 {offsets = [72, 24], sizes = [24, 8], strides = [1, 1]} : vector<96x32xf32> to vector<24x8xf32>
      %153 = tpu.concatenate %149, %150, %151, %152 in 1 : vector<24x8xf32>, vector<24x8xf32>, vector<24x8xf32>, vector<24x8xf32> -> vector<24x32xf32>
      %154 = vector.broadcast %124 : vector<1x32xf32> to vector<24x32xf32>
      %155 = arith.addf %153, %154 : vector<24x32xf32>
      %cst_64 = arith.constant 0.00999999977 : f32
      %cst_65 = arith.constant 0.000000e+00 : f32
      %156 = vector.broadcast %cst_65 : f32 to vector<24x32xf32>
      %157 = arith.cmpf oge, %155, %156 : vector<24x32xf32>
      %158 = vector.broadcast %cst_64 : f32 to vector<24x32xf32>
      %159 = arith.mulf %158, %155 : vector<24x32xf32>
      %160 = arith.select %157, %155, %159 : vector<24x32xi1>, vector<24x32xf32>
      %c0_66 = arith.constant 0 : index
      %c0_67 = arith.constant 0 : index
      %161 = vector.load %arg28[%c0_66, %c0_67] : memref<32x32xf32, #tpu.memory_space<vmem>>, vector<32x32xf32>
      %c0_68 = arith.constant 0 : index
      %c0_69 = arith.constant 0 : index
      %162 = vector.load %arg29[%c0_68, %c0_69] : memref<96x32xf32, #tpu.memory_space<vmem>>, vector<96x32xf32>
      %c0_70 = arith.constant 0 : index
      %c0_71 = arith.constant 0 : index
      %163 = vector.load %arg30[%c0_70, %c0_71] : memref<96x32xf32, #tpu.memory_space<vmem>>, vector<96x32xf32>
      %c0_72 = arith.constant 0 : index
      %c0_73 = arith.constant 0 : index
      %164 = vector.load %arg31[%c0_72, %c0_73] : memref<1x32xf32, #tpu.memory_space<vmem>>, vector<1x32xf32>
      %cst_74 = arith.constant dense<0.000000e+00> : vector<24x32xf32>
      %165 = tpu.matmul %160, %161, %cst_74 {dimension_numbers = #tpu.dot_dimension_numbers<[1], [0], [0], [1], [0, 0, 1, 1], [], []>} : vector<24x32xf32>, vector<32x32xf32>, vector<24x32xf32> -> vector<24x32xf32>
      %166 = tpu.concatenate %165, %165, %165, %165 in 0 : vector<24x32xf32>, vector<24x32xf32>, vector<24x32xf32>, vector<24x32xf32> -> vector<96x32xf32>
      %167 = arith.mulf %166, %162 : vector<96x32xf32>
      %cst_75 = arith.constant dense<0.000000e+00> : vector<96xf32>
      %168 = vector.multi_reduction <add>, %167, %cst_75 [1] : vector<96x32xf32> to vector<96xf32>
      %169 = vector.shape_cast %168 : vector<96xf32> to vector<96x1xf32>
      %cst_76 = arith.constant dense<0.000000e+00> : vector<96x24xf32>
      %170 = tpu.matmul %163, %165, %cst_76 {dimension_numbers = #tpu.dot_dimension_numbers<[1], [1], [0], [0], [0, 0, 1, 0], [], []>} : vector<96x32xf32>, vector<24x32xf32>, vector<96x24xf32> -> vector<96x24xf32>
      %171 = vector.broadcast %169 : vector<96x1xf32> to vector<96x24xf32>
      %172 = arith.addf %171, %170 : vector<96x24xf32>
      %cst_77 = arith.constant 2.000000e-01 : f32
      %cst_78 = arith.constant 0.000000e+00 : f32
      %173 = vector.broadcast %cst_78 : f32 to vector<96x24xf32>
      %174 = arith.cmpf oge, %172, %173 : vector<96x24xf32>
      %175 = vector.broadcast %cst_77 : f32 to vector<96x24xf32>
      %176 = arith.mulf %175, %172 : vector<96x24xf32>
      %177 = arith.select %174, %172, %176 : vector<96x24xi1>, vector<96x24xf32>
      %178 = arith.addf %177, %120 : vector<96x24xf32>
      %cst_79 = arith.constant dense<0xFF800000> : vector<96xf32>
      %179 = vector.multi_reduction <maximumf>, %178, %cst_79 [1] : vector<96x24xf32> to vector<96xf32>
      %180 = vector.shape_cast %179 : vector<96xf32> to vector<96x1xf32>
      %181 = vector.broadcast %180 : vector<96x1xf32> to vector<96x24xf32>
      %182 = arith.subf %178, %181 : vector<96x24xf32>
      %183 = math.exp %182 : vector<96x24xf32>
      %cst_80 = arith.constant dense<0.000000e+00> : vector<96xf32>
      %184 = vector.multi_reduction <add>, %183, %cst_80 [1] : vector<96x24xf32> to vector<96xf32>
      %185 = vector.shape_cast %184 : vector<96xf32> to vector<96x1xf32>
      %186 = vector.broadcast %185 : vector<96x1xf32> to vector<96x24xf32>
      %187 = arith.divf %183, %186 : vector<96x24xf32>
      %cst_81 = arith.constant dense<0.000000e+00> : vector<96x32xf32>
      %188 = tpu.matmul %187, %165, %cst_81 {dimension_numbers = #tpu.dot_dimension_numbers<[1], [0], [0], [1], [0, 0, 1, 1], [], []>} : vector<96x24xf32>, vector<24x32xf32>, vector<96x32xf32> -> vector<96x32xf32>
      %189 = vector.extract_strided_slice %188 {offsets = [0, 0], sizes = [24, 8], strides = [1, 1]} : vector<96x32xf32> to vector<24x8xf32>
      %190 = vector.extract_strided_slice %188 {offsets = [24, 8], sizes = [24, 8], strides = [1, 1]} : vector<96x32xf32> to vector<24x8xf32>
      %191 = vector.extract_strided_slice %188 {offsets = [48, 16], sizes = [24, 8], strides = [1, 1]} : vector<96x32xf32> to vector<24x8xf32>
      %192 = vector.extract_strided_slice %188 {offsets = [72, 24], sizes = [24, 8], strides = [1, 1]} : vector<96x32xf32> to vector<24x8xf32>
      %193 = tpu.concatenate %189, %190, %191, %192 in 1 : vector<24x8xf32>, vector<24x8xf32>, vector<24x8xf32>, vector<24x8xf32> -> vector<24x32xf32>
      %194 = vector.broadcast %164 : vector<1x32xf32> to vector<24x32xf32>
      %195 = arith.addf %193, %194 : vector<24x32xf32>
      %cst_82 = arith.constant 0.00999999977 : f32
      %cst_83 = arith.constant 0.000000e+00 : f32
      %196 = vector.broadcast %cst_83 : f32 to vector<24x32xf32>
      %197 = arith.cmpf oge, %195, %196 : vector<24x32xf32>
      %198 = vector.broadcast %cst_82 : f32 to vector<24x32xf32>
      %199 = arith.mulf %198, %195 : vector<24x32xf32>
      %200 = arith.select %197, %195, %199 : vector<24x32xi1>, vector<24x32xf32>
      %c0_84 = arith.constant 0 : index
      %c0_85 = arith.constant 0 : index
      %201 = vector.load %arg32[%c0_84, %c0_85] : memref<32x32xf32, #tpu.memory_space<vmem>>, vector<32x32xf32>
      %c0_86 = arith.constant 0 : index
      %c0_87 = arith.constant 0 : index
      %202 = vector.load %arg33[%c0_86, %c0_87] : memref<96x32xf32, #tpu.memory_space<vmem>>, vector<96x32xf32>
      %c0_88 = arith.constant 0 : index
      %c0_89 = arith.constant 0 : index
      %203 = vector.load %arg34[%c0_88, %c0_89] : memref<96x32xf32, #tpu.memory_space<vmem>>, vector<96x32xf32>
      %c0_90 = arith.constant 0 : index
      %c0_91 = arith.constant 0 : index
      %204 = vector.load %arg35[%c0_90, %c0_91] : memref<1x32xf32, #tpu.memory_space<vmem>>, vector<1x32xf32>
      %cst_92 = arith.constant dense<0.000000e+00> : vector<24x32xf32>
      %205 = tpu.matmul %200, %201, %cst_92 {dimension_numbers = #tpu.dot_dimension_numbers<[1], [0], [0], [1], [0, 0, 1, 1], [], []>} : vector<24x32xf32>, vector<32x32xf32>, vector<24x32xf32> -> vector<24x32xf32>
      %206 = tpu.concatenate %205, %205, %205, %205 in 0 : vector<24x32xf32>, vector<24x32xf32>, vector<24x32xf32>, vector<24x32xf32> -> vector<96x32xf32>
      %207 = arith.mulf %206, %202 : vector<96x32xf32>
      %cst_93 = arith.constant dense<0.000000e+00> : vector<96xf32>
      %208 = vector.multi_reduction <add>, %207, %cst_93 [1] : vector<96x32xf32> to vector<96xf32>
      %209 = vector.shape_cast %208 : vector<96xf32> to vector<96x1xf32>
      %cst_94 = arith.constant dense<0.000000e+00> : vector<96x24xf32>
      %210 = tpu.matmul %203, %205, %cst_94 {dimension_numbers = #tpu.dot_dimension_numbers<[1], [1], [0], [0], [0, 0, 1, 0], [], []>} : vector<96x32xf32>, vector<24x32xf32>, vector<96x24xf32> -> vector<96x24xf32>
      %211 = vector.broadcast %209 : vector<96x1xf32> to vector<96x24xf32>
      %212 = arith.addf %211, %210 : vector<96x24xf32>
      %cst_95 = arith.constant 2.000000e-01 : f32
      %cst_96 = arith.constant 0.000000e+00 : f32
      %213 = vector.broadcast %cst_96 : f32 to vector<96x24xf32>
      %214 = arith.cmpf oge, %212, %213 : vector<96x24xf32>
      %215 = vector.broadcast %cst_95 : f32 to vector<96x24xf32>
      %216 = arith.mulf %215, %212 : vector<96x24xf32>
      %217 = arith.select %214, %212, %216 : vector<96x24xi1>, vector<96x24xf32>
      %218 = arith.addf %217, %120 : vector<96x24xf32>
      %cst_97 = arith.constant dense<0xFF800000> : vector<96xf32>
      %219 = vector.multi_reduction <maximumf>, %218, %cst_97 [1] : vector<96x24xf32> to vector<96xf32>
      %220 = vector.shape_cast %219 : vector<96xf32> to vector<96x1xf32>
      %221 = vector.broadcast %220 : vector<96x1xf32> to vector<96x24xf32>
      %222 = arith.subf %218, %221 : vector<96x24xf32>
      %223 = math.exp %222 : vector<96x24xf32>
      %cst_98 = arith.constant dense<0.000000e+00> : vector<96xf32>
      %224 = vector.multi_reduction <add>, %223, %cst_98 [1] : vector<96x24xf32> to vector<96xf32>
      %225 = vector.shape_cast %224 : vector<96xf32> to vector<96x1xf32>
      %226 = vector.broadcast %225 : vector<96x1xf32> to vector<96x24xf32>
      %227 = arith.divf %223, %226 : vector<96x24xf32>
      %cst_99 = arith.constant dense<0.000000e+00> : vector<96x32xf32>
      %228 = tpu.matmul %227, %205, %cst_99 {dimension_numbers = #tpu.dot_dimension_numbers<[1], [0], [0], [1], [0, 0, 1, 1], [], []>} : vector<96x24xf32>, vector<24x32xf32>, vector<96x32xf32> -> vector<96x32xf32>
      %229 = vector.extract_strided_slice %228 {offsets = [0, 0], sizes = [24, 8], strides = [1, 1]} : vector<96x32xf32> to vector<24x8xf32>
      %230 = vector.extract_strided_slice %228 {offsets = [24, 8], sizes = [24, 8], strides = [1, 1]} : vector<96x32xf32> to vector<24x8xf32>
      %231 = vector.extract_strided_slice %228 {offsets = [48, 16], sizes = [24, 8], strides = [1, 1]} : vector<96x32xf32> to vector<24x8xf32>
      %232 = vector.extract_strided_slice %228 {offsets = [72, 24], sizes = [24, 8], strides = [1, 1]} : vector<96x32xf32> to vector<24x8xf32>
      %233 = tpu.concatenate %229, %230, %231, %232 in 1 : vector<24x8xf32>, vector<24x8xf32>, vector<24x8xf32>, vector<24x8xf32> -> vector<24x32xf32>
      %234 = vector.broadcast %204 : vector<1x32xf32> to vector<24x32xf32>
      %235 = arith.addf %233, %234 : vector<24x32xf32>
      %cst_100 = arith.constant 0.00999999977 : f32
      %cst_101 = arith.constant 0.000000e+00 : f32
      %236 = vector.broadcast %cst_101 : f32 to vector<24x32xf32>
      %237 = arith.cmpf oge, %235, %236 : vector<24x32xf32>
      %238 = vector.broadcast %cst_100 : f32 to vector<24x32xf32>
      %239 = arith.mulf %238, %235 : vector<24x32xf32>
      %240 = arith.select %237, %235, %239 : vector<24x32xi1>, vector<24x32xf32>
      %c0_102 = arith.constant 0 : index
      %c0_103 = arith.constant 0 : index
      %241 = vector.load %arg36[%c0_102, %c0_103] : memref<32x32xf32, #tpu.memory_space<vmem>>, vector<32x32xf32>
      %c0_104 = arith.constant 0 : index
      %c0_105 = arith.constant 0 : index
      %242 = vector.load %arg37[%c0_104, %c0_105] : memref<96x32xf32, #tpu.memory_space<vmem>>, vector<96x32xf32>
      %c0_106 = arith.constant 0 : index
      %c0_107 = arith.constant 0 : index
      %243 = vector.load %arg38[%c0_106, %c0_107] : memref<96x32xf32, #tpu.memory_space<vmem>>, vector<96x32xf32>
      %c0_108 = arith.constant 0 : index
      %c0_109 = arith.constant 0 : index
      %244 = vector.load %arg39[%c0_108, %c0_109] : memref<1x8xf32, #tpu.memory_space<vmem>>, vector<1x8xf32>
      %cst_110 = arith.constant dense<0.000000e+00> : vector<24x32xf32>
      %245 = tpu.matmul %240, %241, %cst_110 {dimension_numbers = #tpu.dot_dimension_numbers<[1], [0], [0], [1], [0, 0, 1, 1], [], []>} : vector<24x32xf32>, vector<32x32xf32>, vector<24x32xf32> -> vector<24x32xf32>
      %246 = tpu.concatenate %245, %245, %245, %245 in 0 : vector<24x32xf32>, vector<24x32xf32>, vector<24x32xf32>, vector<24x32xf32> -> vector<96x32xf32>
      %247 = arith.mulf %246, %242 : vector<96x32xf32>
      %cst_111 = arith.constant dense<0.000000e+00> : vector<96xf32>
      %248 = vector.multi_reduction <add>, %247, %cst_111 [1] : vector<96x32xf32> to vector<96xf32>
      %249 = vector.shape_cast %248 : vector<96xf32> to vector<96x1xf32>
      %cst_112 = arith.constant dense<0.000000e+00> : vector<96x24xf32>
      %250 = tpu.matmul %243, %245, %cst_112 {dimension_numbers = #tpu.dot_dimension_numbers<[1], [1], [0], [0], [0, 0, 1, 0], [], []>} : vector<96x32xf32>, vector<24x32xf32>, vector<96x24xf32> -> vector<96x24xf32>
      %251 = vector.broadcast %249 : vector<96x1xf32> to vector<96x24xf32>
      %252 = arith.addf %251, %250 : vector<96x24xf32>
      %cst_113 = arith.constant 2.000000e-01 : f32
      %cst_114 = arith.constant 0.000000e+00 : f32
      %253 = vector.broadcast %cst_114 : f32 to vector<96x24xf32>
      %254 = arith.cmpf oge, %252, %253 : vector<96x24xf32>
      %255 = vector.broadcast %cst_113 : f32 to vector<96x24xf32>
      %256 = arith.mulf %255, %252 : vector<96x24xf32>
      %257 = arith.select %254, %252, %256 : vector<96x24xi1>, vector<96x24xf32>
      %258 = arith.addf %257, %120 : vector<96x24xf32>
      %cst_115 = arith.constant dense<0xFF800000> : vector<96xf32>
      %259 = vector.multi_reduction <maximumf>, %258, %cst_115 [1] : vector<96x24xf32> to vector<96xf32>
      %260 = vector.shape_cast %259 : vector<96xf32> to vector<96x1xf32>
      %261 = vector.broadcast %260 : vector<96x1xf32> to vector<96x24xf32>
      %262 = arith.subf %258, %261 : vector<96x24xf32>
      %263 = math.exp %262 : vector<96x24xf32>
      %cst_116 = arith.constant dense<0.000000e+00> : vector<96xf32>
      %264 = vector.multi_reduction <add>, %263, %cst_116 [1] : vector<96x24xf32> to vector<96xf32>
      %265 = vector.shape_cast %264 : vector<96xf32> to vector<96x1xf32>
      %266 = vector.broadcast %265 : vector<96x1xf32> to vector<96x24xf32>
      %267 = arith.divf %263, %266 : vector<96x24xf32>
      %cst_117 = arith.constant dense<0.000000e+00> : vector<96x32xf32>
      %268 = tpu.matmul %267, %245, %cst_117 {dimension_numbers = #tpu.dot_dimension_numbers<[1], [0], [0], [1], [0, 0, 1, 1], [], []>} : vector<96x24xf32>, vector<24x32xf32>, vector<96x32xf32> -> vector<96x32xf32>
      %269 = vector.extract_strided_slice %268 {offsets = [0, 0], sizes = [24, 8], strides = [1, 1]} : vector<96x32xf32> to vector<24x8xf32>
      %270 = vector.extract_strided_slice %268 {offsets = [24, 8], sizes = [24, 8], strides = [1, 1]} : vector<96x32xf32> to vector<24x8xf32>
      %271 = vector.extract_strided_slice %268 {offsets = [48, 16], sizes = [24, 8], strides = [1, 1]} : vector<96x32xf32> to vector<24x8xf32>
      %272 = vector.extract_strided_slice %268 {offsets = [72, 24], sizes = [24, 8], strides = [1, 1]} : vector<96x32xf32> to vector<24x8xf32>
      %273 = arith.addf %269, %270 : vector<24x8xf32>
      %274 = arith.addf %273, %271 : vector<24x8xf32>
      %275 = arith.addf %274, %272 : vector<24x8xf32>
      %cst_118 = arith.constant 2.500000e-01 : f32
      %276 = vector.broadcast %cst_118 : f32 to vector<24x8xf32>
      %277 = arith.mulf %275, %276 : vector<24x8xf32>
      %278 = vector.broadcast %244 : vector<1x8xf32> to vector<24x8xf32>
      %279 = arith.addf %277, %278 : vector<24x8xf32>
      %cst_119 = arith.constant 0.00999999977 : f32
      %cst_120 = arith.constant 0.000000e+00 : f32
      %280 = vector.broadcast %cst_120 : f32 to vector<24x8xf32>
      %281 = arith.cmpf oge, %279, %280 : vector<24x8xf32>
      %282 = vector.broadcast %cst_119 : f32 to vector<24x8xf32>
      %283 = arith.mulf %282, %279 : vector<24x8xf32>
      %284 = arith.select %281, %279, %283 : vector<24x8xi1>, vector<24x8xf32>
      %c0_121 = arith.constant 0 : index
      %c0_122 = arith.constant 0 : index
      %285 = vector.load %arg40[%c0_121, %c0_122] : memref<8x3xf32, #tpu.memory_space<vmem>>, vector<8x3xf32>
      %cst_123 = arith.constant dense<0.000000e+00> : vector<24x3xf32>
      %286 = tpu.matmul %284, %285, %cst_123 {dimension_numbers = #tpu.dot_dimension_numbers<[1], [0], [0], [1], [0, 0, 1, 1], [], []>} : vector<24x8xf32>, vector<8x3xf32>, vector<24x3xf32> -> vector<24x3xf32>
      %c0_124 = arith.constant 0 : index
      %c0_125 = arith.constant 0 : index
      %287 = vector.load %arg14[%c0_124, %c0_125] : memref<24x24xf32, #tpu.memory_space<vmem>>, vector<24x24xf32>
      %cst_126 = arith.constant dense<0.000000e+00> : vector<24x3xf32>
      %288 = tpu.matmul %287, %286, %cst_126 {dimension_numbers = #tpu.dot_dimension_numbers<[1], [0], [0], [1], [0, 0, 1, 1], [], []>} : vector<24x24xf32>, vector<24x3xf32>, vector<24x3xf32> -> vector<24x3xf32>
      %c0_127 = arith.constant 0 : index
      %c0_128 = arith.constant 0 : index
      %289 = vector.load %arg41[%c0_127, %c0_128] : memref<1x1xf32, #tpu.memory_space<vmem>>, vector<1x1xf32>
      %290 = vector.extract_strided_slice %288 {offsets = [0, 0], sizes = [16, 1], strides = [1, 1]} : vector<24x3xf32> to vector<16x1xf32>
      %291 = vector.extract_strided_slice %288 {offsets = [16, 1], sizes = [8, 1], strides = [1, 1]} : vector<24x3xf32> to vector<8x1xf32>
      %292 = vector.extract_strided_slice %288 {offsets = [16, 2], sizes = [8, 1], strides = [1, 1]} : vector<24x3xf32> to vector<8x1xf32>
      %293 = vector.broadcast %289 : vector<1x1xf32> to vector<8x1xf32>
      %294 = arith.addf %292, %293 : vector<8x1xf32>
      %295 = arith.negf %294 : vector<8x1xf32>
      %296 = math.exp %295 : vector<8x1xf32>
      %cst_129 = arith.constant 1.000000e+00 : f32
      %297 = vector.broadcast %cst_129 : f32 to vector<8x1xf32>
      %298 = arith.addf %297, %296 : vector<8x1xf32>
      %299 = arith.divf %297, %298 : vector<8x1xf32>
      %c0_130 = arith.constant 0 : index
      %c0_131 = arith.constant 0 : index
      %300 = vector.load %arg15[%c0_130, %c0_131] : memref<16x8xf32, #tpu.memory_space<vmem>>, vector<16x8xf32>
      %cst_132 = arith.constant dense<0.000000e+00> : vector<16x1xf32>
      %301 = tpu.matmul %300, %291, %cst_132 {dimension_numbers = #tpu.dot_dimension_numbers<[1], [0], [0], [1], [0, 0, 1, 1], [], []>} : vector<16x8xf32>, vector<8x1xf32>, vector<16x1xf32> -> vector<16x1xf32>
      %302 = arith.addf %301, %290 : vector<16x1xf32>
      %303 = vector.broadcast %289 : vector<1x1xf32> to vector<16x1xf32>
      %304 = arith.addf %302, %303 : vector<16x1xf32>
      %305 = arith.negf %304 : vector<16x1xf32>
      %306 = math.exp %305 : vector<16x1xf32>
      %cst_133 = arith.constant 1.000000e+00 : f32
      %307 = vector.broadcast %cst_133 : f32 to vector<16x1xf32>
      %308 = arith.addf %307, %306 : vector<16x1xf32>
      %309 = arith.divf %307, %308 : vector<16x1xf32>
      %310 = math.exp %309 : vector<16x1xf32>
      %311 = tpu.concatenate %310, %309 in 1 : vector<16x1xf32>, vector<16x1xf32> -> vector<16x2xf32>
      %c0_134 = arith.constant 0 : index
      %c0_135 = arith.constant 0 : index
      %312 = vector.load %arg16[%c0_134, %c0_135] : memref<8x16xf32, #tpu.memory_space<vmem>>, vector<8x16xf32>
      %cst_136 = arith.constant dense<0.000000e+00> : vector<8x2xf32>
      %313 = tpu.matmul %312, %311, %cst_136 {dimension_numbers = #tpu.dot_dimension_numbers<[1], [0], [0], [1], [0, 0, 1, 1], [], []>} : vector<8x16xf32>, vector<16x2xf32>, vector<8x2xf32> -> vector<8x2xf32>
      %314 = vector.extract_strided_slice %313 {offsets = [0, 0], sizes = [8, 1], strides = [1, 1]} : vector<8x2xf32> to vector<8x1xf32>
      %315 = vector.extract_strided_slice %313 {offsets = [0, 1], sizes = [8, 1], strides = [1, 1]} : vector<8x2xf32> to vector<8x1xf32>
      %c0_137 = arith.constant 0 : index
      %c0_138 = arith.constant 0 : index
      %316 = vector.load %arg18[%c0_137, %c0_138] : memref<8x1xf32, #tpu.memory_space<vmem>>, vector<8x1xf32>
      %317 = arith.mulf %315, %316 : vector<8x1xf32>
      %c0_139 = arith.constant 0 : index
      %c0_140 = arith.constant 0 : index
      %318 = vector.load %arg15[%c0_139, %c0_140] : memref<16x8xf32, #tpu.memory_space<vmem>>, vector<16x8xf32>
      %cst_141 = arith.constant dense<0.000000e+00> : vector<16x1xf32>
      %319 = tpu.matmul %318, %314, %cst_141 {dimension_numbers = #tpu.dot_dimension_numbers<[1], [0], [0], [1], [0, 0, 1, 1], [], []>} : vector<16x8xf32>, vector<8x1xf32>, vector<16x1xf32> -> vector<16x1xf32>
      %320 = arith.divf %310, %319 : vector<16x1xf32>
      %c0_142 = arith.constant 0 : index
      %c0_143 = arith.constant 0 : index
      %321 = vector.load %arg17[%c0_142, %c0_143] : memref<8x16xf32, #tpu.memory_space<vmem>>, vector<8x16xf32>
      %322 = vector.broadcast %320 : vector<16x1xf32> to vector<16x16xf32>
      %323 = arith.mulf %42, %322 : vector<16x16xf32>
      %cst_144 = arith.constant dense<0.000000e+00> : vector<8x16xf32>
      %324 = tpu.matmul %321, %323, %cst_144 {dimension_numbers = #tpu.dot_dimension_numbers<[1], [0], [0], [1], [0, 0, 1, 1], [], []>} : vector<8x16xf32>, vector<16x16xf32>, vector<8x16xf32> -> vector<8x16xf32>
      %325 = arith.maximumf %317, %299 : vector<8x1xf32>
      %326 = arith.subf %317, %325 : vector<8x1xf32>
      %327 = math.exp %326 : vector<8x1xf32>
      %328 = arith.subf %299, %325 : vector<8x1xf32>
      %329 = math.exp %328 : vector<8x1xf32>
      %330 = arith.addf %327, %329 : vector<8x1xf32>
      %cst_145 = arith.constant 1.000000e+00 : f32
      %331 = vector.broadcast %cst_145 : f32 to vector<8x1xf32>
      %332 = arith.divf %331, %330 : vector<8x1xf32>
      %333 = arith.mulf %327, %332 : vector<8x1xf32>
      %334 = vector.broadcast %333 : vector<8x1xf32> to vector<8x16xf32>
      %335 = arith.mulf %324, %334 : vector<8x16xf32>
      %336 = arith.mulf %329, %332 : vector<8x1xf32>
      %337 = vector.broadcast %336 : vector<8x1xf32> to vector<8x16xf32>
      %338 = arith.mulf %43, %337 : vector<8x16xf32>
      %339 = arith.addf %335, %338 : vector<8x16xf32>
      %cst_146 = arith.constant 1.000000e+09 : f32
      %340 = vector.shape_cast %2 : vector<1x16xi1> to vector<1x16xi1>
      %341 = vector.broadcast %340 : vector<1x16xi1> to vector<8x16xi1>
      %342 = vector.broadcast %cst_146 : f32 to vector<8x16xf32>
      %343 = arith.select %341, %339, %342 : vector<8x16xi1>, vector<8x16xf32>
      %cst_147 = arith.constant dense<0x7F800000> : vector<8xf32>
      %344 = vector.multi_reduction <minimumf>, %343, %cst_147 [1] : vector<8x16xf32> to vector<8xf32>
      %345 = vector.shape_cast %344 : vector<8xf32> to vector<8x1xf32>
      %346 = vector.broadcast %345 : vector<8x1xf32> to vector<8x16xf32>
      %347 = arith.subf %339, %346 : vector<8x16xf32>
      %cst_148 = arith.constant 0.000000e+00 : f32
      %348 = vector.shape_cast %2 : vector<1x16xi1> to vector<1x16xi1>
      %349 = vector.broadcast %348 : vector<1x16xi1> to vector<8x16xi1>
      %350 = vector.broadcast %cst_148 : f32 to vector<8x16xf32>
      %351 = arith.select %349, %347, %350 : vector<8x16xi1>, vector<8x16xf32>
      %c0_149 = arith.constant 0 : index
      %c0_150 = arith.constant 0 : index
      %352 = vector.load %arg13[%c0_149, %c0_150] : memref<16x1xf32, #tpu.memory_space<vmem>>, vector<16x1xf32>
      %353 = vector.broadcast %352 : vector<16x1xf32> to vector<16x16xf32>
      %354 = arith.mulf %38, %353 : vector<16x16xf32>
      %c0_151 = arith.constant 0 : index
      %c0_152 = arith.constant 0 : index
      %355 = vector.load %arg12[%c0_151, %c0_152] : memref<16x8xf32, #tpu.memory_space<vmem>>, vector<16x8xf32>
      %cst_153 = arith.constant dense<0.000000e+00> : vector<16x16xf32>
      %356 = tpu.matmul %355, %351, %cst_153 {dimension_numbers = #tpu.dot_dimension_numbers<[1], [0], [0], [1], [0, 0, 1, 1], [], []>} : vector<16x8xf32>, vector<8x16xf32>, vector<16x16xf32> -> vector<16x16xf32>
      %357 = arith.addf %354, %356 : vector<16x16xf32>
      %cst_154 = arith.constant 0.000000e+00 : f32
      %358 = vector.broadcast %cst_154 : f32 to vector<4x16xf32>
      %359 = arith.subf %358, %44 : vector<4x16xf32>
      %cst_155 = arith.constant -1.000000e+30 : f32
      %360 = vector.shape_cast %2 : vector<1x16xi1> to vector<1x16xi1>
      %361 = vector.broadcast %360 : vector<1x16xi1> to vector<4x16xi1>
      %362 = vector.broadcast %cst_155 : f32 to vector<4x16xf32>
      %363 = arith.select %361, %359, %362 : vector<4x16xi1>, vector<4x16xf32>
      %cst_156 = arith.constant dense<0xFF800000> : vector<4xf32>
      %364 = vector.multi_reduction <maximumf>, %363, %cst_156 [1] : vector<4x16xf32> to vector<4xf32>
      %365 = vector.shape_cast %364 : vector<4xf32> to vector<4x1xf32>
      %366 = vector.broadcast %365 : vector<4x1xf32> to vector<4x16xf32>
      %367 = arith.subf %363, %366 : vector<4x16xf32>
      %368 = math.exp %367 : vector<4x16xf32>
      %cst_157 = arith.constant dense<0.000000e+00> : vector<4xf32>
      %369 = vector.multi_reduction <add>, %368, %cst_157 [1] : vector<4x16xf32> to vector<4xf32>
      %370 = vector.shape_cast %369 : vector<4xf32> to vector<4x1xf32>
      %371 = vector.broadcast %370 : vector<4x1xf32> to vector<4x16xf32>
      %372 = arith.divf %368, %371 : vector<4x16xf32>
      %cst_158 = arith.constant 9.99999997E-7 : f32
      %373 = vector.broadcast %cst_158 : f32 to vector<4x16xf32>
      %374 = arith.addf %372, %373 : vector<4x16xf32>
      %375 = math.log %374 : vector<4x16xf32>
      %cst_159 = arith.constant 1.44269502 : f32
      %376 = vector.broadcast %cst_159 : f32 to vector<4x16xf32>
      %377 = arith.mulf %375, %376 : vector<4x16xf32>
      %378 = arith.mulf %372, %377 : vector<4x16xf32>
      %cst_160 = arith.constant dense<0.000000e+00> : vector<4xf32>
      %379 = vector.multi_reduction <add>, %378, %cst_160 [1] : vector<4x16xf32> to vector<4xf32>
      %380 = vector.shape_cast %379 : vector<4xf32> to vector<4x1xf32>
      %cst_161 = arith.constant 0.000000e+00 : f32
      %381 = vector.broadcast %cst_161 : f32 to vector<4x1xf32>
      %382 = arith.subf %381, %380 : vector<4x1xf32>
      %cst_162 = arith.constant dense<0.000000e+00> : vector<1xf32>
      %383 = vector.multi_reduction <add>, %382, %cst_162 [0] : vector<4x1xf32> to vector<1xf32>
      %384 = vector.shape_cast %383 : vector<1xf32> to vector<1x1xf32>
      %cst_163 = arith.constant 4.000000e+00 : f32
      %385 = vector.broadcast %cst_163 : f32 to vector<1x1xf32>
      %386 = arith.divf %384, %385 : vector<1x1xf32>
      %c0_164 = arith.constant 0 : index
      %c0_165 = arith.constant 0 : index
      %387 = vector.load %arg19[%c0_164, %c0_165] : memref<8x4xf32, #tpu.memory_space<vmem>>, vector<8x4xf32>
      %cst_166 = arith.constant dense<0.000000e+00> : vector<8x16xf32>
      %388 = tpu.matmul %387, %372, %cst_166 {dimension_numbers = #tpu.dot_dimension_numbers<[1], [0], [0], [1], [0, 0, 1, 1], [], []>} : vector<8x4xf32>, vector<4x16xf32>, vector<8x16xf32> -> vector<8x16xf32>
      %389 = vector.extract_strided_slice %388 {offsets = [0, 0], sizes = [4, 16], strides = [1, 1]} : vector<8x16xf32> to vector<4x16xf32>
      %390 = vector.extract_strided_slice %388 {offsets = [4, 0], sizes = [4, 16], strides = [1, 1]} : vector<8x16xf32> to vector<4x16xf32>
      %391 = vector.shape_cast %390 : vector<4x16xf32> to vector<4x1x16xf32>
      %392 = vector.broadcast %391 : vector<4x1x16xf32> to vector<4x16x16xf32>
      %393 = arith.mulf %10, %392 : vector<4x16x16xf32>
      %cst_167 = arith.constant dense<0.000000e+00> : vector<4x16xf32>
      %394 = vector.multi_reduction <add>, %393, %cst_167 [2] : vector<4x16x16xf32> to vector<4x16xf32>
      %395 = arith.mulf %394, %389 : vector<4x16xf32>
      %cst_168 = arith.constant dense<0.000000e+00> : vector<4xf32>
      %396 = vector.multi_reduction <add>, %395, %cst_168 [1] : vector<4x16xf32> to vector<4xf32>
      %397 = vector.shape_cast %396 : vector<4xf32> to vector<4x1xf32>
      %cst_169 = arith.constant dense<0.000000e+00> : vector<1xf32>
      %398 = vector.multi_reduction <add>, %397, %cst_169 [0] : vector<4x1xf32> to vector<1xf32>
      %399 = vector.shape_cast %398 : vector<1xf32> to vector<1x1xf32>
      %cst_170 = arith.constant 1.000000e+00 : f32
      %400 = vector.broadcast %cst_170 : f32 to vector<1x1xf32>
      %401 = arith.divf %399, %400 : vector<1x1xf32>
      %cst_171 = arith.constant 1.000000e-01 : f32
      %402 = vector.broadcast %cst_171 : f32 to vector<1x1xf32>
      %403 = arith.mulf %402, %386 : vector<1x1xf32>
      %404 = arith.addf %401, %403 : vector<1x1xf32>
      %cst_172 = arith.constant dense<0xFF800000> : vector<4xf32>
      %405 = vector.multi_reduction <maximumf>, %389, %cst_172 [1] : vector<4x16xf32> to vector<4xf32>
      %406 = vector.shape_cast %405 : vector<4xf32> to vector<4x1xf32>
      %407 = vector.broadcast %406 : vector<4x1xf32> to vector<4x16xf32>
      %408 = arith.cmpf oge, %389, %407 : vector<4x16xf32>
      %cst_173 = arith.constant 1.600000e+01 : f32
      %409 = vector.broadcast %cst_173 : f32 to vector<4x16xf32>
      %410 = arith.select %408, %4, %409 : vector<4x16xi1>, vector<4x16xf32>
      %cst_174 = arith.constant dense<0x7F800000> : vector<4xf32>
      %411 = vector.multi_reduction <minimumf>, %410, %cst_174 [1] : vector<4x16xf32> to vector<4xf32>
      %412 = vector.shape_cast %411 : vector<4xf32> to vector<4x1xf32>
      %413 = vector.broadcast %412 : vector<4x1xf32> to vector<4x16xf32>
      %414 = arith.cmpf oeq, %4, %413 : vector<4x16xf32>
      %415 = arith.extui %414 : vector<4x16xi1> to vector<4x16xi32>
      %416 = arith.sitofp %415 : vector<4x16xi32> to vector<4x16xf32>
      %cst_175 = arith.constant dense<0xFF800000> : vector<4xf32>
      %417 = vector.multi_reduction <maximumf>, %390, %cst_175 [1] : vector<4x16xf32> to vector<4xf32>
      %418 = vector.shape_cast %417 : vector<4xf32> to vector<4x1xf32>
      %419 = vector.broadcast %418 : vector<4x1xf32> to vector<4x16xf32>
      %420 = arith.cmpf oge, %390, %419 : vector<4x16xf32>
      %cst_176 = arith.constant 1.600000e+01 : f32
      %421 = vector.broadcast %cst_176 : f32 to vector<4x16xf32>
      %422 = arith.select %420, %4, %421 : vector<4x16xi1>, vector<4x16xf32>
      %cst_177 = arith.constant dense<0x7F800000> : vector<4xf32>
      %423 = vector.multi_reduction <minimumf>, %422, %cst_177 [1] : vector<4x16xf32> to vector<4xf32>
      %424 = vector.shape_cast %423 : vector<4xf32> to vector<4x1xf32>
      %425 = vector.broadcast %424 : vector<4x1xf32> to vector<4x16xf32>
      %426 = arith.cmpf oeq, %4, %425 : vector<4x16xf32>
      %427 = arith.extui %426 : vector<4x16xi1> to vector<4x16xi32>
      %428 = arith.sitofp %427 : vector<4x16xi32> to vector<4x16xf32>
      %429 = vector.shape_cast %428 : vector<4x16xf32> to vector<4x1x16xf32>
      %430 = vector.broadcast %429 : vector<4x1x16xf32> to vector<4x16x16xf32>
      %431 = arith.mulf %10, %430 : vector<4x16x16xf32>
      %cst_178 = arith.constant dense<0.000000e+00> : vector<4x16xf32>
      %432 = vector.multi_reduction <add>, %431, %cst_178 [2] : vector<4x16x16xf32> to vector<4x16xf32>
      %433 = arith.mulf %432, %416 : vector<4x16xf32>
      %cst_179 = arith.constant dense<0.000000e+00> : vector<4xf32>
      %434 = vector.multi_reduction <add>, %433, %cst_179 [1] : vector<4x16xf32> to vector<4xf32>
      %435 = vector.shape_cast %434 : vector<4xf32> to vector<4x1xf32>
      %cst_180 = arith.constant dense<0.000000e+00> : vector<1xf32>
      %436 = vector.multi_reduction <add>, %435, %cst_180 [0] : vector<4x1xf32> to vector<1xf32>
      %437 = vector.shape_cast %436 : vector<1xf32> to vector<1x1xf32>
      %cst_181 = arith.constant 1.000000e+00 : f32
      %438 = vector.broadcast %cst_181 : f32 to vector<1x1xf32>
      %439 = arith.divf %437, %438 : vector<1x1xf32>
      %440 = tpu.concatenate %404, %439 in 1 : vector<1x1xf32>, vector<1x1xf32> -> vector<1x2xf32>
      %441 = arith.index_cast %arg43 : i32 to index
      %c0_182 = arith.constant 0 : index
      %c0_183 = arith.constant 0 : index
      %442 = vector.load %arg42[%441, %c0_182, %c0_183] : memref<3x1x2xf32, #tpu.memory_space<vmem>>, vector<1x1x2xf32>
      %443 = vector.shape_cast %442 : vector<1x1x2xf32> to vector<1x2xf32>
      %444 = vector.shape_cast %440 : vector<1x2xf32> to vector<1x1x2xf32>
      tpu.vector_store %arg42[%441, %c0_182, %c0_183], %444 {strides = array<i32>} : memref<3x1x2xf32, #tpu.memory_space<vmem>>, vector<1x1x2xf32>,
      scf.yield %357, %79, %114 : vector<16x16xf32>, vector<8x16xf32>, vector<8x16xf32>
    }
    %c3_i32_5 = arith.constant 3 : i32
    return
  }
}

</mosaic_0001>

<llo_original>
// kernel: tpu_custom_call.1
$region0: #{tpu_custom_call.1}
  #allocation0 [shape = 'u32[]', space=smem, size = 0x4, offset = 0x4, fixed_abs, tag = 'smem constant byte address 0x4 - core index']
  #allocation1 [shape = 'u32[72,128]{1,0:T(1,128)}', space=vmem, size = 0x9000, scoped, tag = 'internal scratch']
  #allocation2 [shape = 'f32[1,1]{1,0:T(1,128)S(1)}', space=vmem, size = 0x200, scoped, tag = 'scoped memory for tpu_custom_call.1']
  %s0 = inlined_call_operand.smem [shape: u32[43], index: -1, kind: input, shape index: {}]
  %s1 = sld [smem:[%s0]]
  %s2 = scalar_lea.smem %s0, 1
  %s3 = sld [smem:[%s2]]
  %s4 = scalar_lea.smem %s0, 2
  %s5 = sld [smem:[%s4]]
  %s6 = scalar_lea.smem %s0, 3
  %s7 = sld [smem:[%s6]]
  %s8 = scalar_lea.smem %s0, 4
  %s9 = sld [smem:[%s8]]
  %s10 = scalar_lea.smem %s0, 5
  %s11 = sld [smem:[%s10]]
  %s12 = scalar_lea.smem %s0, 6
  %s13 = sld [smem:[%s12]]
  %s14 = scalar_lea.smem %s0, 7
  %s15 = sld [smem:[%s14]]
  %s16 = scalar_lea.smem %s0, 8
  %s17 = sld [smem:[%s16]]
  %s18 = scalar_lea.smem %s0, 9
  %s19 = sld [smem:[%s18]]
  %s20 = scalar_lea.smem %s0, 10
  %s21 = sld [smem:[%s20]]
  %s22 = scalar_lea.smem %s0, 11
  %s23 = sld [smem:[%s22]]
  %s24 = scalar_lea.smem %s0, 12
  %s25 = sld [smem:[%s24]]
  %s26 = scalar_lea.smem %s0, 13
  %s27 = sld [smem:[%s26]]
  %s28 = scalar_lea.smem %s0, 14
  %s29 = sld [smem:[%s28]]
  %s30 = scalar_lea.smem %s0, 15
  %s31 = sld [smem:[%s30]]
  %s32 = scalar_lea.smem %s0, 16
  %s33 = sld [smem:[%s32]]
  %s34 = scalar_lea.smem %s0, 17
  %s35 = sld [smem:[%s34]]
  %s36 = scalar_lea.smem %s0, 18
  %s37 = sld [smem:[%s36]]
  %s38 = scalar_lea.smem %s0, 19
  %s39 = sld [smem:[%s38]]
  %s40 = scalar_lea.smem %s0, 20
  %s41 = sld [smem:[%s40]]
  %s42 = scalar_lea.smem %s0, 21
  %s43 = sld [smem:[%s42]]
  %s44 = scalar_lea.smem %s0, 22
  %s45 = sld [smem:[%s44]]
  %s46 = scalar_lea.smem %s0, 23
  %s47 = sld [smem:[%s46]]
  %s48 = scalar_lea.smem %s0, 24
  %s49 = sld [smem:[%s48]]
  %s50 = scalar_lea.smem %s0, 25
  %s51 = sld [smem:[%s50]]
  %s52 = scalar_lea.smem %s0, 26
  %s53 = sld [smem:[%s52]]
  %s54 = scalar_lea.smem %s0, 27
  %s55 = sld [smem:[%s54]]
  %s56 = scalar_lea.smem %s0, 28
  %s57 = sld [smem:[%s56]]
  %s58 = scalar_lea.smem %s0, 29
  %s59 = sld [smem:[%s58]]
  %s60 = scalar_lea.smem %s0, 30
  %s61 = sld [smem:[%s60]]
  %s62 = scalar_lea.smem %s0, 31
  %s63 = sld [smem:[%s62]]
  %s64 = scalar_lea.smem %s0, 32
  %s65 = sld [smem:[%s64]]
  %s66 = scalar_lea.smem %s0, 33
  %s67 = sld [smem:[%s66]]
  %s68 = scalar_lea.smem %s0, 34
  %s69 = sld [smem:[%s68]]
  %s70 = scalar_lea.smem %s0, 35
  %s71 = sld [smem:[%s70]]
  %s72 = scalar_lea.smem %s0, 36
  %s73 = sld [smem:[%s72]]
  %s74 = scalar_lea.smem %s0, 37
  %s75 = sld [smem:[%s74]]
  %s76 = scalar_lea.smem %s0, 38
  %s77 = sld [smem:[%s76]]
  %s78 = scalar_lea.smem %s0, 39
  %s79 = sld [smem:[%s78]]
  %s80 = scalar_lea.smem %s0, 40
  %s81 = sld [smem:[%s80]]
  %s82 = scalar_lea.smem %s0, 41
  %s83 = sld [smem:[%s82]]
  %s84 = scalar_lea.smem %s0, 42
  %s85 = sld [smem:[%s84]]
  %s86 = sld [smem:[#allocation0]]
  $region185: #{tpu_custom_call.1} parent=0
    _
  %s88 = ssub.s32 1, %s86
  %s89 = scalar_select 0, %s88, %s86
  %v90 = vstv %s83
  %91 = vst [vmem:[#allocation2] sm:$0x1] %v90
  // Predicated region
  $region2: #{tpu_custom_call.1} parent=0 // pred_check
    _
  $region3: #{tpu_custom_call.1} parent=0 // pred_check_branch
    %93 = sbr.rel (0) target = $region5
  $region4: #{tpu_custom_call.1} parent=0 // pred_region
    _
  $region5: #{tpu_custom_call.1} parent=0 // pred_fallthru
    _
  // Predicated region
  $region6: #{tpu_custom_call.1} parent=0 // pred_check
    _
  $region7: #{tpu_custom_call.1} parent=0 // pred_check_branch
    %95 = sbr.rel (0) target = $region9
  $region8: #{tpu_custom_call.1} parent=0 // pred_region
    _
  $region9: #{tpu_custom_call.1} parent=0 // pred_fallthru
    _
  // Predicated region
  $region10: #{tpu_custom_call.1} parent=0 // pred_check
    _
  $region11: #{tpu_custom_call.1} parent=0 // pred_check_branch
    %97 = sbr.rel (0) target = $region13
  $region12: #{tpu_custom_call.1} parent=0 // pred_region
    _
  $region13: #{tpu_custom_call.1} parent=0 // pred_fallthru
    _
  // Predicated region
  $region14: #{tpu_custom_call.1} parent=0 // pred_check
    _
  $region15: #{tpu_custom_call.1} parent=0 // pred_check_branch
    %99 = sbr.rel (0) target = $region17
  $region16: #{tpu_custom_call.1} parent=0 // pred_region
    _
  $region17: #{tpu_custom_call.1} parent=0 // pred_fallthru
    _
  // Predicated region
  $region18: #{tpu_custom_call.1} parent=0 // pred_check
    _
  $region19: #{tpu_custom_call.1} parent=0 // pred_check_branch
    %101 = sbr.rel (0) target = $region21
  $region20: #{tpu_custom_call.1} parent=0 // pred_region
    _
  $region21: #{tpu_custom_call.1} parent=0 // pred_fallthru
    _
  // Predicated region
  $region22: #{tpu_custom_call.1} parent=0 // pred_check
    _
  $region23: #{tpu_custom_call.1} parent=0 // pred_check_branch
    %103 = sbr.rel (0) target = $region25
  $region24: #{tpu_custom_call.1} parent=0 // pred_region
    _
  $region25: #{tpu_custom_call.1} parent=0 // pred_fallthru
    _
  // Predicated region
  $region26: #{tpu_custom_call.1} parent=0 // pred_check
    _
  $region27: #{tpu_custom_call.1} parent=0 // pred_check_branch
    %105 = sbr.rel (0) target = $region29
  $region28: #{tpu_custom_call.1} parent=0 // pred_region
    _
  $region29: #{tpu_custom_call.1} parent=0 // pred_fallthru
    _
  // Predicated region
  $region30: #{tpu_custom_call.1} parent=0 // pred_check
    _
  $region31: #{tpu_custom_call.1} parent=0 // pred_check_branch
    %107 = sbr.rel (0) target = $region33
  $region32: #{tpu_custom_call.1} parent=0 // pred_region
    _
  $region33: #{tpu_custom_call.1} parent=0 // pred_fallthru
    _
  // Predicated region
  $region34: #{tpu_custom_call.1} parent=0 // pred_check
    _
  $region35: #{tpu_custom_call.1} parent=0 // pred_check_branch
    %109 = sbr.rel (0) target = $region37
  $region36: #{tpu_custom_call.1} parent=0 // pred_region
    _
  $region37: #{tpu_custom_call.1} parent=0 // pred_fallthru
    _
  // Predicated region
  $region38: #{tpu_custom_call.1} parent=0 // pred_check
    _
  $region39: #{tpu_custom_call.1} parent=0 // pred_check_branch
    %111 = sbr.rel (0) target = $region41
  $region40: #{tpu_custom_call.1} parent=0 // pred_region
    _
  $region41: #{tpu_custom_call.1} parent=0 // pred_fallthru
    _
  // Predicated region
  $region42: #{tpu_custom_call.1} parent=0 // pred_check
    _
  $region43: #{tpu_custom_call.1} parent=0 // pred_check_branch
    %113 = sbr.rel (0) target = $region45
  $region44: #{tpu_custom_call.1} parent=0 // pred_region
    _
  $region45: #{tpu_custom_call.1} parent=0 // pred_fallthru
    _
  // Predicated region
  $region46: #{tpu_custom_call.1} parent=0 // pred_check
    _
  $region47: #{tpu_custom_call.1} parent=0 // pred_check_branch
    %115 = sbr.rel (0) target = $region49
  $region48: #{tpu_custom_call.1} parent=0 // pred_region
    _
  $region49: #{tpu_custom_call.1} parent=0 // pred_fallthru
    _
  // Predicated region
  $region50: #{tpu_custom_call.1} parent=0 // pred_check
    _
  $region51: #{tpu_custom_call.1} parent=0 // pred_check_branch
    %117 = sbr.rel (0) target = $region53
  $region52: #{tpu_custom_call.1} parent=0 // pred_region
    _
  $region53: #{tpu_custom_call.1} parent=0 // pred_fallthru
    _
  // Predicated region
  $region54: #{tpu_custom_call.1} parent=0 // pred_check
    _
  $region55: #{tpu_custom_call.1} parent=0 // pred_check_branch
    %119 = sbr.rel (0) target = $region57
  $region56: #{tpu_custom_call.1} parent=0 // pred_region
    _
  $region57: #{tpu_custom_call.1} parent=0 // pred_fallthru
    _
  // Predicated region
  $region58: #{tpu_custom_call.1} parent=0 // pred_check
    _
  $region59: #{tpu_custom_call.1} parent=0 // pred_check_branch
    %121 = sbr.rel (0) target = $region61
  $region60: #{tpu_custom_call.1} parent=0 // pred_region
    _
  $region61: #{tpu_custom_call.1} parent=0 // pred_fallthru
    _
  // Predicated region
  $region62: #{tpu_custom_call.1} parent=0 // pred_check
    _
  $region63: #{tpu_custom_call.1} parent=0 // pred_check_branch
    %123 = sbr.rel (0) target = $region65
  $region64: #{tpu_custom_call.1} parent=0 // pred_region
    _
  $region65: #{tpu_custom_call.1} parent=0 // pred_fallthru
    _
  // Predicated region
  $region66: #{tpu_custom_call.1} parent=0 // pred_check
    _
  $region67: #{tpu_custom_call.1} parent=0 // pred_check_branch
    %125 = sbr.rel (0) target = $region69
  $region68: #{tpu_custom_call.1} parent=0 // pred_region
    _
  $region69: #{tpu_custom_call.1} parent=0 // pred_fallthru
    _
  // Predicated region
  $region70: #{tpu_custom_call.1} parent=0 // pred_check
    _
  $region71: #{tpu_custom_call.1} parent=0 // pred_check_branch
    %127 = sbr.rel (0) target = $region73
  $region72: #{tpu_custom_call.1} parent=0 // pred_region
    _
  $region73: #{tpu_custom_call.1} parent=0 // pred_fallthru
    _
  // Predicated region
  $region74: #{tpu_custom_call.1} parent=0 // pred_check
    _
  $region75: #{tpu_custom_call.1} parent=0 // pred_check_branch
    %129 = sbr.rel (0) target = $region77
  $region76: #{tpu_custom_call.1} parent=0 // pred_region
    _
  $region77: #{tpu_custom_call.1} parent=0 // pred_fallthru
    _
  // Predicated region
  $region78: #{tpu_custom_call.1} parent=0 // pred_check
    _
  $region79: #{tpu_custom_call.1} parent=0 // pred_check_branch
    %131 = sbr.rel (0) target = $region81
  $region80: #{tpu_custom_call.1} parent=0 // pred_region
    _
  $region81: #{tpu_custom_call.1} parent=0 // pred_fallthru
    _
  // Predicated region
  $region82: #{tpu_custom_call.1} parent=0 // pred_check
    _
  $region83: #{tpu_custom_call.1} parent=0 // pred_check_branch
    %133 = sbr.rel (0) target = $region85
  $region84: #{tpu_custom_call.1} parent=0 // pred_region
    _
  $region85: #{tpu_custom_call.1} parent=0 // pred_fallthru
    _
  // Predicated region
  $region86: #{tpu_custom_call.1} parent=0 // pred_check
    _
  $region87: #{tpu_custom_call.1} parent=0 // pred_check_branch
    %135 = sbr.rel (0) target = $region89
  $region88: #{tpu_custom_call.1} parent=0 // pred_region
    _
  $region89: #{tpu_custom_call.1} parent=0 // pred_fallthru
    _
  // Predicated region
  $region90: #{tpu_custom_call.1} parent=0 // pred_check
    _
  $region91: #{tpu_custom_call.1} parent=0 // pred_check_branch
    %137 = sbr.rel (0) target = $region93
  $region92: #{tpu_custom_call.1} parent=0 // pred_region
    _
  $region93: #{tpu_custom_call.1} parent=0 // pred_fallthru
    _
  // Predicated region
  $region94: #{tpu_custom_call.1} parent=0 // pred_check
    _
  $region95: #{tpu_custom_call.1} parent=0 // pred_check_branch
    %139 = sbr.rel (0) target = $region97
  $region96: #{tpu_custom_call.1} parent=0 // pred_region
    _
  $region97: #{tpu_custom_call.1} parent=0 // pred_fallthru
    _
  // Predicated region
  $region98: #{tpu_custom_call.1} parent=0 // pred_check
    _
  $region99: #{tpu_custom_call.1} parent=0 // pred_check_branch
    %141 = sbr.rel (0) target = $region101
  $region100: #{tpu_custom_call.1} parent=0 // pred_region
    _
  $region101: #{tpu_custom_call.1} parent=0 // pred_fallthru
    _
  // Predicated region
  $region102: #{tpu_custom_call.1} parent=0 // pred_check
    _
  $region103: #{tpu_custom_call.1} parent=0 // pred_check_branch
    %143 = sbr.rel (0) target = $region105
  $region104: #{tpu_custom_call.1} parent=0 // pred_region
    _
  $region105: #{tpu_custom_call.1} parent=0 // pred_fallthru
    _
  // Predicated region
  $region106: #{tpu_custom_call.1} parent=0 // pred_check
    _
  $region107: #{tpu_custom_call.1} parent=0 // pred_check_branch
    %145 = sbr.rel (0) target = $region109
  $region108: #{tpu_custom_call.1} parent=0 // pred_region
    _
  $region109: #{tpu_custom_call.1} parent=0 // pred_fallthru
    _
  // Predicated region
  $region110: #{tpu_custom_call.1} parent=0 // pred_check
    _
  $region111: #{tpu_custom_call.1} parent=0 // pred_check_branch
    %147 = sbr.rel (0) target = $region113
  $region112: #{tpu_custom_call.1} parent=0 // pred_region
    _
  $region113: #{tpu_custom_call.1} parent=0 // pred_fallthru
    _
  // Predicated region
  $region114: #{tpu_custom_call.1} parent=0 // pred_check
    _
  $region115: #{tpu_custom_call.1} parent=0 // pred_check_branch
    %149 = sbr.rel (0) target = $region117
  $region116: #{tpu_custom_call.1} parent=0 // pred_region
    _
  $region117: #{tpu_custom_call.1} parent=0 // pred_fallthru
    _
  // Predicated region
  $region118: #{tpu_custom_call.1} parent=0 // pred_check
    _
  $region119: #{tpu_custom_call.1} parent=0 // pred_check_branch
    %151 = sbr.rel (0) target = $region121
  $region120: #{tpu_custom_call.1} parent=0 // pred_region
    _
  $region121: #{tpu_custom_call.1} parent=0 // pred_fallthru
    _
  // Predicated region
  $region122: #{tpu_custom_call.1} parent=0 // pred_check
    _
  $region123: #{tpu_custom_call.1} parent=0 // pred_check_branch
    %153 = sbr.rel (0) target = $region125
  $region124: #{tpu_custom_call.1} parent=0 // pred_region
    _
  $region125: #{tpu_custom_call.1} parent=0 // pred_fallthru
    _
  // Predicated region
  $region126: #{tpu_custom_call.1} parent=0 // pred_check
    _
  $region127: #{tpu_custom_call.1} parent=0 // pred_check_branch
    %155 = sbr.rel (0) target = $region129
  $region128: #{tpu_custom_call.1} parent=0 // pred_region
    _
  $region129: #{tpu_custom_call.1} parent=0 // pred_fallthru
    _
  // Predicated region
  $region130: #{tpu_custom_call.1} parent=0 // pred_check
    _
  $region131: #{tpu_custom_call.1} parent=0 // pred_check_branch
    %157 = sbr.rel (0) target = $region133
  $region132: #{tpu_custom_call.1} parent=0 // pred_region
    _
  $region133: #{tpu_custom_call.1} parent=0 // pred_fallthru
    _
  // Predicated region
  $region134: #{tpu_custom_call.1} parent=0 // pred_check
    _
  $region135: #{tpu_custom_call.1} parent=0 // pred_check_branch
    %159 = sbr.rel (0) target = $region137
  $region136: #{tpu_custom_call.1} parent=0 // pred_region
    _
  $region137: #{tpu_custom_call.1} parent=0 // pred_fallthru
    _
  // Predicated region
  $region138: #{tpu_custom_call.1} parent=0 // pred_check
    _
  $region139: #{tpu_custom_call.1} parent=0 // pred_check_branch
    %161 = sbr.rel (0) target = $region141
  $region140: #{tpu_custom_call.1} parent=0 // pred_region
    _
  $region141: #{tpu_custom_call.1} parent=0 // pred_fallthru
    _
  // Predicated region
  $region142: #{tpu_custom_call.1} parent=0 // pred_check
    _
  $region143: #{tpu_custom_call.1} parent=0 // pred_check_branch
    %163 = sbr.rel (0) target = $region145
  $region144: #{tpu_custom_call.1} parent=0 // pred_region
    _
  $region145: #{tpu_custom_call.1} parent=0 // pred_fallthru
    _
  // Predicated region
  $region146: #{tpu_custom_call.1} parent=0 // pred_check
    _
  $region147: #{tpu_custom_call.1} parent=0 // pred_check_branch
    %165 = sbr.rel (0) target = $region149
  $region148: #{tpu_custom_call.1} parent=0 // pred_region
    _
  $region149: #{tpu_custom_call.1} parent=0 // pred_fallthru
    _
  // Predicated region
  $region150: #{tpu_custom_call.1} parent=0 // pred_check
    _
  $region151: #{tpu_custom_call.1} parent=0 // pred_check_branch
    %167 = sbr.rel (0) target = $region153
  $region152: #{tpu_custom_call.1} parent=0 // pred_region
    _
  $region153: #{tpu_custom_call.1} parent=0 // pred_fallthru
    _
  // Predicated region
  $region154: #{tpu_custom_call.1} parent=0 // pred_check
    _
  $region155: #{tpu_custom_call.1} parent=0 // pred_check_branch
    %169 = sbr.rel (0) target = $region157
  $region156: #{tpu_custom_call.1} parent=0 // pred_region
    _
  $region157: #{tpu_custom_call.1} parent=0 // pred_fallthru
    _
  // Predicated region
  $region158: #{tpu_custom_call.1} parent=0 // pred_check
    _
  $region159: #{tpu_custom_call.1} parent=0 // pred_check_branch
    %171 = sbr.rel (0) target = $region161
  $region160: #{tpu_custom_call.1} parent=0 // pred_region
    _
  $region161: #{tpu_custom_call.1} parent=0 // pred_fallthru
    _
  // Predicated region
  $region162: #{tpu_custom_call.1} parent=0 // pred_check
    _
  $region163: #{tpu_custom_call.1} parent=0 // pred_check_branch
    %173 = sbr.rel (0) target = $region165
  $region164: #{tpu_custom_call.1} parent=0 // pred_region
    _
  $region165: #{tpu_custom_call.1} parent=0 // pred_fallthru
    _
  // Predicated region
  $region166: #{tpu_custom_call.1} parent=0 // pred_check
    _
  $region167: #{tpu_custom_call.1} parent=0 // pred_check_branch
    %175 = sbr.rel (0) target = $region169
  $region168: #{tpu_custom_call.1} parent=0 // pred_region
    _
  $region169: #{tpu_custom_call.1} parent=0 // pred_fallthru
    _
  %v176 = vlaneseq
  %v177 = vand.u32 %v176, 127
  %vm178 = vcmp.lt.s32.totalorder %v177, 15
  %v179 = vcvt.s32.f32 %v177
  %v180 = vld [vmem:[%s11] sm:$0xff]
  %v181 = vld [vmem:[%s11 + $0x8] sm:$0xff]
  %v182 = vld [vmem:[%s13] sm:$0xff]
  %v183 = vld [vmem:[%s15] sm:$0xff]
  loop: start=0, step=1, limit=3
  $region170: #{tpu_custom_call.1} parent=0 // loop_pre_header
    _
  $region171: #{tpu_custom_call.1} parent=0 // loop_header
    %s185 = sphi 0, %s189
    %p186 = scmp.ge.s32.totalorder %s185, 3
    %v190 = vphi %v180, %v3829
    %v191 = vphi %v181, %v3830
    %v192 = vphi %v182, %v659
    %v193 = vphi %v183, %v661
  $region172: #{tpu_custom_call.1} parent=0 // loop_header_branch
    %188 = sbr.rel (%p186) target = $region176
  $region173: #{tpu_custom_call.1} parent=0 // loop_body
    %v194 = vld [vmem:[%s1] sm:$0xff]
    %v195 = vld [vmem:[%s1 + $0x8] sm:$0xff]
    %v196 = vld [vmem:[%s1 + $0x10] sm:$0xff]
    %v197 = vld [vmem:[%s1 + $0x18] sm:$0xff]
    %v198 = vld [vmem:[%s1 + $0x20] sm:$0xff]
    %v199 = vld [vmem:[%s1 + $0x28] sm:$0xff]
    %v200 = vld [vmem:[%s1 + $0x30] sm:$0xff]
    %v201 = vld [vmem:[%s1 + $0x38] sm:$0xff]
    %v202 = vld [vmem:[%s3] sm:$0xff]
    %v203 = vld [vmem:[%s3 + $0x8] sm:$0xff]
    %v204 = vld [vmem:[%s3 + $0x10] sm:$0xff]
    %v205 = vld [vmem:[%s3 + $0x18] sm:$0xff]
    %v206 = vld [vmem:[%s3 + $0x20] sm:$0xff]
    %v207 = vld [vmem:[%s3 + $0x28] sm:$0xff]
    %v208 = vld [vmem:[%s3 + $0x30] sm:$0xff]
    %v209 = vld [vmem:[%s3 + $0x38] sm:$0xff]
    %v210 = vld [vmem:[%s17] sm:$0xff]
    %vm211 = vcmask 130048
    %v213 = vsel %vm211, %v210, 0
    %215 = vmatpush.msra.mxu0 0.0
    %216 = vmatpush.msra.mxu0 0.0
    %217 = vmatpush.msra.mxu0 0.0
    %218 = vmatpush.msra.mxu0 0.0
    %219 = vmatpush.msra.mxu0 0.0
    %220 = vmatpush.msra.mxu0 0.0
    %221 = vmatpush.msra.mxu0 0.0
    %222 = vmatpush.msra.mxu0 0.0
    %223 = vmatpush.msra.mxu0 0.0
    %224 = vmatpush.msra.mxu0 0.0
    %225 = vmatpush.msra.mxu0 0.0
    %226 = vmatpush.msra.mxu0 0.0
    %227 = vmatpush.msra.mxu0 0.0
    %228 = vmatpush.msra.mxu0 0.0
    %229 = vmatpush.msra.mxu0 %v191
    %230 = vmatpush.msra.mxu0 %v190
    %231 = vmatmul.f32.gmra.mxu0 %v213
    %v232 = vpop.f32.mrf.mxu0
    %v233 = vadd.f32 0.0, %v232
    %234 = vdwg.mxu0
    %236 = vst [vmem:[#allocation1] sm:$0xff] %v233
    %s237 = scalar_lea.vmem [#allocation1], 4
    %v238 = vld [vmem:[%s237] ss:$9 sm:$0xff]
    %s239 = scalar_lea.vmem [#allocation1], 5
    %v240 = vld [vmem:[%s239] ss:$9 sm:$0xff]
    %s241 = scalar_lea.vmem [#allocation1], 6
    %v242 = vld [vmem:[%s241] ss:$9 sm:$0xff]
    %s243 = scalar_lea.vmem [#allocation1], 7
    %v244 = vld [vmem:[%s243] ss:$9 sm:$0xff]
    %v245 = vperm.slane %v238, 0
    %v246 = vperm.slane %v240, 0
    %v247 = vperm.slane %v242, 0
    %v248 = vperm.slane %v244, 0
    %v253 = vadd.f32 %v194, %v245
    %v254 = vadd.f32 %v195, %v245
    %v255 = vadd.f32 %v196, %v246
    %v256 = vadd.f32 %v197, %v246
    %v257 = vadd.f32 %v198, %v247
    %v258 = vadd.f32 %v199, %v247
    %v259 = vadd.f32 %v200, %v248
    %v260 = vadd.f32 %v201, %v248
    %v261 = vsel %vm211, %v253, inf
    %262 = vmin.xlane.f32.xlu0 %v261
    %v263 = vpop.xlane.xlu0 %262
    %v264 = vsel %vm211, %v254, inf
    %265 = vmin.xlane.f32.xlu0 %v264
    %v266 = vpop.xlane.xlu0 %265
    %v267 = vsel %vm211, %v255, inf
    %268 = vmin.xlane.f32.xlu0 %v267
    %v269 = vpop.xlane.xlu0 %268
    %v270 = vsel %vm211, %v256, inf
    %271 = vmin.xlane.f32.xlu0 %v270
    %v272 = vpop.xlane.xlu0 %271
    %v273 = vsel %vm211, %v257, inf
    %274 = vmin.xlane.f32.xlu0 %v273
    %v275 = vpop.xlane.xlu0 %274
    %v276 = vsel %vm211, %v258, inf
    %277 = vmin.xlane.f32.xlu0 %v276
    %v278 = vpop.xlane.xlu0 %277
    %v279 = vsel %vm211, %v259, inf
    %280 = vmin.xlane.f32.xlu0 %v279
    %v281 = vpop.xlane.xlu0 %280
    %v282 = vsel %vm211, %v260, inf
    %283 = vmin.xlane.f32.xlu0 %v282
    %v284 = vpop.xlane.xlu0 %283
    %v285 = vrot.slane %v233, 1
    %v286 = vrot.slane %v233, 2
    %v287 = vrot.slane %v233, 3
    %v288 = vperm.slane %v233, 0
    %v289 = vperm.slane %v285, 0
    %v290 = vperm.slane %v286, 0
    %v291 = vperm.slane %v287, 0
    %v296 = vadd.f32 %v202, %v288
    %v297 = vadd.f32 %v203, %v288
    %v298 = vadd.f32 %v204, %v289
    %v299 = vadd.f32 %v205, %v289
    %v300 = vadd.f32 %v206, %v290
    %v301 = vadd.f32 %v207, %v290
    %v302 = vadd.f32 %v208, %v291
    %v303 = vadd.f32 %v209, %v291
    %v304 = vsel %vm211, %v296, inf
    %305 = vmin.xlane.f32.xlu0 %v304
    %v306 = vpop.xlane.xlu0 %305
    %v307 = vsel %vm211, %v297, inf
    %308 = vmin.xlane.f32.xlu0 %v307
    %v309 = vpop.xlane.xlu0 %308
    %v310 = vsel %vm211, %v298, inf
    %311 = vmin.xlane.f32.xlu0 %v310
    %v312 = vpop.xlane.xlu0 %311
    %v313 = vsel %vm211, %v299, inf
    %314 = vmin.xlane.f32.xlu0 %v313
    %v315 = vpop.xlane.xlu0 %314
    %v316 = vsel %vm211, %v300, inf
    %317 = vmin.xlane.f32.xlu0 %v316
    %v318 = vpop.xlane.xlu0 %317
    %v319 = vsel %vm211, %v301, inf
    %320 = vmin.xlane.f32.xlu0 %v319
    %v321 = vpop.xlane.xlu0 %320
    %v322 = vsel %vm211, %v302, inf
    %323 = vmin.xlane.f32.xlu0 %v322
    %v324 = vpop.xlane.xlu0 %323
    %v325 = vsel %vm211, %v303, inf
    %326 = vmin.xlane.f32.xlu0 %v325
    %v327 = vpop.xlane.xlu0 %326
    %v328 = vsel %vm178, 1, 0
    %vm329 = vcmp.eq.s32.totalorder %v328, 1
    %v338 = vperm.slane %v263, %v177
    %v339 = vadd.s32 %v177, 4294967288
    %v340 = vperm.slane %v266, %v339
    %vm341 = vcmask 130112
    %v342 = vsel %vm341, %v340, %v338
    %v343 = vperm.slane %v269, %v177
    %v344 = vperm.slane %v272, %v339
    %v345 = vsel %vm341, %v344, %v343
    %v346 = vperm.slane %v275, %v177
    %v347 = vperm.slane %v278, %v339
    %v348 = vsel %vm341, %v347, %v346
    %v349 = vperm.slane %v281, %v177
    %v350 = vperm.slane %v284, %v339
    %v351 = vsel %vm341, %v350, %v349
    %vm352 = vcmask 1041409
    %v353 = vsel %vm352, %v345, %v342
    %vm354 = vcmask 1042434
    %v355 = vsel %vm354, %v348, %v353
    %vm356 = vcmask 1043459
    %v357 = vsel %vm356, %v351, %v355
    %v359 = vsel %vm329, %v357, 0.0
    %v368 = vperm.slane %v306, %v177
    %v369 = vperm.slane %v309, %v339
    %v370 = vsel %vm341, %v369, %v368
    %v371 = vperm.slane %v312, %v177
    %v372 = vperm.slane %v315, %v339
    %v373 = vsel %vm341, %v372, %v371
    %v374 = vperm.slane %v318, %v177
    %v375 = vperm.slane %v321, %v339
    %v376 = vsel %vm341, %v375, %v374
    %v377 = vperm.slane %v324, %v177
    %v378 = vperm.slane %v327, %v339
    %v379 = vsel %vm341, %v378, %v377
    %v380 = vsel %vm352, %v373, %v370
    %v381 = vsel %vm354, %v376, %v380
    %v382 = vsel %vm356, %v379, %v381
    %v384 = vsel %vm329, %v382, 0.0
    %v386 = vrot.slane %v384, 4
    %vm388 = vcmask 1043456
    %v389 = vsel %vm388, %v359, %v386
    %v390 = vld [vmem:[%s21] sm:$0xff]
    %v391 = vld [vmem:[%s21 + $0x8] sm:$0xff]
    %393 = vset.pattern.permute.xlu0 0
    %394 = vperm.xlu0 %393, %v390
    %v395 = vpop.permute.xlu0 %394
    %398 = vset.pattern.permute.xlu0 0
    %399 = vperm.xlu0 %398, %v391
    %v400 = vpop.permute.xlu0 %399
    %v402 = vmul.f32 %v190, %v395
    %v403 = vmul.f32 %v191, %v400
    %v404 = vld [vmem:[%s19] sm:$0xff]
    %v405 = vld [vmem:[%s19 + $0x8] sm:$0xff]
    %vm406 = vcmask 64512
    %v408 = vsel %vm406, %v404, 0
    %v411 = vsel %vm406, %v405, 0
    %413 = vmatpush.msra.mxu0 0.0
    %414 = vmatpush.msra.mxu0 0.0
    %415 = vmatpush.msra.mxu0 0.0
    %416 = vmatpush.msra.mxu0 0.0
    %417 = vmatpush.msra.mxu0 0.0
    %418 = vmatpush.msra.mxu0 0.0
    %419 = vmatpush.msra.mxu0 0.0
    %420 = vmatpush.msra.mxu0 0.0
    %421 = vmatpush.msra.mxu0 0.0
    %422 = vmatpush.msra.mxu0 0.0
    %423 = vmatpush.msra.mxu0 0.0
    %424 = vmatpush.msra.mxu0 0.0
    %425 = vmatpush.msra.mxu0 0.0
    %426 = vmatpush.msra.mxu0 0.0
    %427 = vmatpush.msra.mxu0 0.0
    %428 = vmatpush.msra.mxu0 %v389
    %429 = vmatmul.f32.gmra.mxu0 %v408
    %v430 = vpop.f32.mrf.mxu0
    %v431 = vadd.f32 0.0, %v430
    %432 = vmatmul.f32.gmra.mxu0 %v411
    %v433 = vpop.f32.mrf.mxu0
    %v434 = vadd.f32 0.0, %v433
    %435 = vdwg.mxu0
    %v436 = vadd.f32 %v402, %v431
    %v437 = vadd.f32 %v403, %v434
    %v438 = vld [vmem:[%s23] sm:$0xff]
    %v439 = vld [vmem:[%s23 + $0x8] sm:$0xff]
    %v440 = vld [vmem:[%s23 + $0x10] sm:$0xff]
    %v441 = vld [vmem:[%s23 + $0x18] sm:$0xff]
    %v442 = vld [vmem:[%s23 + $0x20] sm:$0xff]
    %v443 = vld [vmem:[%s23 + $0x28] sm:$0xf]
    %v445 = vsel %vm211, %v438, 0
    %v448 = vsel %vm211, %v439, 0
    %v451 = vsel %vm211, %v440, 0
    %v454 = vsel %vm211, %v441, 0
    %v457 = vsel %vm211, %v442, 0
    %v460 = vsel %vm211, %v443, 0
    %462 = vmatpush.msra.mxu0 0.0
    %463 = vmatpush.msra.mxu0 0.0
    %464 = vmatpush.msra.mxu0 0.0
    %465 = vmatpush.msra.mxu0 0.0
    %466 = vmatpush.msra.mxu0 0.0
    %467 = vmatpush.msra.mxu0 0.0
    %468 = vmatpush.msra.mxu0 0.0
    %469 = vmatpush.msra.mxu0 0.0
    %470 = vmatpush.msra.mxu0 0.0
    %471 = vmatpush.msra.mxu0 0.0
    %472 = vmatpush.msra.mxu0 0.0
    %473 = vmatpush.msra.mxu0 0.0
    %474 = vmatpush.msra.mxu0 0.0
    %475 = vmatpush.msra.mxu0 0.0
    %476 = vmatpush.msra.mxu0 %v437
    %477 = vmatpush.msra.mxu0 %v436
    %478 = vmatmul.f32.gmra.mxu0 %v445
    %v479 = vpop.f32.mrf.mxu0
    %v480 = vadd.f32 0.0, %v479
    %481 = vmatmul.f32.gmra.mxu0 %v448
    %v482 = vpop.f32.mrf.mxu0
    %v483 = vadd.f32 0.0, %v482
    %484 = vmatmul.f32.gmra.mxu0 %v451
    %v485 = vpop.f32.mrf.mxu0
    %v486 = vadd.f32 0.0, %v485
    %487 = vmatmul.f32.gmra.mxu0 %v454
    %v488 = vpop.f32.mrf.mxu0
    %v489 = vadd.f32 0.0, %v488
    %490 = vmatmul.f32.gmra.mxu0 %v457
    %v491 = vpop.f32.mrf.mxu0
    %v492 = vadd.f32 0.0, %v491
    %493 = vmatmul.f32.gmra.mxu0 %v460
    %v494 = vpop.f32.mrf.mxu0
    %v495 = vadd.f32 0.0, %v494
    %496 = vdwg.mxu0
    %v497 = vld [vmem:[%s41] sm:$0xff]
    %v498 = vld [vmem:[%s41 + $0x8] sm:$0xff]
    %v499 = vld [vmem:[%s41 + $0x10] sm:$0xff]
    %v500 = vld [vmem:[%s41 + $0x18] sm:$0xff]
    %v501 = vld [vmem:[%s43] sm:$0x1]
    %503 = vrot.lane.b32.xlu0 %v192, 16
    %v504 = vpop.permute.xlu0 %503
    %v506 = vsel %vm211, %v480, %v504
    %v508 = vperm.slane %v501, 0
    %vm510 = vcmask 261120
    %v512 = vsel %vm510, %v506, 0
    %514 = vmatpush.msra.mxu0 0.0
    %515 = vmatpush.msra.mxu0 0.0
    %516 = vmatpush.msra.mxu0 0.0
    %517 = vmatpush.msra.mxu0 0.0
    %518 = vmatpush.msra.mxu0 0.0
    %519 = vmatpush.msra.mxu0 0.0
    %520 = vmatpush.msra.mxu0 0.0
    %521 = vmatpush.msra.mxu0 0.0
    %522 = vmatpush.msra.mxu0 0.0
    %523 = vmatpush.msra.mxu0 0.0
    %524 = vmatpush.msra.mxu0 0.0
    %525 = vmatpush.msra.mxu0 0.0
    %526 = vmatpush.msra.mxu0 %v500
    %527 = vmatpush.msra.mxu0 %v499
    %528 = vmatpush.msra.mxu0 %v498
    %529 = vmatpush.msra.mxu0 %v497
    %530 = vmatmul.f32.gmra.mxu0 %v512
    %v531 = vpop.f32.mrf.mxu0
    %v532 = vadd.f32 %v508, %v531
    %533 = vdwg.mxu0
    %535 = vrot.lane.b32.xlu0 %v532, 80
    %v536 = vpop.permute.xlu0 %535
    %v538 = vadd.f32 %v532, %v536
    %v539 = vxor.u32 %v538, 2147483648
    %v540 = vmul.f32 %v539, 1.442695
    %v541 = vpow.pop %v540
    %v542 = vadd.f32 %v541, 1.0
    %v543 = vrcp.pop %v542
    %v544 = vmul.f32 %v542, %v543
    %v545 = vsub.f32 1.0, %v544
    %v546 = vmul.f32 %v543, %v545
    %v547 = vadd.f32 %v543, %v546
    %vm548 = vweird.f32 %v542
    %vm549 = vweird.f32 %v543
    %vm550 = vmor %vm548, %vm549
    %v551 = vsel %vm550, %v543, %v547
    %v552 = vand.u32 2147483647, %v542
    %vm553 = vcmp.eq.f32.partialorder %v552, 8.507059e+37
    %v554 = vand.u32 %v542, 2147483648
    %v555 = vor.u32 1.1754944e-38, %v554
    %v556 = vsel %vm553, %v555, %v551
    %v557 = vmul.f32 1.0, %v556
    %558 = vrot.lane.b32.xlu0 %v532, 48
    %v559 = vpop.permute.xlu0 %558
    %v561 = vmul.f32 %v557, %v559
    %563 = vrot.lane.b32.xlu0 %v561, 32
    %v564 = vpop.permute.xlu0 %563
    %v566 = vadd.f32 %v532, %v564
    %v567 = vtanh.pop %v566
    %v568 = vsub.f32 1.0, %v557
    %570 = vrot.lane.b32.xlu0 %v567, 112
    %v571 = vpop.permute.xlu0 %570
    %v573 = vmul.f32 %v568, %v571
    %v574 = vmul.f32 %v557, %v504
    %v575 = vadd.f32 %v573, %v574
    %v576 = vld [vmem:[%s45] sm:$0xff]
    %v577 = vld [vmem:[%s45 + $0x8] sm:$0xff]
    %v578 = vld [vmem:[%s45 + $0x10] sm:$0xff]
    %v579 = vld [vmem:[%s45 + $0x18] sm:$0xff]
    %v580 = vld [vmem:[%s47] sm:$0x1]
    %582 = vrot.lane.b32.xlu0 %v193, 16
    %v583 = vpop.permute.xlu0 %582
    %v585 = vsel %vm211, %v483, %v583
    %v587 = vperm.slane %v580, 0
    %v590 = vsel %vm510, %v585, 0
    %592 = vmatpush.msra.mxu0 0.0
    %593 = vmatpush.msra.mxu0 0.0
    %594 = vmatpush.msra.mxu0 0.0
    %595 = vmatpush.msra.mxu0 0.0
    %596 = vmatpush.msra.mxu0 0.0
    %597 = vmatpush.msra.mxu0 0.0
    %598 = vmatpush.msra.mxu0 0.0
    %599 = vmatpush.msra.mxu0 0.0
    %600 = vmatpush.msra.mxu0 0.0
    %601 = vmatpush.msra.mxu0 0.0
    %602 = vmatpush.msra.mxu0 0.0
    %603 = vmatpush.msra.mxu0 0.0
    %604 = vmatpush.msra.mxu0 %v579
    %605 = vmatpush.msra.mxu0 %v578
    %606 = vmatpush.msra.mxu0 %v577
    %607 = vmatpush.msra.mxu0 %v576
    %608 = vmatmul.f32.gmra.mxu0 %v590
    %v609 = vpop.f32.mrf.mxu0
    %v610 = vadd.f32 %v587, %v609
    %611 = vdwg.mxu0
    %613 = vrot.lane.b32.xlu0 %v610, 80
    %v614 = vpop.permute.xlu0 %613
    %v616 = vadd.f32 %v610, %v614
    %v617 = vxor.u32 %v616, 2147483648
    %v618 = vmul.f32 %v617, 1.442695
    %v619 = vpow.pop %v618
    %v620 = vadd.f32 %v619, 1.0
    %v621 = vrcp.pop %v620
    %v622 = vmul.f32 %v620, %v621
    %v623 = vsub.f32 1.0, %v622
    %v624 = vmul.f32 %v621, %v623
    %v625 = vadd.f32 %v621, %v624
    %vm626 = vweird.f32 %v620
    %vm627 = vweird.f32 %v621
    %vm628 = vmor %vm626, %vm627
    %v629 = vsel %vm628, %v621, %v625
    %v630 = vand.u32 2147483647, %v620
    %vm631 = vcmp.eq.f32.partialorder %v630, 8.507059e+37
    %v632 = vand.u32 %v620, 2147483648
    %v633 = vor.u32 1.1754944e-38, %v632
    %v634 = vsel %vm631, %v633, %v629
    %v635 = vmul.f32 1.0, %v634
    %636 = vrot.lane.b32.xlu0 %v610, 48
    %v637 = vpop.permute.xlu0 %636
    %v639 = vmul.f32 %v635, %v637
    %641 = vrot.lane.b32.xlu0 %v639, 32
    %v642 = vpop.permute.xlu0 %641
    %v644 = vadd.f32 %v610, %v642
    %v645 = vtanh.pop %v644
    %v646 = vsub.f32 1.0, %v635
    %648 = vrot.lane.b32.xlu0 %v645, 112
    %v649 = vpop.permute.xlu0 %648
    %v651 = vmul.f32 %v646, %v649
    %v652 = vmul.f32 %v635, %v583
    %v653 = vadd.f32 %v651, %v652
    %v654 = vld [vmem:[%s9] sm:$0xff]
    %v655 = vld [vmem:[%s9 + $0x8] sm:$0xff]
    %658 = vrot.lane.b32.xlu0 %v575, 112
    %v659 = vpop.permute.xlu0 %658
    %660 = vrot.lane.b32.xlu0 %v653, 112
    %v661 = vpop.permute.xlu0 %660
    %666 = vrot.lane.b32.xlu0 %v654, 16
    %v667 = vpop.permute.xlu0 %666
    %668 = vrot.lane.b32.xlu0 %v655, 16
    %v669 = vpop.permute.xlu0 %668
    %v672 = vsel %vm211, %v659, %v667
    %v673 = vsel %vm211, %v661, %v669
    %v674 = vld [vmem:[%s7] sm:$0xff]
    %v675 = vld [vmem:[%s5] sm:$0xff]
    %v676 = vld [vmem:[%s5 + $0x8] sm:$0xff]
    %v677 = vld [vmem:[%s5 + $0x10] sm:$0xff]
    %v678 = vld [vmem:[%s5 + $0x18] sm:$0xff]
    %v679 = vld [vmem:[%s5 + $0x20] sm:$0xff]
    %v680 = vld [vmem:[%s5 + $0x28] sm:$0xff]
    %v681 = vld [vmem:[%s5 + $0x30] sm:$0xff]
    %v682 = vld [vmem:[%s5 + $0x38] sm:$0xff]
    %v683 = vld [vmem:[%s5 + $0x40] sm:$0xff]
    %v684 = vld [vmem:[%s5 + $0x48] sm:$0xff]
    %v685 = vld [vmem:[%s5 + $0x50] sm:$0xff]
    %v686 = vld [vmem:[%s5 + $0x58] sm:$0xff]
    %v687 = vld [vmem:[%s49] sm:$0xff]
    %v688 = vld [vmem:[%s49 + $0x8] sm:$0xff]
    %v689 = vld [vmem:[%s49 + $0x10] sm:$0xf]
    %v690 = vld [vmem:[%s51] sm:$0xff]
    %v691 = vld [vmem:[%s51 + $0x8] sm:$0xff]
    %v692 = vld [vmem:[%s51 + $0x10] sm:$0xff]
    %v693 = vld [vmem:[%s51 + $0x18] sm:$0xff]
    %v694 = vld [vmem:[%s51 + $0x20] sm:$0xff]
    %v695 = vld [vmem:[%s51 + $0x28] sm:$0xff]
    %v696 = vld [vmem:[%s51 + $0x30] sm:$0xff]
    %v697 = vld [vmem:[%s51 + $0x38] sm:$0xff]
    %v698 = vld [vmem:[%s51 + $0x40] sm:$0xff]
    %v699 = vld [vmem:[%s51 + $0x48] sm:$0xff]
    %v700 = vld [vmem:[%s51 + $0x50] sm:$0xff]
    %v701 = vld [vmem:[%s51 + $0x58] sm:$0xff]
    %v702 = vld [vmem:[%s53] sm:$0xff]
    %v703 = vld [vmem:[%s53 + $0x8] sm:$0xff]
    %v704 = vld [vmem:[%s53 + $0x10] sm:$0xff]
    %v705 = vld [vmem:[%s53 + $0x18] sm:$0xff]
    %v706 = vld [vmem:[%s53 + $0x20] sm:$0xff]
    %v707 = vld [vmem:[%s53 + $0x28] sm:$0xff]
    %v708 = vld [vmem:[%s53 + $0x30] sm:$0xff]
    %v709 = vld [vmem:[%s53 + $0x38] sm:$0xff]
    %v710 = vld [vmem:[%s53 + $0x40] sm:$0xff]
    %v711 = vld [vmem:[%s53 + $0x48] sm:$0xff]
    %v712 = vld [vmem:[%s53 + $0x50] sm:$0xff]
    %v713 = vld [vmem:[%s53 + $0x58] sm:$0xff]
    %v714 = vld [vmem:[%s55] sm:$0x1]
    %vm715 = vcmask 162816
    %v717 = vsel %vm715, %v674, 0
    %v720 = vsel %vm715, %v672, 0
    %v723 = vsel %vm715, %v673, 0
    %v726 = vsel %vm388, %v689, 0
    %728 = vmatpush.msra.mxu0 0.0
    %729 = vmatpush.msra.mxu0 0.0
    %730 = vmatpush.msra.mxu0 0.0
    %731 = vmatpush.msra.mxu0 0.0
    %732 = vmatpush.msra.mxu0 0.0
    %733 = vmatpush.msra.mxu0 0.0
    %734 = vmatpush.msra.mxu0 0.0
    %735 = vmatpush.msra.mxu0 0.0
    %736 = vmatpush.msra.mxu0 0.0
    %737 = vmatpush.msra.mxu0 0.0
    %738 = vmatpush.msra.mxu0 0.0
    %739 = vmatpush.msra.mxu0 0.0
    %740 = vmatpush.msra.mxu0 0.0
    %741 = vmatpush.msra.mxu0 %v726
    %742 = vmatpush.msra.mxu0 %v688
    %743 = vmatpush.msra.mxu0 %v687
    %744 = vmatmul.f32.gmra.mxu0 %v717
    %v745 = vpop.f32.mrf.mxu0
    %v746 = vadd.f32 0.0, %v745
    %747 = vmatmul.f32.gmra.mxu0 %v720
    %v748 = vpop.f32.mrf.mxu0
    %v749 = vadd.f32 0.0, %v748
    %750 = vmatmul.f32.gmra.mxu0 %v723
    %v751 = vpop.f32.mrf.mxu0
    %v752 = vadd.f32 0.0, %v751
    %753 = vdwg.mxu0
    %v754 = vmul.f32 %v746, %v690
    %v755 = vmul.f32 %v749, %v691
    %v756 = vmul.f32 %v752, %v692
    %v757 = vmul.f32 %v746, %v693
    %v758 = vmul.f32 %v749, %v694
    %v759 = vmul.f32 %v752, %v695
    %v760 = vmul.f32 %v746, %v696
    %v761 = vmul.f32 %v749, %v697
    %v762 = vmul.f32 %v752, %v698
    %v763 = vmul.f32 %v746, %v699
    %v764 = vmul.f32 %v749, %v700
    %v765 = vmul.f32 %v752, %v701
    %v766 = vsel %vm510, %v754, 0.0
    %767 = vadd.xlane.f32.xlu0 %v766
    %v768 = vpop.xlane.xlu0 %767
    %v769 = vsel %vm510, %v755, 0.0
    %770 = vadd.xlane.f32.xlu0 %v769
    %v771 = vpop.xlane.xlu0 %770
    %v772 = vsel %vm510, %v756, 0.0
    %773 = vadd.xlane.f32.xlu0 %v772
    %v774 = vpop.xlane.xlu0 %773
    %v775 = vsel %vm510, %v757, 0.0
    %776 = vadd.xlane.f32.xlu0 %v775
    %v777 = vpop.xlane.xlu0 %776
    %v778 = vsel %vm510, %v758, 0.0
    %779 = vadd.xlane.f32.xlu0 %v778
    %v780 = vpop.xlane.xlu0 %779
    %v781 = vsel %vm510, %v759, 0.0
    %782 = vadd.xlane.f32.xlu0 %v781
    %v783 = vpop.xlane.xlu0 %782
    %v784 = vsel %vm510, %v760, 0.0
    %785 = vadd.xlane.f32.xlu0 %v784
    %v786 = vpop.xlane.xlu0 %785
    %v787 = vsel %vm510, %v761, 0.0
    %788 = vadd.xlane.f32.xlu0 %v787
    %v789 = vpop.xlane.xlu0 %788
    %v790 = vsel %vm510, %v762, 0.0
    %791 = vadd.xlane.f32.xlu0 %v790
    %v792 = vpop.xlane.xlu0 %791
    %v793 = vsel %vm510, %v763, 0.0
    %794 = vadd.xlane.f32.xlu0 %v793
    %v795 = vpop.xlane.xlu0 %794
    %v796 = vsel %vm510, %v764, 0.0
    %797 = vadd.xlane.f32.xlu0 %v796
    %v798 = vpop.xlane.xlu0 %797
    %v799 = vsel %vm510, %v765, 0.0
    %800 = vadd.xlane.f32.xlu0 %v799
    %v801 = vpop.xlane.xlu0 %800
    %v803 = vsel %vm510, %v702, 0
    %v806 = vsel %vm510, %v703, 0
    %v809 = vsel %vm510, %v704, 0
    %v812 = vsel %vm510, %v705, 0
    %v815 = vsel %vm510, %v706, 0
    %v818 = vsel %vm510, %v707, 0
    %v821 = vsel %vm510, %v708, 0
    %v824 = vsel %vm510, %v709, 0
    %v827 = vsel %vm510, %v710, 0
    %v830 = vsel %vm510, %v711, 0
    %v833 = vsel %vm510, %v712, 0
    %v836 = vsel %vm510, %v713, 0
    %v839 = vsel %vm510, %v746, 0
    %v842 = vsel %vm510, %v749, 0
    %v845 = vsel %vm510, %v752, 0
    %847 = vmatpush.xpose.msra.mxu0 0.0
    %848 = vmatpush.xpose.msra.mxu0 0.0
    %849 = vmatpush.xpose.msra.mxu0 0.0
    %850 = vmatpush.xpose.msra.mxu0 0.0
    %851 = vmatpush.xpose.msra.mxu0 0.0
    %852 = vmatpush.xpose.msra.mxu0 0.0
    %853 = vmatpush.xpose.msra.mxu0 0.0
    %854 = vmatpush.xpose.msra.mxu0 0.0
    %855 = vmatpush.xpose.msra.mxu0 0.0
    %856 = vmatpush.xpose.msra.mxu0 0.0
    %857 = vmatpush.xpose.msra.mxu0 0.0
    %858 = vmatpush.xpose.msra.mxu0 0.0
    %859 = vmatpush.xpose.msra.mxu0 0.0
    %860 = vmatpush.xpose.msra.mxu0 %v845
    %861 = vmatpush.xpose.msra.mxu0 %v842
    %862 = vmatpush.xpose.msra.mxu0 %v839
    %863 = vmatmul.f32.gmra.mxu0 %v803
    %v864 = vpop.f32.mrf.mxu0
    %v865 = vadd.f32 0.0, %v864
    %866 = vmatmul.f32.gmra.mxu0 %v806
    %v867 = vpop.f32.mrf.mxu0
    %v868 = vadd.f32 0.0, %v867
    %869 = vmatmul.f32.gmra.mxu0 %v809
    %v870 = vpop.f32.mrf.mxu0
    %v871 = vadd.f32 0.0, %v870
    %872 = vmatmul.f32.gmra.mxu0 %v812
    %v873 = vpop.f32.mrf.mxu0
    %v874 = vadd.f32 0.0, %v873
    %875 = vmatmul.f32.gmra.mxu0 %v815
    %v876 = vpop.f32.mrf.mxu0
    %v877 = vadd.f32 0.0, %v876
    %878 = vmatmul.f32.gmra.mxu0 %v818
    %v879 = vpop.f32.mrf.mxu0
    %v880 = vadd.f32 0.0, %v879
    %881 = vmatmul.f32.gmra.mxu0 %v821
    %v882 = vpop.f32.mrf.mxu0
    %v883 = vadd.f32 0.0, %v882
    %884 = vmatmul.f32.gmra.mxu0 %v824
    %v885 = vpop.f32.mrf.mxu0
    %v886 = vadd.f32 0.0, %v885
    %887 = vmatmul.f32.gmra.mxu0 %v827
    %v888 = vpop.f32.mrf.mxu0
    %v889 = vadd.f32 0.0, %v888
    %890 = vmatmul.f32.gmra.mxu0 %v830
    %v891 = vpop.f32.mrf.mxu0
    %v892 = vadd.f32 0.0, %v891
    %893 = vmatmul.f32.gmra.mxu0 %v833
    %v894 = vpop.f32.mrf.mxu0
    %v895 = vadd.f32 0.0, %v894
    %896 = vmatmul.f32.gmra.mxu0 %v836
    %v897 = vpop.f32.mrf.mxu0
    %v898 = vadd.f32 0.0, %v897
    %899 = vdwg.mxu0
    %v900 = vadd.f32 %v768, %v865
    %v901 = vadd.f32 %v771, %v868
    %v902 = vadd.f32 %v774, %v871
    %v903 = vadd.f32 %v777, %v874
    %v904 = vadd.f32 %v780, %v877
    %v905 = vadd.f32 %v783, %v880
    %v906 = vadd.f32 %v786, %v883
    %v907 = vadd.f32 %v789, %v886
    %v908 = vadd.f32 %v792, %v889
    %v909 = vadd.f32 %v795, %v892
    %v910 = vadd.f32 %v798, %v895
    %v911 = vadd.f32 %v801, %v898
    %vm912 = vcmp.ge.f32.partialorder %v900, 0.0
    %vm913 = vcmp.ge.f32.partialorder %v901, 0.0
    %vm914 = vcmp.ge.f32.partialorder %v902, 0.0
    %vm915 = vcmp.ge.f32.partialorder %v903, 0.0
    %vm916 = vcmp.ge.f32.partialorder %v904, 0.0
    %vm917 = vcmp.ge.f32.partialorder %v905, 0.0
    %vm918 = vcmp.ge.f32.partialorder %v906, 0.0
    %vm919 = vcmp.ge.f32.partialorder %v907, 0.0
    %vm920 = vcmp.ge.f32.partialorder %v908, 0.0
    %vm921 = vcmp.ge.f32.partialorder %v909, 0.0
    %vm922 = vcmp.ge.f32.partialorder %v910, 0.0
    %vm923 = vcmp.ge.f32.partialorder %v911, 0.0
    %v924 = vmul.f32 %v900, 0.2
    %v925 = vmul.f32 %v901, 0.2
    %v926 = vmul.f32 %v902, 0.2
    %v927 = vmul.f32 %v903, 0.2
    %v928 = vmul.f32 %v904, 0.2
    %v929 = vmul.f32 %v905, 0.2
    %v930 = vmul.f32 %v906, 0.2
    %v931 = vmul.f32 %v907, 0.2
    %v932 = vmul.f32 %v908, 0.2
    %v933 = vmul.f32 %v909, 0.2
    %v934 = vmul.f32 %v910, 0.2
    %v935 = vmul.f32 %v911, 0.2
    %v936 = vsel %vm912, %v900, %v924
    %v937 = vsel %vm913, %v901, %v925
    %v938 = vsel %vm914, %v902, %v926
    %v939 = vsel %vm915, %v903, %v927
    %v940 = vsel %vm916, %v904, %v928
    %v941 = vsel %vm917, %v905, %v929
    %v942 = vsel %vm918, %v906, %v930
    %v943 = vsel %vm919, %v907, %v931
    %v944 = vsel %vm920, %v908, %v932
    %v945 = vsel %vm921, %v909, %v933
    %v946 = vsel %vm922, %v910, %v934
    %v947 = vsel %vm923, %v911, %v935
    %v948 = vadd.f32 %v936, %v675
    %v949 = vadd.f32 %v937, %v676
    %v950 = vadd.f32 %v938, %v677
    %v951 = vadd.f32 %v939, %v678
    %v952 = vadd.f32 %v940, %v679
    %v953 = vadd.f32 %v941, %v680
    %v954 = vadd.f32 %v942, %v681
    %v955 = vadd.f32 %v943, %v682
    %v956 = vadd.f32 %v944, %v683
    %v957 = vadd.f32 %v945, %v684
    %v958 = vadd.f32 %v946, %v685
    %v959 = vadd.f32 %v947, %v686
    %vm960 = vcmask 195584
    %v961 = vsel %vm960, %v948, -inf
    %962 = vmax.xlane.f32.xlu0 %v961
    %v963 = vpop.xlane.xlu0 %962
    %v964 = vsel %vm960, %v949, -inf
    %965 = vmax.xlane.f32.xlu0 %v964
    %v966 = vpop.xlane.xlu0 %965
    %v967 = vsel %vm960, %v950, -inf
    %968 = vmax.xlane.f32.xlu0 %v967
    %v969 = vpop.xlane.xlu0 %968
    %v970 = vsel %vm960, %v951, -inf
    %971 = vmax.xlane.f32.xlu0 %v970
    %v972 = vpop.xlane.xlu0 %971
    %v973 = vsel %vm960, %v952, -inf
    %974 = vmax.xlane.f32.xlu0 %v973
    %v975 = vpop.xlane.xlu0 %974
    %v976 = vsel %vm960, %v953, -inf
    %977 = vmax.xlane.f32.xlu0 %v976
    %v978 = vpop.xlane.xlu0 %977
    %v979 = vsel %vm960, %v954, -inf
    %980 = vmax.xlane.f32.xlu0 %v979
    %v981 = vpop.xlane.xlu0 %980
    %v982 = vsel %vm960, %v955, -inf
    %983 = vmax.xlane.f32.xlu0 %v982
    %v984 = vpop.xlane.xlu0 %983
    %v985 = vsel %vm960, %v956, -inf
    %986 = vmax.xlane.f32.xlu0 %v985
    %v987 = vpop.xlane.xlu0 %986
    %v988 = vsel %vm960, %v957, -inf
    %989 = vmax.xlane.f32.xlu0 %v988
    %v990 = vpop.xlane.xlu0 %989
    %v991 = vsel %vm960, %v958, -inf
    %992 = vmax.xlane.f32.xlu0 %v991
    %v993 = vpop.xlane.xlu0 %992
    %v994 = vsel %vm960, %v959, -inf
    %995 = vmax.xlane.f32.xlu0 %v994
    %v996 = vpop.xlane.xlu0 %995
    %v997 = vsub.f32 %v948, %v963
    %v998 = vsub.f32 %v949, %v966
    %v999 = vsub.f32 %v950, %v969
    %v1000 = vsub.f32 %v951, %v972
    %v1001 = vsub.f32 %v952, %v975
    %v1002 = vsub.f32 %v953, %v978
    %v1003 = vsub.f32 %v954, %v981
    %v1004 = vsub.f32 %v955, %v984
    %v1005 = vsub.f32 %v956, %v987
    %v1006 = vsub.f32 %v957, %v990
    %v1007 = vsub.f32 %v958, %v993
    %v1008 = vsub.f32 %v959, %v996
    %v1009 = vmul.f32 %v997, 1.442695
    %v1010 = vpow.pop %v1009
    %v1011 = vmul.f32 %v998, 1.442695
    %v1012 = vpow.pop %v1011
    %v1013 = vmul.f32 %v999, 1.442695
    %v1014 = vpow.pop %v1013
    %v1015 = vmul.f32 %v1000, 1.442695
    %v1016 = vpow.pop %v1015
    %v1017 = vmul.f32 %v1001, 1.442695
    %v1018 = vpow.pop %v1017
    %v1019 = vmul.f32 %v1002, 1.442695
    %v1020 = vpow.pop %v1019
    %v1021 = vmul.f32 %v1003, 1.442695
    %v1022 = vpow.pop %v1021
    %v1023 = vmul.f32 %v1004, 1.442695
    %v1024 = vpow.pop %v1023
    %v1025 = vmul.f32 %v1005, 1.442695
    %v1026 = vpow.pop %v1025
    %v1027 = vmul.f32 %v1006, 1.442695
    %v1028 = vpow.pop %v1027
    %v1029 = vmul.f32 %v1007, 1.442695
    %v1030 = vpow.pop %v1029
    %v1031 = vmul.f32 %v1008, 1.442695
    %v1032 = vpow.pop %v1031
    %v1033 = vsel %vm960, %v1010, 0.0
    %1034 = vadd.xlane.f32.xlu0 %v1033
    %v1035 = vpop.xlane.xlu0 %1034
    %v1036 = vsel %vm960, %v1012, 0.0
    %1037 = vadd.xlane.f32.xlu0 %v1036
    %v1038 = vpop.xlane.xlu0 %1037
    %v1039 = vsel %vm960, %v1014, 0.0
    %1040 = vadd.xlane.f32.xlu0 %v1039
    %v1041 = vpop.xlane.xlu0 %1040
    %v1042 = vsel %vm960, %v1016, 0.0
    %1043 = vadd.xlane.f32.xlu0 %v1042
    %v1044 = vpop.xlane.xlu0 %1043
    %v1045 = vsel %vm960, %v1018, 0.0
    %1046 = vadd.xlane.f32.xlu0 %v1045
    %v1047 = vpop.xlane.xlu0 %1046
    %v1048 = vsel %vm960, %v1020, 0.0
    %1049 = vadd.xlane.f32.xlu0 %v1048
    %v1050 = vpop.xlane.xlu0 %1049
    %v1051 = vsel %vm960, %v1022, 0.0
    %1052 = vadd.xlane.f32.xlu0 %v1051
    %v1053 = vpop.xlane.xlu0 %1052
    %v1054 = vsel %vm960, %v1024, 0.0
    %1055 = vadd.xlane.f32.xlu0 %v1054
    %v1056 = vpop.xlane.xlu0 %1055
    %v1057 = vsel %vm960, %v1026, 0.0
    %1058 = vadd.xlane.f32.xlu0 %v1057
    %v1059 = vpop.xlane.xlu0 %1058
    %v1060 = vsel %vm960, %v1028, 0.0
    %1061 = vadd.xlane.f32.xlu0 %v1060
    %v1062 = vpop.xlane.xlu0 %1061
    %v1063 = vsel %vm960, %v1030, 0.0
    %1064 = vadd.xlane.f32.xlu0 %v1063
    %v1065 = vpop.xlane.xlu0 %1064
    %v1066 = vsel %vm960, %v1032, 0.0
    %1067 = vadd.xlane.f32.xlu0 %v1066
    %v1068 = vpop.xlane.xlu0 %1067
    %v1069 = vrcp.pop %v1035
    %v1070 = vmul.f32 %v1035, %v1069
    %v1071 = vsub.f32 1.0, %v1070
    %v1072 = vmul.f32 %v1069, %v1071
    %v1073 = vadd.f32 %v1069, %v1072
    %vm1074 = vweird.f32 %v1035
    %vm1075 = vweird.f32 %v1069
    %vm1076 = vmor %vm1074, %vm1075
    %v1077 = vsel %vm1076, %v1069, %v1073
    %v1078 = vand.u32 2147483647, %v1035
    %vm1079 = vcmp.eq.f32.partialorder %v1078, 8.507059e+37
    %v1080 = vand.u32 %v1035, 2147483648
    %v1081 = vor.u32 1.1754944e-38, %v1080
    %v1082 = vsel %vm1079, %v1081, %v1077
    %v1083 = vmul.f32 %v1010, %v1082
    %v1084 = vrcp.pop %v1038
    %v1085 = vmul.f32 %v1038, %v1084
    %v1086 = vsub.f32 1.0, %v1085
    %v1087 = vmul.f32 %v1084, %v1086
    %v1088 = vadd.f32 %v1084, %v1087
    %vm1089 = vweird.f32 %v1038
    %vm1090 = vweird.f32 %v1084
    %vm1091 = vmor %vm1089, %vm1090
    %v1092 = vsel %vm1091, %v1084, %v1088
    %v1093 = vand.u32 2147483647, %v1038
    %vm1094 = vcmp.eq.f32.partialorder %v1093, 8.507059e+37
    %v1095 = vand.u32 %v1038, 2147483648
    %v1096 = vor.u32 1.1754944e-38, %v1095
    %v1097 = vsel %vm1094, %v1096, %v1092
    %v1098 = vmul.f32 %v1012, %v1097
    %v1099 = vrcp.pop %v1041
    %v1100 = vmul.f32 %v1041, %v1099
    %v1101 = vsub.f32 1.0, %v1100
    %v1102 = vmul.f32 %v1099, %v1101
    %v1103 = vadd.f32 %v1099, %v1102
    %vm1104 = vweird.f32 %v1041
    %vm1105 = vweird.f32 %v1099
    %vm1106 = vmor %vm1104, %vm1105
    %v1107 = vsel %vm1106, %v1099, %v1103
    %v1108 = vand.u32 2147483647, %v1041
    %vm1109 = vcmp.eq.f32.partialorder %v1108, 8.507059e+37
    %v1110 = vand.u32 %v1041, 2147483648
    %v1111 = vor.u32 1.1754944e-38, %v1110
    %v1112 = vsel %vm1109, %v1111, %v1107
    %v1113 = vmul.f32 %v1014, %v1112
    %v1114 = vrcp.pop %v1044
    %v1115 = vmul.f32 %v1044, %v1114
    %v1116 = vsub.f32 1.0, %v1115
    %v1117 = vmul.f32 %v1114, %v1116
    %v1118 = vadd.f32 %v1114, %v1117
    %vm1119 = vweird.f32 %v1044
    %vm1120 = vweird.f32 %v1114
    %vm1121 = vmor %vm1119, %vm1120
    %v1122 = vsel %vm1121, %v1114, %v1118
    %v1123 = vand.u32 2147483647, %v1044
    %vm1124 = vcmp.eq.f32.partialorder %v1123, 8.507059e+37
    %v1125 = vand.u32 %v1044, 2147483648
    %v1126 = vor.u32 1.1754944e-38, %v1125
    %v1127 = vsel %vm1124, %v1126, %v1122
    %v1128 = vmul.f32 %v1016, %v1127
    %v1129 = vrcp.pop %v1047
    %v1130 = vmul.f32 %v1047, %v1129
    %v1131 = vsub.f32 1.0, %v1130
    %v1132 = vmul.f32 %v1129, %v1131
    %v1133 = vadd.f32 %v1129, %v1132
    %vm1134 = vweird.f32 %v1047
    %vm1135 = vweird.f32 %v1129
    %vm1136 = vmor %vm1134, %vm1135
    %v1137 = vsel %vm1136, %v1129, %v1133
    %v1138 = vand.u32 2147483647, %v1047
    %vm1139 = vcmp.eq.f32.partialorder %v1138, 8.507059e+37
    %v1140 = vand.u32 %v1047, 2147483648
    %v1141 = vor.u32 1.1754944e-38, %v1140
    %v1142 = vsel %vm1139, %v1141, %v1137
    %v1143 = vmul.f32 %v1018, %v1142
    %v1144 = vrcp.pop %v1050
    %v1145 = vmul.f32 %v1050, %v1144
    %v1146 = vsub.f32 1.0, %v1145
    %v1147 = vmul.f32 %v1144, %v1146
    %v1148 = vadd.f32 %v1144, %v1147
    %vm1149 = vweird.f32 %v1050
    %vm1150 = vweird.f32 %v1144
    %vm1151 = vmor %vm1149, %vm1150
    %v1152 = vsel %vm1151, %v1144, %v1148
    %v1153 = vand.u32 2147483647, %v1050
    %vm1154 = vcmp.eq.f32.partialorder %v1153, 8.507059e+37
    %v1155 = vand.u32 %v1050, 2147483648
    %v1156 = vor.u32 1.1754944e-38, %v1155
    %v1157 = vsel %vm1154, %v1156, %v1152
    %v1158 = vmul.f32 %v1020, %v1157
    %v1159 = vrcp.pop %v1053
    %v1160 = vmul.f32 %v1053, %v1159
    %v1161 = vsub.f32 1.0, %v1160
    %v1162 = vmul.f32 %v1159, %v1161
    %v1163 = vadd.f32 %v1159, %v1162
    %vm1164 = vweird.f32 %v1053
    %vm1165 = vweird.f32 %v1159
    %vm1166 = vmor %vm1164, %vm1165
    %v1167 = vsel %vm1166, %v1159, %v1163
    %v1168 = vand.u32 2147483647, %v1053
    %vm1169 = vcmp.eq.f32.partialorder %v1168, 8.507059e+37
    %v1170 = vand.u32 %v1053, 2147483648
    %v1171 = vor.u32 1.1754944e-38, %v1170
    %v1172 = vsel %vm1169, %v1171, %v1167
    %v1173 = vmul.f32 %v1022, %v1172
    %v1174 = vrcp.pop %v1056
    %v1175 = vmul.f32 %v1056, %v1174
    %v1176 = vsub.f32 1.0, %v1175
    %v1177 = vmul.f32 %v1174, %v1176
    %v1178 = vadd.f32 %v1174, %v1177
    %vm1179 = vweird.f32 %v1056
    %vm1180 = vweird.f32 %v1174
    %vm1181 = vmor %vm1179, %vm1180
    %v1182 = vsel %vm1181, %v1174, %v1178
    %v1183 = vand.u32 2147483647, %v1056
    %vm1184 = vcmp.eq.f32.partialorder %v1183, 8.507059e+37
    %v1185 = vand.u32 %v1056, 2147483648
    %v1186 = vor.u32 1.1754944e-38, %v1185
    %v1187 = vsel %vm1184, %v1186, %v1182
    %v1188 = vmul.f32 %v1024, %v1187
    %v1189 = vrcp.pop %v1059
    %v1190 = vmul.f32 %v1059, %v1189
    %v1191 = vsub.f32 1.0, %v1190
    %v1192 = vmul.f32 %v1189, %v1191
    %v1193 = vadd.f32 %v1189, %v1192
    %vm1194 = vweird.f32 %v1059
    %vm1195 = vweird.f32 %v1189
    %vm1196 = vmor %vm1194, %vm1195
    %v1197 = vsel %vm1196, %v1189, %v1193
    %v1198 = vand.u32 2147483647, %v1059
    %vm1199 = vcmp.eq.f32.partialorder %v1198, 8.507059e+37
    %v1200 = vand.u32 %v1059, 2147483648
    %v1201 = vor.u32 1.1754944e-38, %v1200
    %v1202 = vsel %vm1199, %v1201, %v1197
    %v1203 = vmul.f32 %v1026, %v1202
    %v1204 = vrcp.pop %v1062
    %v1205 = vmul.f32 %v1062, %v1204
    %v1206 = vsub.f32 1.0, %v1205
    %v1207 = vmul.f32 %v1204, %v1206
    %v1208 = vadd.f32 %v1204, %v1207
    %vm1209 = vweird.f32 %v1062
    %vm1210 = vweird.f32 %v1204
    %vm1211 = vmor %vm1209, %vm1210
    %v1212 = vsel %vm1211, %v1204, %v1208
    %v1213 = vand.u32 2147483647, %v1062
    %vm1214 = vcmp.eq.f32.partialorder %v1213, 8.507059e+37
    %v1215 = vand.u32 %v1062, 2147483648
    %v1216 = vor.u32 1.1754944e-38, %v1215
    %v1217 = vsel %vm1214, %v1216, %v1212
    %v1218 = vmul.f32 %v1028, %v1217
    %v1219 = vrcp.pop %v1065
    %v1220 = vmul.f32 %v1065, %v1219
    %v1221 = vsub.f32 1.0, %v1220
    %v1222 = vmul.f32 %v1219, %v1221
    %v1223 = vadd.f32 %v1219, %v1222
    %vm1224 = vweird.f32 %v1065
    %vm1225 = vweird.f32 %v1219
    %vm1226 = vmor %vm1224, %vm1225
    %v1227 = vsel %vm1226, %v1219, %v1223
    %v1228 = vand.u32 2147483647, %v1065
    %vm1229 = vcmp.eq.f32.partialorder %v1228, 8.507059e+37
    %v1230 = vand.u32 %v1065, 2147483648
    %v1231 = vor.u32 1.1754944e-38, %v1230
    %v1232 = vsel %vm1229, %v1231, %v1227
    %v1233 = vmul.f32 %v1030, %v1232
    %v1234 = vrcp.pop %v1068
    %v1235 = vmul.f32 %v1068, %v1234
    %v1236 = vsub.f32 1.0, %v1235
    %v1237 = vmul.f32 %v1234, %v1236
    %v1238 = vadd.f32 %v1234, %v1237
    %vm1239 = vweird.f32 %v1068
    %vm1240 = vweird.f32 %v1234
    %vm1241 = vmor %vm1239, %vm1240
    %v1242 = vsel %vm1241, %v1234, %v1238
    %v1243 = vand.u32 2147483647, %v1068
    %vm1244 = vcmp.eq.f32.partialorder %v1243, 8.507059e+37
    %v1245 = vand.u32 %v1068, 2147483648
    %v1246 = vor.u32 1.1754944e-38, %v1245
    %v1247 = vsel %vm1244, %v1246, %v1242
    %v1248 = vmul.f32 %v1032, %v1247
    %v1250 = vsel %vm960, %v1083, 0
    %v1253 = vsel %vm960, %v1098, 0
    %v1256 = vsel %vm960, %v1113, 0
    %v1259 = vsel %vm960, %v1128, 0
    %v1262 = vsel %vm960, %v1143, 0
    %v1265 = vsel %vm960, %v1158, 0
    %v1268 = vsel %vm960, %v1173, 0
    %v1271 = vsel %vm960, %v1188, 0
    %v1274 = vsel %vm960, %v1203, 0
    %v1277 = vsel %vm960, %v1218, 0
    %v1280 = vsel %vm960, %v1233, 0
    %v1283 = vsel %vm960, %v1248, 0
    %1285 = vmatpush.msra.mxu0 0.0
    %1286 = vmatpush.msra.mxu0 0.0
    %1287 = vmatpush.msra.mxu0 0.0
    %1288 = vmatpush.msra.mxu0 0.0
    %1289 = vmatpush.msra.mxu0 0.0
    %1290 = vmatpush.msra.mxu0 0.0
    %1291 = vmatpush.msra.mxu0 0.0
    %1292 = vmatpush.msra.mxu0 0.0
    %1293 = vmatpush.msra.mxu0 0.0
    %1294 = vmatpush.msra.mxu0 0.0
    %1295 = vmatpush.msra.mxu0 0.0
    %1296 = vmatpush.msra.mxu0 0.0
    %1297 = vmatpush.msra.mxu0 0.0
    %1298 = vmatpush.msra.mxu0 %v752
    %1299 = vmatpush.msra.mxu0 %v749
    %1300 = vmatpush.msra.mxu0 %v746
    %1301 = vmatmul.f32.gmra.mxu0 %v1250
    %v1302 = vpop.f32.mrf.mxu0
    %v1303 = vadd.f32 0.0, %v1302
    %1304 = vmatmul.f32.gmra.mxu0 %v1253
    %v1305 = vpop.f32.mrf.mxu0
    %v1306 = vadd.f32 0.0, %v1305
    %1307 = vmatmul.f32.gmra.mxu0 %v1256
    %v1308 = vpop.f32.mrf.mxu0
    %v1309 = vadd.f32 0.0, %v1308
    %1310 = vmatmul.f32.gmra.mxu0 %v1259
    %v1311 = vpop.f32.mrf.mxu0
    %v1312 = vadd.f32 0.0, %v1311
    %1313 = vmatmul.f32.gmra.mxu0 %v1262
    %v1314 = vpop.f32.mrf.mxu0
    %v1315 = vadd.f32 0.0, %v1314
    %1316 = vmatmul.f32.gmra.mxu0 %v1265
    %v1317 = vpop.f32.mrf.mxu0
    %v1318 = vadd.f32 0.0, %v1317
    %1319 = vmatmul.f32.gmra.mxu0 %v1268
    %v1320 = vpop.f32.mrf.mxu0
    %v1321 = vadd.f32 0.0, %v1320
    %1322 = vmatmul.f32.gmra.mxu0 %v1271
    %v1323 = vpop.f32.mrf.mxu0
    %v1324 = vadd.f32 0.0, %v1323
    %1325 = vmatmul.f32.gmra.mxu0 %v1274
    %v1326 = vpop.f32.mrf.mxu0
    %v1327 = vadd.f32 0.0, %v1326
    %1328 = vmatmul.f32.gmra.mxu0 %v1277
    %v1329 = vpop.f32.mrf.mxu0
    %v1330 = vadd.f32 0.0, %v1329
    %1331 = vmatmul.f32.gmra.mxu0 %v1280
    %v1332 = vpop.f32.mrf.mxu0
    %v1333 = vadd.f32 0.0, %v1332
    %1334 = vmatmul.f32.gmra.mxu0 %v1283
    %v1335 = vpop.f32.mrf.mxu0
    %v1336 = vadd.f32 0.0, %v1335
    %1337 = vdwg.mxu0
    %v1338 = vsel %vm406, %v1303, %v1312
    %v1339 = vsel %vm406, %v1306, %v1315
    %v1340 = vsel %vm406, %v1309, %v1318
    %v1341 = vsel %vm211, %v1338, %v1321
    %v1342 = vsel %vm211, %v1339, %v1324
    %v1343 = vsel %vm211, %v1340, %v1327
    %v1344 = vsel %vm960, %v1341, %v1330
    %v1345 = vsel %vm960, %v1342, %v1333
    %v1346 = vsel %vm960, %v1343, %v1336
    %v1348 = vperm.slane %v714, 0
    %v1350 = vadd.f32 %v1344, %v1348
    %v1351 = vadd.f32 %v1345, %v1348
    %v1352 = vadd.f32 %v1346, %v1348
    %vm1353 = vcmp.ge.f32.partialorder %v1350, 0.0
    %vm1354 = vcmp.ge.f32.partialorder %v1351, 0.0
    %vm1355 = vcmp.ge.f32.partialorder %v1352, 0.0
    %v1356 = vmul.f32 %v1350, 0.01
    %v1357 = vmul.f32 %v1351, 0.01
    %v1358 = vmul.f32 %v1352, 0.01
    %v1359 = vsel %vm1353, %v1350, %v1356
    %v1360 = vsel %vm1354, %v1351, %v1357
    %v1361 = vsel %vm1355, %v1352, %v1358
    %v1362 = vld [vmem:[%s57] sm:$0xff]
    %v1363 = vld [vmem:[%s57 + $0x8] sm:$0xff]
    %v1364 = vld [vmem:[%s57 + $0x10] sm:$0xff]
    %v1365 = vld [vmem:[%s57 + $0x18] sm:$0xff]
    %v1366 = vld [vmem:[%s59] sm:$0xff]
    %v1367 = vld [vmem:[%s59 + $0x8] sm:$0xff]
    %v1368 = vld [vmem:[%s59 + $0x10] sm:$0xff]
    %v1369 = vld [vmem:[%s59 + $0x18] sm:$0xff]
    %v1370 = vld [vmem:[%s59 + $0x20] sm:$0xff]
    %v1371 = vld [vmem:[%s59 + $0x28] sm:$0xff]
    %v1372 = vld [vmem:[%s59 + $0x30] sm:$0xff]
    %v1373 = vld [vmem:[%s59 + $0x38] sm:$0xff]
    %v1374 = vld [vmem:[%s59 + $0x40] sm:$0xff]
    %v1375 = vld [vmem:[%s59 + $0x48] sm:$0xff]
    %v1376 = vld [vmem:[%s59 + $0x50] sm:$0xff]
    %v1377 = vld [vmem:[%s59 + $0x58] sm:$0xff]
    %v1378 = vld [vmem:[%s61] sm:$0xff]
    %v1379 = vld [vmem:[%s61 + $0x8] sm:$0xff]
    %v1380 = vld [vmem:[%s61 + $0x10] sm:$0xff]
    %v1381 = vld [vmem:[%s61 + $0x18] sm:$0xff]
    %v1382 = vld [vmem:[%s61 + $0x20] sm:$0xff]
    %v1383 = vld [vmem:[%s61 + $0x28] sm:$0xff]
    %v1384 = vld [vmem:[%s61 + $0x30] sm:$0xff]
    %v1385 = vld [vmem:[%s61 + $0x38] sm:$0xff]
    %v1386 = vld [vmem:[%s61 + $0x40] sm:$0xff]
    %v1387 = vld [vmem:[%s61 + $0x48] sm:$0xff]
    %v1388 = vld [vmem:[%s61 + $0x50] sm:$0xff]
    %v1389 = vld [vmem:[%s61 + $0x58] sm:$0xff]
    %v1390 = vld [vmem:[%s63] sm:$0x1]
    %v1392 = vsel %vm510, %v1359, 0
    %v1395 = vsel %vm510, %v1360, 0
    %v1398 = vsel %vm510, %v1361, 0
    %1400 = vmatpush.msra.mxu0 0.0
    %1401 = vmatpush.msra.mxu0 0.0
    %1402 = vmatpush.msra.mxu0 0.0
    %1403 = vmatpush.msra.mxu0 0.0
    %1404 = vmatpush.msra.mxu0 0.0
    %1405 = vmatpush.msra.mxu0 0.0
    %1406 = vmatpush.msra.mxu0 0.0
    %1407 = vmatpush.msra.mxu0 0.0
    %1408 = vmatpush.msra.mxu0 0.0
    %1409 = vmatpush.msra.mxu0 0.0
    %1410 = vmatpush.msra.mxu0 0.0
    %1411 = vmatpush.msra.mxu0 0.0
    %1412 = vmatpush.msra.mxu0 %v1365
    %1413 = vmatpush.msra.mxu0 %v1364
    %1414 = vmatpush.msra.mxu0 %v1363
    %1415 = vmatpush.msra.mxu0 %v1362
    %1416 = vmatmul.f32.gmra.mxu0 %v1392
    %v1417 = vpop.f32.mrf.mxu0
    %v1418 = vadd.f32 0.0, %v1417
    %1419 = vmatmul.f32.gmra.mxu0 %v1395
    %v1420 = vpop.f32.mrf.mxu0
    %v1421 = vadd.f32 0.0, %v1420
    %1422 = vmatmul.f32.gmra.mxu0 %v1398
    %v1423 = vpop.f32.mrf.mxu0
    %v1424 = vadd.f32 0.0, %v1423
    %1425 = vdwg.mxu0
    %v1426 = vmul.f32 %v1418, %v1366
    %v1427 = vmul.f32 %v1421, %v1367
    %v1428 = vmul.f32 %v1424, %v1368
    %v1429 = vmul.f32 %v1418, %v1369
    %v1430 = vmul.f32 %v1421, %v1370
    %v1431 = vmul.f32 %v1424, %v1371
    %v1432 = vmul.f32 %v1418, %v1372
    %v1433 = vmul.f32 %v1421, %v1373
    %v1434 = vmul.f32 %v1424, %v1374
    %v1435 = vmul.f32 %v1418, %v1375
    %v1436 = vmul.f32 %v1421, %v1376
    %v1437 = vmul.f32 %v1424, %v1377
    %v1438 = vsel %vm510, %v1426, 0.0
    %1439 = vadd.xlane.f32.xlu0 %v1438
    %v1440 = vpop.xlane.xlu0 %1439
    %v1441 = vsel %vm510, %v1427, 0.0
    %1442 = vadd.xlane.f32.xlu0 %v1441
    %v1443 = vpop.xlane.xlu0 %1442
    %v1444 = vsel %vm510, %v1428, 0.0
    %1445 = vadd.xlane.f32.xlu0 %v1444
    %v1446 = vpop.xlane.xlu0 %1445
    %v1447 = vsel %vm510, %v1429, 0.0
    %1448 = vadd.xlane.f32.xlu0 %v1447
    %v1449 = vpop.xlane.xlu0 %1448
    %v1450 = vsel %vm510, %v1430, 0.0
    %1451 = vadd.xlane.f32.xlu0 %v1450
    %v1452 = vpop.xlane.xlu0 %1451
    %v1453 = vsel %vm510, %v1431, 0.0
    %1454 = vadd.xlane.f32.xlu0 %v1453
    %v1455 = vpop.xlane.xlu0 %1454
    %v1456 = vsel %vm510, %v1432, 0.0
    %1457 = vadd.xlane.f32.xlu0 %v1456
    %v1458 = vpop.xlane.xlu0 %1457
    %v1459 = vsel %vm510, %v1433, 0.0
    %1460 = vadd.xlane.f32.xlu0 %v1459
    %v1461 = vpop.xlane.xlu0 %1460
    %v1462 = vsel %vm510, %v1434, 0.0
    %1463 = vadd.xlane.f32.xlu0 %v1462
    %v1464 = vpop.xlane.xlu0 %1463
    %v1465 = vsel %vm510, %v1435, 0.0
    %1466 = vadd.xlane.f32.xlu0 %v1465
    %v1467 = vpop.xlane.xlu0 %1466
    %v1468 = vsel %vm510, %v1436, 0.0
    %1469 = vadd.xlane.f32.xlu0 %v1468
    %v1470 = vpop.xlane.xlu0 %1469
    %v1471 = vsel %vm510, %v1437, 0.0
    %1472 = vadd.xlane.f32.xlu0 %v1471
    %v1473 = vpop.xlane.xlu0 %1472
    %v1475 = vsel %vm510, %v1378, 0
    %v1478 = vsel %vm510, %v1379, 0
    %v1481 = vsel %vm510, %v1380, 0
    %v1484 = vsel %vm510, %v1381, 0
    %v1487 = vsel %vm510, %v1382, 0
    %v1490 = vsel %vm510, %v1383, 0
    %v1493 = vsel %vm510, %v1384, 0
    %v1496 = vsel %vm510, %v1385, 0
    %v1499 = vsel %vm510, %v1386, 0
    %v1502 = vsel %vm510, %v1387, 0
    %v1505 = vsel %vm510, %v1388, 0
    %v1508 = vsel %vm510, %v1389, 0
    %v1511 = vsel %vm510, %v1418, 0
    %v1514 = vsel %vm510, %v1421, 0
    %v1517 = vsel %vm510, %v1424, 0
    %1519 = vmatpush.xpose.msra.mxu0 0.0
    %1520 = vmatpush.xpose.msra.mxu0 0.0
    %1521 = vmatpush.xpose.msra.mxu0 0.0
    %1522 = vmatpush.xpose.msra.mxu0 0.0
    %1523 = vmatpush.xpose.msra.mxu0 0.0
    %1524 = vmatpush.xpose.msra.mxu0 0.0
    %1525 = vmatpush.xpose.msra.mxu0 0.0
    %1526 = vmatpush.xpose.msra.mxu0 0.0
    %1527 = vmatpush.xpose.msra.mxu0 0.0
    %1528 = vmatpush.xpose.msra.mxu0 0.0
    %1529 = vmatpush.xpose.msra.mxu0 0.0
    %1530 = vmatpush.xpose.msra.mxu0 0.0
    %1531 = vmatpush.xpose.msra.mxu0 0.0
    %1532 = vmatpush.xpose.msra.mxu0 %v1517
    %1533 = vmatpush.xpose.msra.mxu0 %v1514
    %1534 = vmatpush.xpose.msra.mxu0 %v1511
    %1535 = vmatmul.f32.gmra.mxu0 %v1475
    %v1536 = vpop.f32.mrf.mxu0
    %v1537 = vadd.f32 0.0, %v1536
    %1538 = vmatmul.f32.gmra.mxu0 %v1478
    %v1539 = vpop.f32.mrf.mxu0
    %v1540 = vadd.f32 0.0, %v1539
    %1541 = vmatmul.f32.gmra.mxu0 %v1481
    %v1542 = vpop.f32.mrf.mxu0
    %v1543 = vadd.f32 0.0, %v1542
    %1544 = vmatmul.f32.gmra.mxu0 %v1484
    %v1545 = vpop.f32.mrf.mxu0
    %v1546 = vadd.f32 0.0, %v1545
    %1547 = vmatmul.f32.gmra.mxu0 %v1487
    %v1548 = vpop.f32.mrf.mxu0
    %v1549 = vadd.f32 0.0, %v1548
    %1550 = vmatmul.f32.gmra.mxu0 %v1490
    %v1551 = vpop.f32.mrf.mxu0
    %v1552 = vadd.f32 0.0, %v1551
    %1553 = vmatmul.f32.gmra.mxu0 %v1493
    %v1554 = vpop.f32.mrf.mxu0
    %v1555 = vadd.f32 0.0, %v1554
    %1556 = vmatmul.f32.gmra.mxu0 %v1496
    %v1557 = vpop.f32.mrf.mxu0
    %v1558 = vadd.f32 0.0, %v1557
    %1559 = vmatmul.f32.gmra.mxu0 %v1499
    %v1560 = vpop.f32.mrf.mxu0
    %v1561 = vadd.f32 0.0, %v1560
    %1562 = vmatmul.f32.gmra.mxu0 %v1502
    %v1563 = vpop.f32.mrf.mxu0
    %v1564 = vadd.f32 0.0, %v1563
    %1565 = vmatmul.f32.gmra.mxu0 %v1505
    %v1566 = vpop.f32.mrf.mxu0
    %v1567 = vadd.f32 0.0, %v1566
    %1568 = vmatmul.f32.gmra.mxu0 %v1508
    %v1569 = vpop.f32.mrf.mxu0
    %v1570 = vadd.f32 0.0, %v1569
    %1571 = vdwg.mxu0
    %v1572 = vadd.f32 %v1440, %v1537
    %v1573 = vadd.f32 %v1443, %v1540
    %v1574 = vadd.f32 %v1446, %v1543
    %v1575 = vadd.f32 %v1449, %v1546
    %v1576 = vadd.f32 %v1452, %v1549
    %v1577 = vadd.f32 %v1455, %v1552
    %v1578 = vadd.f32 %v1458, %v1555
    %v1579 = vadd.f32 %v1461, %v1558
    %v1580 = vadd.f32 %v1464, %v1561
    %v1581 = vadd.f32 %v1467, %v1564
    %v1582 = vadd.f32 %v1470, %v1567
    %v1583 = vadd.f32 %v1473, %v1570
    %vm1584 = vcmp.ge.f32.partialorder %v1572, 0.0
    %vm1585 = vcmp.ge.f32.partialorder %v1573, 0.0
    %vm1586 = vcmp.ge.f32.partialorder %v1574, 0.0
    %vm1587 = vcmp.ge.f32.partialorder %v1575, 0.0
    %vm1588 = vcmp.ge.f32.partialorder %v1576, 0.0
    %vm1589 = vcmp.ge.f32.partialorder %v1577, 0.0
    %vm1590 = vcmp.ge.f32.partialorder %v1578, 0.0
    %vm1591 = vcmp.ge.f32.partialorder %v1579, 0.0
    %vm1592 = vcmp.ge.f32.partialorder %v1580, 0.0
    %vm1593 = vcmp.ge.f32.partialorder %v1581, 0.0
    %vm1594 = vcmp.ge.f32.partialorder %v1582, 0.0
    %vm1595 = vcmp.ge.f32.partialorder %v1583, 0.0
    %v1596 = vmul.f32 %v1572, 0.2
    %v1597 = vmul.f32 %v1573, 0.2
    %v1598 = vmul.f32 %v1574, 0.2
    %v1599 = vmul.f32 %v1575, 0.2
    %v1600 = vmul.f32 %v1576, 0.2
    %v1601 = vmul.f32 %v1577, 0.2
    %v1602 = vmul.f32 %v1578, 0.2
    %v1603 = vmul.f32 %v1579, 0.2
    %v1604 = vmul.f32 %v1580, 0.2
    %v1605 = vmul.f32 %v1581, 0.2
    %v1606 = vmul.f32 %v1582, 0.2
    %v1607 = vmul.f32 %v1583, 0.2
    %v1608 = vsel %vm1584, %v1572, %v1596
    %v1609 = vsel %vm1585, %v1573, %v1597
    %v1610 = vsel %vm1586, %v1574, %v1598
    %v1611 = vsel %vm1587, %v1575, %v1599
    %v1612 = vsel %vm1588, %v1576, %v1600
    %v1613 = vsel %vm1589, %v1577, %v1601
    %v1614 = vsel %vm1590, %v1578, %v1602
    %v1615 = vsel %vm1591, %v1579, %v1603
    %v1616 = vsel %vm1592, %v1580, %v1604
    %v1617 = vsel %vm1593, %v1581, %v1605
    %v1618 = vsel %vm1594, %v1582, %v1606
    %v1619 = vsel %vm1595, %v1583, %v1607
    %v1620 = vadd.f32 %v1608, %v675
    %v1621 = vadd.f32 %v1609, %v676
    %v1622 = vadd.f32 %v1610, %v677
    %v1623 = vadd.f32 %v1611, %v678
    %v1624 = vadd.f32 %v1612, %v679
    %v1625 = vadd.f32 %v1613, %v680
    %v1626 = vadd.f32 %v1614, %v681
    %v1627 = vadd.f32 %v1615, %v682
    %v1628 = vadd.f32 %v1616, %v683
    %v1629 = vadd.f32 %v1617, %v684
    %v1630 = vadd.f32 %v1618, %v685
    %v1631 = vadd.f32 %v1619, %v686
    %v1632 = vsel %vm960, %v1620, -inf
    %1633 = vmax.xlane.f32.xlu0 %v1632
    %v1634 = vpop.xlane.xlu0 %1633
    %v1635 = vsel %vm960, %v1621, -inf
    %1636 = vmax.xlane.f32.xlu0 %v1635
    %v1637 = vpop.xlane.xlu0 %1636
    %v1638 = vsel %vm960, %v1622, -inf
    %1639 = vmax.xlane.f32.xlu0 %v1638
    %v1640 = vpop.xlane.xlu0 %1639
    %v1641 = vsel %vm960, %v1623, -inf
    %1642 = vmax.xlane.f32.xlu0 %v1641
    %v1643 = vpop.xlane.xlu0 %1642
    %v1644 = vsel %vm960, %v1624, -inf
    %1645 = vmax.xlane.f32.xlu0 %v1644
    %v1646 = vpop.xlane.xlu0 %1645
    %v1647 = vsel %vm960, %v1625, -inf
    %1648 = vmax.xlane.f32.xlu0 %v1647
    %v1649 = vpop.xlane.xlu0 %1648
    %v1650 = vsel %vm960, %v1626, -inf
    %1651 = vmax.xlane.f32.xlu0 %v1650
    %v1652 = vpop.xlane.xlu0 %1651
    %v1653 = vsel %vm960, %v1627, -inf
    %1654 = vmax.xlane.f32.xlu0 %v1653
    %v1655 = vpop.xlane.xlu0 %1654
    %v1656 = vsel %vm960, %v1628, -inf
    %1657 = vmax.xlane.f32.xlu0 %v1656
    %v1658 = vpop.xlane.xlu0 %1657
    %v1659 = vsel %vm960, %v1629, -inf
    %1660 = vmax.xlane.f32.xlu0 %v1659
    %v1661 = vpop.xlane.xlu0 %1660
    %v1662 = vsel %vm960, %v1630, -inf
    %1663 = vmax.xlane.f32.xlu0 %v1662
    %v1664 = vpop.xlane.xlu0 %1663
    %v1665 = vsel %vm960, %v1631, -inf
    %1666 = vmax.xlane.f32.xlu0 %v1665
    %v1667 = vpop.xlane.xlu0 %1666
    %v1668 = vsub.f32 %v1620, %v1634
    %v1669 = vsub.f32 %v1621, %v1637
    %v1670 = vsub.f32 %v1622, %v1640
    %v1671 = vsub.f32 %v1623, %v1643
    %v1672 = vsub.f32 %v1624, %v1646
    %v1673 = vsub.f32 %v1625, %v1649
    %v1674 = vsub.f32 %v1626, %v1652
    %v1675 = vsub.f32 %v1627, %v1655
    %v1676 = vsub.f32 %v1628, %v1658
    %v1677 = vsub.f32 %v1629, %v1661
    %v1678 = vsub.f32 %v1630, %v1664
    %v1679 = vsub.f32 %v1631, %v1667
    %v1680 = vmul.f32 %v1668, 1.442695
    %v1681 = vpow.pop %v1680
    %v1682 = vmul.f32 %v1669, 1.442695
    %v1683 = vpow.pop %v1682
    %v1684 = vmul.f32 %v1670, 1.442695
    %v1685 = vpow.pop %v1684
    %v1686 = vmul.f32 %v1671, 1.442695
    %v1687 = vpow.pop %v1686
    %v1688 = vmul.f32 %v1672, 1.442695
    %v1689 = vpow.pop %v1688
    %v1690 = vmul.f32 %v1673, 1.442695
    %v1691 = vpow.pop %v1690
    %v1692 = vmul.f32 %v1674, 1.442695
    %v1693 = vpow.pop %v1692
    %v1694 = vmul.f32 %v1675, 1.442695
    %v1695 = vpow.pop %v1694
    %v1696 = vmul.f32 %v1676, 1.442695
    %v1697 = vpow.pop %v1696
    %v1698 = vmul.f32 %v1677, 1.442695
    %v1699 = vpow.pop %v1698
    %v1700 = vmul.f32 %v1678, 1.442695
    %v1701 = vpow.pop %v1700
    %v1702 = vmul.f32 %v1679, 1.442695
    %v1703 = vpow.pop %v1702
    %v1704 = vsel %vm960, %v1681, 0.0
    %1705 = vadd.xlane.f32.xlu0 %v1704
    %v1706 = vpop.xlane.xlu0 %1705
    %v1707 = vsel %vm960, %v1683, 0.0
    %1708 = vadd.xlane.f32.xlu0 %v1707
    %v1709 = vpop.xlane.xlu0 %1708
    %v1710 = vsel %vm960, %v1685, 0.0
    %1711 = vadd.xlane.f32.xlu0 %v1710
    %v1712 = vpop.xlane.xlu0 %1711
    %v1713 = vsel %vm960, %v1687, 0.0
    %1714 = vadd.xlane.f32.xlu0 %v1713
    %v1715 = vpop.xlane.xlu0 %1714
    %v1716 = vsel %vm960, %v1689, 0.0
    %1717 = vadd.xlane.f32.xlu0 %v1716
    %v1718 = vpop.xlane.xlu0 %1717
    %v1719 = vsel %vm960, %v1691, 0.0
    %1720 = vadd.xlane.f32.xlu0 %v1719
    %v1721 = vpop.xlane.xlu0 %1720
    %v1722 = vsel %vm960, %v1693, 0.0
    %1723 = vadd.xlane.f32.xlu0 %v1722
    %v1724 = vpop.xlane.xlu0 %1723
    %v1725 = vsel %vm960, %v1695, 0.0
    %1726 = vadd.xlane.f32.xlu0 %v1725
    %v1727 = vpop.xlane.xlu0 %1726
    %v1728 = vsel %vm960, %v1697, 0.0
    %1729 = vadd.xlane.f32.xlu0 %v1728
    %v1730 = vpop.xlane.xlu0 %1729
    %v1731 = vsel %vm960, %v1699, 0.0
    %1732 = vadd.xlane.f32.xlu0 %v1731
    %v1733 = vpop.xlane.xlu0 %1732
    %v1734 = vsel %vm960, %v1701, 0.0
    %1735 = vadd.xlane.f32.xlu0 %v1734
    %v1736 = vpop.xlane.xlu0 %1735
    %v1737 = vsel %vm960, %v1703, 0.0
    %1738 = vadd.xlane.f32.xlu0 %v1737
    %v1739 = vpop.xlane.xlu0 %1738
    %v1740 = vrcp.pop %v1706
    %v1741 = vmul.f32 %v1706, %v1740
    %v1742 = vsub.f32 1.0, %v1741
    %v1743 = vmul.f32 %v1740, %v1742
    %v1744 = vadd.f32 %v1740, %v1743
    %vm1745 = vweird.f32 %v1706
    %vm1746 = vweird.f32 %v1740
    %vm1747 = vmor %vm1745, %vm1746
    %v1748 = vsel %vm1747, %v1740, %v1744
    %v1749 = vand.u32 2147483647, %v1706
    %vm1750 = vcmp.eq.f32.partialorder %v1749, 8.507059e+37
    %v1751 = vand.u32 %v1706, 2147483648
    %v1752 = vor.u32 1.1754944e-38, %v1751
    %v1753 = vsel %vm1750, %v1752, %v1748
    %v1754 = vmul.f32 %v1681, %v1753
    %v1755 = vrcp.pop %v1709
    %v1756 = vmul.f32 %v1709, %v1755
    %v1757 = vsub.f32 1.0, %v1756
    %v1758 = vmul.f32 %v1755, %v1757
    %v1759 = vadd.f32 %v1755, %v1758
    %vm1760 = vweird.f32 %v1709
    %vm1761 = vweird.f32 %v1755
    %vm1762 = vmor %vm1760, %vm1761
    %v1763 = vsel %vm1762, %v1755, %v1759
    %v1764 = vand.u32 2147483647, %v1709
    %vm1765 = vcmp.eq.f32.partialorder %v1764, 8.507059e+37
    %v1766 = vand.u32 %v1709, 2147483648
    %v1767 = vor.u32 1.1754944e-38, %v1766
    %v1768 = vsel %vm1765, %v1767, %v1763
    %v1769 = vmul.f32 %v1683, %v1768
    %v1770 = vrcp.pop %v1712
    %v1771 = vmul.f32 %v1712, %v1770
    %v1772 = vsub.f32 1.0, %v1771
    %v1773 = vmul.f32 %v1770, %v1772
    %v1774 = vadd.f32 %v1770, %v1773
    %vm1775 = vweird.f32 %v1712
    %vm1776 = vweird.f32 %v1770
    %vm1777 = vmor %vm1775, %vm1776
    %v1778 = vsel %vm1777, %v1770, %v1774
    %v1779 = vand.u32 2147483647, %v1712
    %vm1780 = vcmp.eq.f32.partialorder %v1779, 8.507059e+37
    %v1781 = vand.u32 %v1712, 2147483648
    %v1782 = vor.u32 1.1754944e-38, %v1781
    %v1783 = vsel %vm1780, %v1782, %v1778
    %v1784 = vmul.f32 %v1685, %v1783
    %v1785 = vrcp.pop %v1715
    %v1786 = vmul.f32 %v1715, %v1785
    %v1787 = vsub.f32 1.0, %v1786
    %v1788 = vmul.f32 %v1785, %v1787
    %v1789 = vadd.f32 %v1785, %v1788
    %vm1790 = vweird.f32 %v1715
    %vm1791 = vweird.f32 %v1785
    %vm1792 = vmor %vm1790, %vm1791
    %v1793 = vsel %vm1792, %v1785, %v1789
    %v1794 = vand.u32 2147483647, %v1715
    %vm1795 = vcmp.eq.f32.partialorder %v1794, 8.507059e+37
    %v1796 = vand.u32 %v1715, 2147483648
    %v1797 = vor.u32 1.1754944e-38, %v1796
    %v1798 = vsel %vm1795, %v1797, %v1793
    %v1799 = vmul.f32 %v1687, %v1798
    %v1800 = vrcp.pop %v1718
    %v1801 = vmul.f32 %v1718, %v1800
    %v1802 = vsub.f32 1.0, %v1801
    %v1803 = vmul.f32 %v1800, %v1802
    %v1804 = vadd.f32 %v1800, %v1803
    %vm1805 = vweird.f32 %v1718
    %vm1806 = vweird.f32 %v1800
    %vm1807 = vmor %vm1805, %vm1806
    %v1808 = vsel %vm1807, %v1800, %v1804
    %v1809 = vand.u32 2147483647, %v1718
    %vm1810 = vcmp.eq.f32.partialorder %v1809, 8.507059e+37
    %v1811 = vand.u32 %v1718, 2147483648
    %v1812 = vor.u32 1.1754944e-38, %v1811
    %v1813 = vsel %vm1810, %v1812, %v1808
    %v1814 = vmul.f32 %v1689, %v1813
    %v1815 = vrcp.pop %v1721
    %v1816 = vmul.f32 %v1721, %v1815
    %v1817 = vsub.f32 1.0, %v1816
    %v1818 = vmul.f32 %v1815, %v1817
    %v1819 = vadd.f32 %v1815, %v1818
    %vm1820 = vweird.f32 %v1721
    %vm1821 = vweird.f32 %v1815
    %vm1822 = vmor %vm1820, %vm1821
    %v1823 = vsel %vm1822, %v1815, %v1819
    %v1824 = vand.u32 2147483647, %v1721
    %vm1825 = vcmp.eq.f32.partialorder %v1824, 8.507059e+37
    %v1826 = vand.u32 %v1721, 2147483648
    %v1827 = vor.u32 1.1754944e-38, %v1826
    %v1828 = vsel %vm1825, %v1827, %v1823
    %v1829 = vmul.f32 %v1691, %v1828
    %v1830 = vrcp.pop %v1724
    %v1831 = vmul.f32 %v1724, %v1830
    %v1832 = vsub.f32 1.0, %v1831
    %v1833 = vmul.f32 %v1830, %v1832
    %v1834 = vadd.f32 %v1830, %v1833
    %vm1835 = vweird.f32 %v1724
    %vm1836 = vweird.f32 %v1830
    %vm1837 = vmor %vm1835, %vm1836
    %v1838 = vsel %vm1837, %v1830, %v1834
    %v1839 = vand.u32 2147483647, %v1724
    %vm1840 = vcmp.eq.f32.partialorder %v1839, 8.507059e+37
    %v1841 = vand.u32 %v1724, 2147483648
    %v1842 = vor.u32 1.1754944e-38, %v1841
    %v1843 = vsel %vm1840, %v1842, %v1838
    %v1844 = vmul.f32 %v1693, %v1843
    %v1845 = vrcp.pop %v1727
    %v1846 = vmul.f32 %v1727, %v1845
    %v1847 = vsub.f32 1.0, %v1846
    %v1848 = vmul.f32 %v1845, %v1847
    %v1849 = vadd.f32 %v1845, %v1848
    %vm1850 = vweird.f32 %v1727
    %vm1851 = vweird.f32 %v1845
    %vm1852 = vmor %vm1850, %vm1851
    %v1853 = vsel %vm1852, %v1845, %v1849
    %v1854 = vand.u32 2147483647, %v1727
    %vm1855 = vcmp.eq.f32.partialorder %v1854, 8.507059e+37
    %v1856 = vand.u32 %v1727, 2147483648
    %v1857 = vor.u32 1.1754944e-38, %v1856
    %v1858 = vsel %vm1855, %v1857, %v1853
    %v1859 = vmul.f32 %v1695, %v1858
    %v1860 = vrcp.pop %v1730
    %v1861 = vmul.f32 %v1730, %v1860
    %v1862 = vsub.f32 1.0, %v1861
    %v1863 = vmul.f32 %v1860, %v1862
    %v1864 = vadd.f32 %v1860, %v1863
    %vm1865 = vweird.f32 %v1730
    %vm1866 = vweird.f32 %v1860
    %vm1867 = vmor %vm1865, %vm1866
    %v1868 = vsel %vm1867, %v1860, %v1864
    %v1869 = vand.u32 2147483647, %v1730
    %vm1870 = vcmp.eq.f32.partialorder %v1869, 8.507059e+37
    %v1871 = vand.u32 %v1730, 2147483648
    %v1872 = vor.u32 1.1754944e-38, %v1871
    %v1873 = vsel %vm1870, %v1872, %v1868
    %v1874 = vmul.f32 %v1697, %v1873
    %v1875 = vrcp.pop %v1733
    %v1876 = vmul.f32 %v1733, %v1875
    %v1877 = vsub.f32 1.0, %v1876
    %v1878 = vmul.f32 %v1875, %v1877
    %v1879 = vadd.f32 %v1875, %v1878
    %vm1880 = vweird.f32 %v1733
    %vm1881 = vweird.f32 %v1875
    %vm1882 = vmor %vm1880, %vm1881
    %v1883 = vsel %vm1882, %v1875, %v1879
    %v1884 = vand.u32 2147483647, %v1733
    %vm1885 = vcmp.eq.f32.partialorder %v1884, 8.507059e+37
    %v1886 = vand.u32 %v1733, 2147483648
    %v1887 = vor.u32 1.1754944e-38, %v1886
    %v1888 = vsel %vm1885, %v1887, %v1883
    %v1889 = vmul.f32 %v1699, %v1888
    %v1890 = vrcp.pop %v1736
    %v1891 = vmul.f32 %v1736, %v1890
    %v1892 = vsub.f32 1.0, %v1891
    %v1893 = vmul.f32 %v1890, %v1892
    %v1894 = vadd.f32 %v1890, %v1893
    %vm1895 = vweird.f32 %v1736
    %vm1896 = vweird.f32 %v1890
    %vm1897 = vmor %vm1895, %vm1896
    %v1898 = vsel %vm1897, %v1890, %v1894
    %v1899 = vand.u32 2147483647, %v1736
    %vm1900 = vcmp.eq.f32.partialorder %v1899, 8.507059e+37
    %v1901 = vand.u32 %v1736, 2147483648
    %v1902 = vor.u32 1.1754944e-38, %v1901
    %v1903 = vsel %vm1900, %v1902, %v1898
    %v1904 = vmul.f32 %v1701, %v1903
    %v1905 = vrcp.pop %v1739
    %v1906 = vmul.f32 %v1739, %v1905
    %v1907 = vsub.f32 1.0, %v1906
    %v1908 = vmul.f32 %v1905, %v1907
    %v1909 = vadd.f32 %v1905, %v1908
    %vm1910 = vweird.f32 %v1739
    %vm1911 = vweird.f32 %v1905
    %vm1912 = vmor %vm1910, %vm1911
    %v1913 = vsel %vm1912, %v1905, %v1909
    %v1914 = vand.u32 2147483647, %v1739
    %vm1915 = vcmp.eq.f32.partialorder %v1914, 8.507059e+37
    %v1916 = vand.u32 %v1739, 2147483648
    %v1917 = vor.u32 1.1754944e-38, %v1916
    %v1918 = vsel %vm1915, %v1917, %v1913
    %v1919 = vmul.f32 %v1703, %v1918
    %v1921 = vsel %vm960, %v1754, 0
    %v1924 = vsel %vm960, %v1769, 0
    %v1927 = vsel %vm960, %v1784, 0
    %v1930 = vsel %vm960, %v1799, 0
    %v1933 = vsel %vm960, %v1814, 0
    %v1936 = vsel %vm960, %v1829, 0
    %v1939 = vsel %vm960, %v1844, 0
    %v1942 = vsel %vm960, %v1859, 0
    %v1945 = vsel %vm960, %v1874, 0
    %v1948 = vsel %vm960, %v1889, 0
    %v1951 = vsel %vm960, %v1904, 0
    %v1954 = vsel %vm960, %v1919, 0
    %1956 = vmatpush.msra.mxu0 0.0
    %1957 = vmatpush.msra.mxu0 0.0
    %1958 = vmatpush.msra.mxu0 0.0
    %1959 = vmatpush.msra.mxu0 0.0
    %1960 = vmatpush.msra.mxu0 0.0
    %1961 = vmatpush.msra.mxu0 0.0
    %1962 = vmatpush.msra.mxu0 0.0
    %1963 = vmatpush.msra.mxu0 0.0
    %1964 = vmatpush.msra.mxu0 0.0
    %1965 = vmatpush.msra.mxu0 0.0
    %1966 = vmatpush.msra.mxu0 0.0
    %1967 = vmatpush.msra.mxu0 0.0
    %1968 = vmatpush.msra.mxu0 0.0
    %1969 = vmatpush.msra.mxu0 %v1424
    %1970 = vmatpush.msra.mxu0 %v1421
    %1971 = vmatpush.msra.mxu0 %v1418
    %1972 = vmatmul.f32.gmra.mxu0 %v1921
    %v1973 = vpop.f32.mrf.mxu0
    %v1974 = vadd.f32 0.0, %v1973
    %1975 = vmatmul.f32.gmra.mxu0 %v1924
    %v1976 = vpop.f32.mrf.mxu0
    %v1977 = vadd.f32 0.0, %v1976
    %1978 = vmatmul.f32.gmra.mxu0 %v1927
    %v1979 = vpop.f32.mrf.mxu0
    %v1980 = vadd.f32 0.0, %v1979
    %1981 = vmatmul.f32.gmra.mxu0 %v1930
    %v1982 = vpop.f32.mrf.mxu0
    %v1983 = vadd.f32 0.0, %v1982
    %1984 = vmatmul.f32.gmra.mxu0 %v1933
    %v1985 = vpop.f32.mrf.mxu0
    %v1986 = vadd.f32 0.0, %v1985
    %1987 = vmatmul.f32.gmra.mxu0 %v1936
    %v1988 = vpop.f32.mrf.mxu0
    %v1989 = vadd.f32 0.0, %v1988
    %1990 = vmatmul.f32.gmra.mxu0 %v1939
    %v1991 = vpop.f32.mrf.mxu0
    %v1992 = vadd.f32 0.0, %v1991
    %1993 = vmatmul.f32.gmra.mxu0 %v1942
    %v1994 = vpop.f32.mrf.mxu0
    %v1995 = vadd.f32 0.0, %v1994
    %1996 = vmatmul.f32.gmra.mxu0 %v1945
    %v1997 = vpop.f32.mrf.mxu0
    %v1998 = vadd.f32 0.0, %v1997
    %1999 = vmatmul.f32.gmra.mxu0 %v1948
    %v2000 = vpop.f32.mrf.mxu0
    %v2001 = vadd.f32 0.0, %v2000
    %2002 = vmatmul.f32.gmra.mxu0 %v1951
    %v2003 = vpop.f32.mrf.mxu0
    %v2004 = vadd.f32 0.0, %v2003
    %2005 = vmatmul.f32.gmra.mxu0 %v1954
    %v2006 = vpop.f32.mrf.mxu0
    %v2007 = vadd.f32 0.0, %v2006
    %2008 = vdwg.mxu0
    %v2009 = vsel %vm406, %v1974, %v1983
    %v2010 = vsel %vm406, %v1977, %v1986
    %v2011 = vsel %vm406, %v1980, %v1989
    %v2012 = vsel %vm211, %v2009, %v1992
    %v2013 = vsel %vm211, %v2010, %v1995
    %v2014 = vsel %vm211, %v2011, %v1998
    %v2015 = vsel %vm960, %v2012, %v2001
    %v2016 = vsel %vm960, %v2013, %v2004
    %v2017 = vsel %vm960, %v2014, %v2007
    %v2019 = vperm.slane %v1390, 0
    %v2021 = vadd.f32 %v2015, %v2019
    %v2022 = vadd.f32 %v2016, %v2019
    %v2023 = vadd.f32 %v2017, %v2019
    %vm2024 = vcmp.ge.f32.partialorder %v2021, 0.0
    %vm2025 = vcmp.ge.f32.partialorder %v2022, 0.0
    %vm2026 = vcmp.ge.f32.partialorder %v2023, 0.0
    %v2027 = vmul.f32 %v2021, 0.01
    %v2028 = vmul.f32 %v2022, 0.01
    %v2029 = vmul.f32 %v2023, 0.01
    %v2030 = vsel %vm2024, %v2021, %v2027
    %v2031 = vsel %vm2025, %v2022, %v2028
    %v2032 = vsel %vm2026, %v2023, %v2029
    %v2033 = vld [vmem:[%s65] sm:$0xff]
    %v2034 = vld [vmem:[%s65 + $0x8] sm:$0xff]
    %v2035 = vld [vmem:[%s65 + $0x10] sm:$0xff]
    %v2036 = vld [vmem:[%s65 + $0x18] sm:$0xff]
    %v2037 = vld [vmem:[%s67] sm:$0xff]
    %v2038 = vld [vmem:[%s67 + $0x8] sm:$0xff]
    %v2039 = vld [vmem:[%s67 + $0x10] sm:$0xff]
    %v2040 = vld [vmem:[%s67 + $0x18] sm:$0xff]
    %v2041 = vld [vmem:[%s67 + $0x20] sm:$0xff]
    %v2042 = vld [vmem:[%s67 + $0x28] sm:$0xff]
    %v2043 = vld [vmem:[%s67 + $0x30] sm:$0xff]
    %v2044 = vld [vmem:[%s67 + $0x38] sm:$0xff]
    %v2045 = vld [vmem:[%s67 + $0x40] sm:$0xff]
    %v2046 = vld [vmem:[%s67 + $0x48] sm:$0xff]
    %v2047 = vld [vmem:[%s67 + $0x50] sm:$0xff]
    %v2048 = vld [vmem:[%s67 + $0x58] sm:$0xff]
    %v2049 = vld [vmem:[%s69] sm:$0xff]
    %v2050 = vld [vmem:[%s69 + $0x8] sm:$0xff]
    %v2051 = vld [vmem:[%s69 + $0x10] sm:$0xff]
    %v2052 = vld [vmem:[%s69 + $0x18] sm:$0xff]
    %v2053 = vld [vmem:[%s69 + $0x20] sm:$0xff]
    %v2054 = vld [vmem:[%s69 + $0x28] sm:$0xff]
    %v2055 = vld [vmem:[%s69 + $0x30] sm:$0xff]
    %v2056 = vld [vmem:[%s69 + $0x38] sm:$0xff]
    %v2057 = vld [vmem:[%s69 + $0x40] sm:$0xff]
    %v2058 = vld [vmem:[%s69 + $0x48] sm:$0xff]
    %v2059 = vld [vmem:[%s69 + $0x50] sm:$0xff]
    %v2060 = vld [vmem:[%s69 + $0x58] sm:$0xff]
    %v2061 = vld [vmem:[%s71] sm:$0x1]
    %v2063 = vsel %vm510, %v2030, 0
    %v2066 = vsel %vm510, %v2031, 0
    %v2069 = vsel %vm510, %v2032, 0
    %2071 = vmatpush.msra.mxu0 0.0
    %2072 = vmatpush.msra.mxu0 0.0
    %2073 = vmatpush.msra.mxu0 0.0
    %2074 = vmatpush.msra.mxu0 0.0
    %2075 = vmatpush.msra.mxu0 0.0
    %2076 = vmatpush.msra.mxu0 0.0
    %2077 = vmatpush.msra.mxu0 0.0
    %2078 = vmatpush.msra.mxu0 0.0
    %2079 = vmatpush.msra.mxu0 0.0
    %2080 = vmatpush.msra.mxu0 0.0
    %2081 = vmatpush.msra.mxu0 0.0
    %2082 = vmatpush.msra.mxu0 0.0
    %2083 = vmatpush.msra.mxu0 %v2036
    %2084 = vmatpush.msra.mxu0 %v2035
    %2085 = vmatpush.msra.mxu0 %v2034
    %2086 = vmatpush.msra.mxu0 %v2033
    %2087 = vmatmul.f32.gmra.mxu0 %v2063
    %v2088 = vpop.f32.mrf.mxu0
    %v2089 = vadd.f32 0.0, %v2088
    %2090 = vmatmul.f32.gmra.mxu0 %v2066
    %v2091 = vpop.f32.mrf.mxu0
    %v2092 = vadd.f32 0.0, %v2091
    %2093 = vmatmul.f32.gmra.mxu0 %v2069
    %v2094 = vpop.f32.mrf.mxu0
    %v2095 = vadd.f32 0.0, %v2094
    %2096 = vdwg.mxu0
    %v2097 = vmul.f32 %v2089, %v2037
    %v2098 = vmul.f32 %v2092, %v2038
    %v2099 = vmul.f32 %v2095, %v2039
    %v2100 = vmul.f32 %v2089, %v2040
    %v2101 = vmul.f32 %v2092, %v2041
    %v2102 = vmul.f32 %v2095, %v2042
    %v2103 = vmul.f32 %v2089, %v2043
    %v2104 = vmul.f32 %v2092, %v2044
    %v2105 = vmul.f32 %v2095, %v2045
    %v2106 = vmul.f32 %v2089, %v2046
    %v2107 = vmul.f32 %v2092, %v2047
    %v2108 = vmul.f32 %v2095, %v2048
    %v2109 = vsel %vm510, %v2097, 0.0
    %2110 = vadd.xlane.f32.xlu0 %v2109
    %v2111 = vpop.xlane.xlu0 %2110
    %v2112 = vsel %vm510, %v2098, 0.0
    %2113 = vadd.xlane.f32.xlu0 %v2112
    %v2114 = vpop.xlane.xlu0 %2113
    %v2115 = vsel %vm510, %v2099, 0.0
    %2116 = vadd.xlane.f32.xlu0 %v2115
    %v2117 = vpop.xlane.xlu0 %2116
    %v2118 = vsel %vm510, %v2100, 0.0
    %2119 = vadd.xlane.f32.xlu0 %v2118
    %v2120 = vpop.xlane.xlu0 %2119
    %v2121 = vsel %vm510, %v2101, 0.0
    %2122 = vadd.xlane.f32.xlu0 %v2121
    %v2123 = vpop.xlane.xlu0 %2122
    %v2124 = vsel %vm510, %v2102, 0.0
    %2125 = vadd.xlane.f32.xlu0 %v2124
    %v2126 = vpop.xlane.xlu0 %2125
    %v2127 = vsel %vm510, %v2103, 0.0
    %2128 = vadd.xlane.f32.xlu0 %v2127
    %v2129 = vpop.xlane.xlu0 %2128
    %v2130 = vsel %vm510, %v2104, 0.0
    %2131 = vadd.xlane.f32.xlu0 %v2130
    %v2132 = vpop.xlane.xlu0 %2131
    %v2133 = vsel %vm510, %v2105, 0.0
    %2134 = vadd.xlane.f32.xlu0 %v2133
    %v2135 = vpop.xlane.xlu0 %2134
    %v2136 = vsel %vm510, %v2106, 0.0
    %2137 = vadd.xlane.f32.xlu0 %v2136
    %v2138 = vpop.xlane.xlu0 %2137
    %v2139 = vsel %vm510, %v2107, 0.0
    %2140 = vadd.xlane.f32.xlu0 %v2139
    %v2141 = vpop.xlane.xlu0 %2140
    %v2142 = vsel %vm510, %v2108, 0.0
    %2143 = vadd.xlane.f32.xlu0 %v2142
    %v2144 = vpop.xlane.xlu0 %2143
    %v2146 = vsel %vm510, %v2049, 0
    %v2149 = vsel %vm510, %v2050, 0
    %v2152 = vsel %vm510, %v2051, 0
    %v2155 = vsel %vm510, %v2052, 0
    %v2158 = vsel %vm510, %v2053, 0
    %v2161 = vsel %vm510, %v2054, 0
    %v2164 = vsel %vm510, %v2055, 0
    %v2167 = vsel %vm510, %v2056, 0
    %v2170 = vsel %vm510, %v2057, 0
    %v2173 = vsel %vm510, %v2058, 0
    %v2176 = vsel %vm510, %v2059, 0
    %v2179 = vsel %vm510, %v2060, 0
    %v2182 = vsel %vm510, %v2089, 0
    %v2185 = vsel %vm510, %v2092, 0
    %v2188 = vsel %vm510, %v2095, 0
    %2190 = vmatpush.xpose.msra.mxu0 0.0
    %2191 = vmatpush.xpose.msra.mxu0 0.0
    %2192 = vmatpush.xpose.msra.mxu0 0.0
    %2193 = vmatpush.xpose.msra.mxu0 0.0
    %2194 = vmatpush.xpose.msra.mxu0 0.0
    %2195 = vmatpush.xpose.msra.mxu0 0.0
    %2196 = vmatpush.xpose.msra.mxu0 0.0
    %2197 = vmatpush.xpose.msra.mxu0 0.0
    %2198 = vmatpush.xpose.msra.mxu0 0.0
    %2199 = vmatpush.xpose.msra.mxu0 0.0
    %2200 = vmatpush.xpose.msra.mxu0 0.0
    %2201 = vmatpush.xpose.msra.mxu0 0.0
    %2202 = vmatpush.xpose.msra.mxu0 0.0
    %2203 = vmatpush.xpose.msra.mxu0 %v2188
    %2204 = vmatpush.xpose.msra.mxu0 %v2185
    %2205 = vmatpush.xpose.msra.mxu0 %v2182
    %2206 = vmatmul.f32.gmra.mxu0 %v2146
    %v2207 = vpop.f32.mrf.mxu0
    %v2208 = vadd.f32 0.0, %v2207
    %2209 = vmatmul.f32.gmra.mxu0 %v2149
    %v2210 = vpop.f32.mrf.mxu0
    %v2211 = vadd.f32 0.0, %v2210
    %2212 = vmatmul.f32.gmra.mxu0 %v2152
    %v2213 = vpop.f32.mrf.mxu0
    %v2214 = vadd.f32 0.0, %v2213
    %2215 = vmatmul.f32.gmra.mxu0 %v2155
    %v2216 = vpop.f32.mrf.mxu0
    %v2217 = vadd.f32 0.0, %v2216
    %2218 = vmatmul.f32.gmra.mxu0 %v2158
    %v2219 = vpop.f32.mrf.mxu0
    %v2220 = vadd.f32 0.0, %v2219
    %2221 = vmatmul.f32.gmra.mxu0 %v2161
    %v2222 = vpop.f32.mrf.mxu0
    %v2223 = vadd.f32 0.0, %v2222
    %2224 = vmatmul.f32.gmra.mxu0 %v2164
    %v2225 = vpop.f32.mrf.mxu0
    %v2226 = vadd.f32 0.0, %v2225
    %2227 = vmatmul.f32.gmra.mxu0 %v2167
    %v2228 = vpop.f32.mrf.mxu0
    %v2229 = vadd.f32 0.0, %v2228
    %2230 = vmatmul.f32.gmra.mxu0 %v2170
    %v2231 = vpop.f32.mrf.mxu0
    %v2232 = vadd.f32 0.0, %v2231
    %2233 = vmatmul.f32.gmra.mxu0 %v2173
    %v2234 = vpop.f32.mrf.mxu0
    %v2235 = vadd.f32 0.0, %v2234
    %2236 = vmatmul.f32.gmra.mxu0 %v2176
    %v2237 = vpop.f32.mrf.mxu0
    %v2238 = vadd.f32 0.0, %v2237
    %2239 = vmatmul.f32.gmra.mxu0 %v2179
    %v2240 = vpop.f32.mrf.mxu0
    %v2241 = vadd.f32 0.0, %v2240
    %2242 = vdwg.mxu0
    %v2243 = vadd.f32 %v2111, %v2208
    %v2244 = vadd.f32 %v2114, %v2211
    %v2245 = vadd.f32 %v2117, %v2214
    %v2246 = vadd.f32 %v2120, %v2217
    %v2247 = vadd.f32 %v2123, %v2220
    %v2248 = vadd.f32 %v2126, %v2223
    %v2249 = vadd.f32 %v2129, %v2226
    %v2250 = vadd.f32 %v2132, %v2229
    %v2251 = vadd.f32 %v2135, %v2232
    %v2252 = vadd.f32 %v2138, %v2235
    %v2253 = vadd.f32 %v2141, %v2238
    %v2254 = vadd.f32 %v2144, %v2241
    %vm2255 = vcmp.ge.f32.partialorder %v2243, 0.0
    %vm2256 = vcmp.ge.f32.partialorder %v2244, 0.0
    %vm2257 = vcmp.ge.f32.partialorder %v2245, 0.0
    %vm2258 = vcmp.ge.f32.partialorder %v2246, 0.0
    %vm2259 = vcmp.ge.f32.partialorder %v2247, 0.0
    %vm2260 = vcmp.ge.f32.partialorder %v2248, 0.0
    %vm2261 = vcmp.ge.f32.partialorder %v2249, 0.0
    %vm2262 = vcmp.ge.f32.partialorder %v2250, 0.0
    %vm2263 = vcmp.ge.f32.partialorder %v2251, 0.0
    %vm2264 = vcmp.ge.f32.partialorder %v2252, 0.0
    %vm2265 = vcmp.ge.f32.partialorder %v2253, 0.0
    %vm2266 = vcmp.ge.f32.partialorder %v2254, 0.0
    %v2267 = vmul.f32 %v2243, 0.2
    %v2268 = vmul.f32 %v2244, 0.2
    %v2269 = vmul.f32 %v2245, 0.2
    %v2270 = vmul.f32 %v2246, 0.2
    %v2271 = vmul.f32 %v2247, 0.2
    %v2272 = vmul.f32 %v2248, 0.2
    %v2273 = vmul.f32 %v2249, 0.2
    %v2274 = vmul.f32 %v2250, 0.2
    %v2275 = vmul.f32 %v2251, 0.2
    %v2276 = vmul.f32 %v2252, 0.2
    %v2277 = vmul.f32 %v2253, 0.2
    %v2278 = vmul.f32 %v2254, 0.2
    %v2279 = vsel %vm2255, %v2243, %v2267
    %v2280 = vsel %vm2256, %v2244, %v2268
    %v2281 = vsel %vm2257, %v2245, %v2269
    %v2282 = vsel %vm2258, %v2246, %v2270
    %v2283 = vsel %vm2259, %v2247, %v2271
    %v2284 = vsel %vm2260, %v2248, %v2272
    %v2285 = vsel %vm2261, %v2249, %v2273
    %v2286 = vsel %vm2262, %v2250, %v2274
    %v2287 = vsel %vm2263, %v2251, %v2275
    %v2288 = vsel %vm2264, %v2252, %v2276
    %v2289 = vsel %vm2265, %v2253, %v2277
    %v2290 = vsel %vm2266, %v2254, %v2278
    %v2291 = vadd.f32 %v2279, %v675
    %v2292 = vadd.f32 %v2280, %v676
    %v2293 = vadd.f32 %v2281, %v677
    %v2294 = vadd.f32 %v2282, %v678
    %v2295 = vadd.f32 %v2283, %v679
    %v2296 = vadd.f32 %v2284, %v680
    %v2297 = vadd.f32 %v2285, %v681
    %v2298 = vadd.f32 %v2286, %v682
    %v2299 = vadd.f32 %v2287, %v683
    %v2300 = vadd.f32 %v2288, %v684
    %v2301 = vadd.f32 %v2289, %v685
    %v2302 = vadd.f32 %v2290, %v686
    %v2303 = vsel %vm960, %v2291, -inf
    %2304 = vmax.xlane.f32.xlu0 %v2303
    %v2305 = vpop.xlane.xlu0 %2304
    %v2306 = vsel %vm960, %v2292, -inf
    %2307 = vmax.xlane.f32.xlu0 %v2306
    %v2308 = vpop.xlane.xlu0 %2307
    %v2309 = vsel %vm960, %v2293, -inf
    %2310 = vmax.xlane.f32.xlu0 %v2309
    %v2311 = vpop.xlane.xlu0 %2310
    %v2312 = vsel %vm960, %v2294, -inf
    %2313 = vmax.xlane.f32.xlu0 %v2312
    %v2314 = vpop.xlane.xlu0 %2313
    %v2315 = vsel %vm960, %v2295, -inf
    %2316 = vmax.xlane.f32.xlu0 %v2315
    %v2317 = vpop.xlane.xlu0 %2316
    %v2318 = vsel %vm960, %v2296, -inf
    %2319 = vmax.xlane.f32.xlu0 %v2318
    %v2320 = vpop.xlane.xlu0 %2319
    %v2321 = vsel %vm960, %v2297, -inf
    %2322 = vmax.xlane.f32.xlu0 %v2321
    %v2323 = vpop.xlane.xlu0 %2322
    %v2324 = vsel %vm960, %v2298, -inf
    %2325 = vmax.xlane.f32.xlu0 %v2324
    %v2326 = vpop.xlane.xlu0 %2325
    %v2327 = vsel %vm960, %v2299, -inf
    %2328 = vmax.xlane.f32.xlu0 %v2327
    %v2329 = vpop.xlane.xlu0 %2328
    %v2330 = vsel %vm960, %v2300, -inf
    %2331 = vmax.xlane.f32.xlu0 %v2330
    %v2332 = vpop.xlane.xlu0 %2331
    %v2333 = vsel %vm960, %v2301, -inf
    %2334 = vmax.xlane.f32.xlu0 %v2333
    %v2335 = vpop.xlane.xlu0 %2334
    %v2336 = vsel %vm960, %v2302, -inf
    %2337 = vmax.xlane.f32.xlu0 %v2336
    %v2338 = vpop.xlane.xlu0 %2337
    %v2339 = vsub.f32 %v2291, %v2305
    %v2340 = vsub.f32 %v2292, %v2308
    %v2341 = vsub.f32 %v2293, %v2311
    %v2342 = vsub.f32 %v2294, %v2314
    %v2343 = vsub.f32 %v2295, %v2317
    %v2344 = vsub.f32 %v2296, %v2320
    %v2345 = vsub.f32 %v2297, %v2323
    %v2346 = vsub.f32 %v2298, %v2326
    %v2347 = vsub.f32 %v2299, %v2329
    %v2348 = vsub.f32 %v2300, %v2332
    %v2349 = vsub.f32 %v2301, %v2335
    %v2350 = vsub.f32 %v2302, %v2338
    %v2351 = vmul.f32 %v2339, 1.442695
    %v2352 = vpow.pop %v2351
    %v2353 = vmul.f32 %v2340, 1.442695
    %v2354 = vpow.pop %v2353
    %v2355 = vmul.f32 %v2341, 1.442695
    %v2356 = vpow.pop %v2355
    %v2357 = vmul.f32 %v2342, 1.442695
    %v2358 = vpow.pop %v2357
    %v2359 = vmul.f32 %v2343, 1.442695
    %v2360 = vpow.pop %v2359
    %v2361 = vmul.f32 %v2344, 1.442695
    %v2362 = vpow.pop %v2361
    %v2363 = vmul.f32 %v2345, 1.442695
    %v2364 = vpow.pop %v2363
    %v2365 = vmul.f32 %v2346, 1.442695
    %v2366 = vpow.pop %v2365
    %v2367 = vmul.f32 %v2347, 1.442695
    %v2368 = vpow.pop %v2367
    %v2369 = vmul.f32 %v2348, 1.442695
    %v2370 = vpow.pop %v2369
    %v2371 = vmul.f32 %v2349, 1.442695
    %v2372 = vpow.pop %v2371
    %v2373 = vmul.f32 %v2350, 1.442695
    %v2374 = vpow.pop %v2373
    %v2375 = vsel %vm960, %v2352, 0.0
    %2376 = vadd.xlane.f32.xlu0 %v2375
    %v2377 = vpop.xlane.xlu0 %2376
    %v2378 = vsel %vm960, %v2354, 0.0
    %2379 = vadd.xlane.f32.xlu0 %v2378
    %v2380 = vpop.xlane.xlu0 %2379
    %v2381 = vsel %vm960, %v2356, 0.0
    %2382 = vadd.xlane.f32.xlu0 %v2381
    %v2383 = vpop.xlane.xlu0 %2382
    %v2384 = vsel %vm960, %v2358, 0.0
    %2385 = vadd.xlane.f32.xlu0 %v2384
    %v2386 = vpop.xlane.xlu0 %2385
    %v2387 = vsel %vm960, %v2360, 0.0
    %2388 = vadd.xlane.f32.xlu0 %v2387
    %v2389 = vpop.xlane.xlu0 %2388
    %v2390 = vsel %vm960, %v2362, 0.0
    %2391 = vadd.xlane.f32.xlu0 %v2390
    %v2392 = vpop.xlane.xlu0 %2391
    %v2393 = vsel %vm960, %v2364, 0.0
    %2394 = vadd.xlane.f32.xlu0 %v2393
    %v2395 = vpop.xlane.xlu0 %2394
    %v2396 = vsel %vm960, %v2366, 0.0
    %2397 = vadd.xlane.f32.xlu0 %v2396
    %v2398 = vpop.xlane.xlu0 %2397
    %v2399 = vsel %vm960, %v2368, 0.0
    %2400 = vadd.xlane.f32.xlu0 %v2399
    %v2401 = vpop.xlane.xlu0 %2400
    %v2402 = vsel %vm960, %v2370, 0.0
    %2403 = vadd.xlane.f32.xlu0 %v2402
    %v2404 = vpop.xlane.xlu0 %2403
    %v2405 = vsel %vm960, %v2372, 0.0
    %2406 = vadd.xlane.f32.xlu0 %v2405
    %v2407 = vpop.xlane.xlu0 %2406
    %v2408 = vsel %vm960, %v2374, 0.0
    %2409 = vadd.xlane.f32.xlu0 %v2408
    %v2410 = vpop.xlane.xlu0 %2409
    %v2411 = vrcp.pop %v2377
    %v2412 = vmul.f32 %v2377, %v2411
    %v2413 = vsub.f32 1.0, %v2412
    %v2414 = vmul.f32 %v2411, %v2413
    %v2415 = vadd.f32 %v2411, %v2414
    %vm2416 = vweird.f32 %v2377
    %vm2417 = vweird.f32 %v2411
    %vm2418 = vmor %vm2416, %vm2417
    %v2419 = vsel %vm2418, %v2411, %v2415
    %v2420 = vand.u32 2147483647, %v2377
    %vm2421 = vcmp.eq.f32.partialorder %v2420, 8.507059e+37
    %v2422 = vand.u32 %v2377, 2147483648
    %v2423 = vor.u32 1.1754944e-38, %v2422
    %v2424 = vsel %vm2421, %v2423, %v2419
    %v2425 = vmul.f32 %v2352, %v2424
    %v2426 = vrcp.pop %v2380
    %v2427 = vmul.f32 %v2380, %v2426
    %v2428 = vsub.f32 1.0, %v2427
    %v2429 = vmul.f32 %v2426, %v2428
    %v2430 = vadd.f32 %v2426, %v2429
    %vm2431 = vweird.f32 %v2380
    %vm2432 = vweird.f32 %v2426
    %vm2433 = vmor %vm2431, %vm2432
    %v2434 = vsel %vm2433, %v2426, %v2430
    %v2435 = vand.u32 2147483647, %v2380
    %vm2436 = vcmp.eq.f32.partialorder %v2435, 8.507059e+37
    %v2437 = vand.u32 %v2380, 2147483648
    %v2438 = vor.u32 1.1754944e-38, %v2437
    %v2439 = vsel %vm2436, %v2438, %v2434
    %v2440 = vmul.f32 %v2354, %v2439
    %v2441 = vrcp.pop %v2383
    %v2442 = vmul.f32 %v2383, %v2441
    %v2443 = vsub.f32 1.0, %v2442
    %v2444 = vmul.f32 %v2441, %v2443
    %v2445 = vadd.f32 %v2441, %v2444
    %vm2446 = vweird.f32 %v2383
    %vm2447 = vweird.f32 %v2441
    %vm2448 = vmor %vm2446, %vm2447
    %v2449 = vsel %vm2448, %v2441, %v2445
    %v2450 = vand.u32 2147483647, %v2383
    %vm2451 = vcmp.eq.f32.partialorder %v2450, 8.507059e+37
    %v2452 = vand.u32 %v2383, 2147483648
    %v2453 = vor.u32 1.1754944e-38, %v2452
    %v2454 = vsel %vm2451, %v2453, %v2449
    %v2455 = vmul.f32 %v2356, %v2454
    %v2456 = vrcp.pop %v2386
    %v2457 = vmul.f32 %v2386, %v2456
    %v2458 = vsub.f32 1.0, %v2457
    %v2459 = vmul.f32 %v2456, %v2458
    %v2460 = vadd.f32 %v2456, %v2459
    %vm2461 = vweird.f32 %v2386
    %vm2462 = vweird.f32 %v2456
    %vm2463 = vmor %vm2461, %vm2462
    %v2464 = vsel %vm2463, %v2456, %v2460
    %v2465 = vand.u32 2147483647, %v2386
    %vm2466 = vcmp.eq.f32.partialorder %v2465, 8.507059e+37
    %v2467 = vand.u32 %v2386, 2147483648
    %v2468 = vor.u32 1.1754944e-38, %v2467
    %v2469 = vsel %vm2466, %v2468, %v2464
    %v2470 = vmul.f32 %v2358, %v2469
    %v2471 = vrcp.pop %v2389
    %v2472 = vmul.f32 %v2389, %v2471
    %v2473 = vsub.f32 1.0, %v2472
    %v2474 = vmul.f32 %v2471, %v2473
    %v2475 = vadd.f32 %v2471, %v2474
    %vm2476 = vweird.f32 %v2389
    %vm2477 = vweird.f32 %v2471
    %vm2478 = vmor %vm2476, %vm2477
    %v2479 = vsel %vm2478, %v2471, %v2475
    %v2480 = vand.u32 2147483647, %v2389
    %vm2481 = vcmp.eq.f32.partialorder %v2480, 8.507059e+37
    %v2482 = vand.u32 %v2389, 2147483648
    %v2483 = vor.u32 1.1754944e-38, %v2482
    %v2484 = vsel %vm2481, %v2483, %v2479
    %v2485 = vmul.f32 %v2360, %v2484
    %v2486 = vrcp.pop %v2392
    %v2487 = vmul.f32 %v2392, %v2486
    %v2488 = vsub.f32 1.0, %v2487
    %v2489 = vmul.f32 %v2486, %v2488
    %v2490 = vadd.f32 %v2486, %v2489
    %vm2491 = vweird.f32 %v2392
    %vm2492 = vweird.f32 %v2486
    %vm2493 = vmor %vm2491, %vm2492
    %v2494 = vsel %vm2493, %v2486, %v2490
    %v2495 = vand.u32 2147483647, %v2392
    %vm2496 = vcmp.eq.f32.partialorder %v2495, 8.507059e+37
    %v2497 = vand.u32 %v2392, 2147483648
    %v2498 = vor.u32 1.1754944e-38, %v2497
    %v2499 = vsel %vm2496, %v2498, %v2494
    %v2500 = vmul.f32 %v2362, %v2499
    %v2501 = vrcp.pop %v2395
    %v2502 = vmul.f32 %v2395, %v2501
    %v2503 = vsub.f32 1.0, %v2502
    %v2504 = vmul.f32 %v2501, %v2503
    %v2505 = vadd.f32 %v2501, %v2504
    %vm2506 = vweird.f32 %v2395
    %vm2507 = vweird.f32 %v2501
    %vm2508 = vmor %vm2506, %vm2507
    %v2509 = vsel %vm2508, %v2501, %v2505
    %v2510 = vand.u32 2147483647, %v2395
    %vm2511 = vcmp.eq.f32.partialorder %v2510, 8.507059e+37
    %v2512 = vand.u32 %v2395, 2147483648
    %v2513 = vor.u32 1.1754944e-38, %v2512
    %v2514 = vsel %vm2511, %v2513, %v2509
    %v2515 = vmul.f32 %v2364, %v2514
    %v2516 = vrcp.pop %v2398
    %v2517 = vmul.f32 %v2398, %v2516
    %v2518 = vsub.f32 1.0, %v2517
    %v2519 = vmul.f32 %v2516, %v2518
    %v2520 = vadd.f32 %v2516, %v2519
    %vm2521 = vweird.f32 %v2398
    %vm2522 = vweird.f32 %v2516
    %vm2523 = vmor %vm2521, %vm2522
    %v2524 = vsel %vm2523, %v2516, %v2520
    %v2525 = vand.u32 2147483647, %v2398
    %vm2526 = vcmp.eq.f32.partialorder %v2525, 8.507059e+37
    %v2527 = vand.u32 %v2398, 2147483648
    %v2528 = vor.u32 1.1754944e-38, %v2527
    %v2529 = vsel %vm2526, %v2528, %v2524
    %v2530 = vmul.f32 %v2366, %v2529
    %v2531 = vrcp.pop %v2401
    %v2532 = vmul.f32 %v2401, %v2531
    %v2533 = vsub.f32 1.0, %v2532
    %v2534 = vmul.f32 %v2531, %v2533
    %v2535 = vadd.f32 %v2531, %v2534
    %vm2536 = vweird.f32 %v2401
    %vm2537 = vweird.f32 %v2531
    %vm2538 = vmor %vm2536, %vm2537
    %v2539 = vsel %vm2538, %v2531, %v2535
    %v2540 = vand.u32 2147483647, %v2401
    %vm2541 = vcmp.eq.f32.partialorder %v2540, 8.507059e+37
    %v2542 = vand.u32 %v2401, 2147483648
    %v2543 = vor.u32 1.1754944e-38, %v2542
    %v2544 = vsel %vm2541, %v2543, %v2539
    %v2545 = vmul.f32 %v2368, %v2544
    %v2546 = vrcp.pop %v2404
    %v2547 = vmul.f32 %v2404, %v2546
    %v2548 = vsub.f32 1.0, %v2547
    %v2549 = vmul.f32 %v2546, %v2548
    %v2550 = vadd.f32 %v2546, %v2549
    %vm2551 = vweird.f32 %v2404
    %vm2552 = vweird.f32 %v2546
    %vm2553 = vmor %vm2551, %vm2552
    %v2554 = vsel %vm2553, %v2546, %v2550
    %v2555 = vand.u32 2147483647, %v2404
    %vm2556 = vcmp.eq.f32.partialorder %v2555, 8.507059e+37
    %v2557 = vand.u32 %v2404, 2147483648
    %v2558 = vor.u32 1.1754944e-38, %v2557
    %v2559 = vsel %vm2556, %v2558, %v2554
    %v2560 = vmul.f32 %v2370, %v2559
    %v2561 = vrcp.pop %v2407
    %v2562 = vmul.f32 %v2407, %v2561
    %v2563 = vsub.f32 1.0, %v2562
    %v2564 = vmul.f32 %v2561, %v2563
    %v2565 = vadd.f32 %v2561, %v2564
    %vm2566 = vweird.f32 %v2407
    %vm2567 = vweird.f32 %v2561
    %vm2568 = vmor %vm2566, %vm2567
    %v2569 = vsel %vm2568, %v2561, %v2565
    %v2570 = vand.u32 2147483647, %v2407
    %vm2571 = vcmp.eq.f32.partialorder %v2570, 8.507059e+37
    %v2572 = vand.u32 %v2407, 2147483648
    %v2573 = vor.u32 1.1754944e-38, %v2572
    %v2574 = vsel %vm2571, %v2573, %v2569
    %v2575 = vmul.f32 %v2372, %v2574
    %v2576 = vrcp.pop %v2410
    %v2577 = vmul.f32 %v2410, %v2576
    %v2578 = vsub.f32 1.0, %v2577
    %v2579 = vmul.f32 %v2576, %v2578
    %v2580 = vadd.f32 %v2576, %v2579
    %vm2581 = vweird.f32 %v2410
    %vm2582 = vweird.f32 %v2576
    %vm2583 = vmor %vm2581, %vm2582
    %v2584 = vsel %vm2583, %v2576, %v2580
    %v2585 = vand.u32 2147483647, %v2410
    %vm2586 = vcmp.eq.f32.partialorder %v2585, 8.507059e+37
    %v2587 = vand.u32 %v2410, 2147483648
    %v2588 = vor.u32 1.1754944e-38, %v2587
    %v2589 = vsel %vm2586, %v2588, %v2584
    %v2590 = vmul.f32 %v2374, %v2589
    %v2592 = vsel %vm960, %v2425, 0
    %v2595 = vsel %vm960, %v2440, 0
    %v2598 = vsel %vm960, %v2455, 0
    %v2601 = vsel %vm960, %v2470, 0
    %v2604 = vsel %vm960, %v2485, 0
    %v2607 = vsel %vm960, %v2500, 0
    %v2610 = vsel %vm960, %v2515, 0
    %v2613 = vsel %vm960, %v2530, 0
    %v2616 = vsel %vm960, %v2545, 0
    %v2619 = vsel %vm960, %v2560, 0
    %v2622 = vsel %vm960, %v2575, 0
    %v2625 = vsel %vm960, %v2590, 0
    %2627 = vmatpush.msra.mxu0 0.0
    %2628 = vmatpush.msra.mxu0 0.0
    %2629 = vmatpush.msra.mxu0 0.0
    %2630 = vmatpush.msra.mxu0 0.0
    %2631 = vmatpush.msra.mxu0 0.0
    %2632 = vmatpush.msra.mxu0 0.0
    %2633 = vmatpush.msra.mxu0 0.0
    %2634 = vmatpush.msra.mxu0 0.0
    %2635 = vmatpush.msra.mxu0 0.0
    %2636 = vmatpush.msra.mxu0 0.0
    %2637 = vmatpush.msra.mxu0 0.0
    %2638 = vmatpush.msra.mxu0 0.0
    %2639 = vmatpush.msra.mxu0 0.0
    %2640 = vmatpush.msra.mxu0 %v2095
    %2641 = vmatpush.msra.mxu0 %v2092
    %2642 = vmatpush.msra.mxu0 %v2089
    %2643 = vmatmul.f32.gmra.mxu0 %v2592
    %v2644 = vpop.f32.mrf.mxu0
    %v2645 = vadd.f32 0.0, %v2644
    %2646 = vmatmul.f32.gmra.mxu0 %v2595
    %v2647 = vpop.f32.mrf.mxu0
    %v2648 = vadd.f32 0.0, %v2647
    %2649 = vmatmul.f32.gmra.mxu0 %v2598
    %v2650 = vpop.f32.mrf.mxu0
    %v2651 = vadd.f32 0.0, %v2650
    %2652 = vmatmul.f32.gmra.mxu0 %v2601
    %v2653 = vpop.f32.mrf.mxu0
    %v2654 = vadd.f32 0.0, %v2653
    %2655 = vmatmul.f32.gmra.mxu0 %v2604
    %v2656 = vpop.f32.mrf.mxu0
    %v2657 = vadd.f32 0.0, %v2656
    %2658 = vmatmul.f32.gmra.mxu0 %v2607
    %v2659 = vpop.f32.mrf.mxu0
    %v2660 = vadd.f32 0.0, %v2659
    %2661 = vmatmul.f32.gmra.mxu0 %v2610
    %v2662 = vpop.f32.mrf.mxu0
    %v2663 = vadd.f32 0.0, %v2662
    %2664 = vmatmul.f32.gmra.mxu0 %v2613
    %v2665 = vpop.f32.mrf.mxu0
    %v2666 = vadd.f32 0.0, %v2665
    %2667 = vmatmul.f32.gmra.mxu0 %v2616
    %v2668 = vpop.f32.mrf.mxu0
    %v2669 = vadd.f32 0.0, %v2668
    %2670 = vmatmul.f32.gmra.mxu0 %v2619
    %v2671 = vpop.f32.mrf.mxu0
    %v2672 = vadd.f32 0.0, %v2671
    %2673 = vmatmul.f32.gmra.mxu0 %v2622
    %v2674 = vpop.f32.mrf.mxu0
    %v2675 = vadd.f32 0.0, %v2674
    %2676 = vmatmul.f32.gmra.mxu0 %v2625
    %v2677 = vpop.f32.mrf.mxu0
    %v2678 = vadd.f32 0.0, %v2677
    %2679 = vdwg.mxu0
    %v2680 = vsel %vm406, %v2645, %v2654
    %v2681 = vsel %vm406, %v2648, %v2657
    %v2682 = vsel %vm406, %v2651, %v2660
    %v2683 = vsel %vm211, %v2680, %v2663
    %v2684 = vsel %vm211, %v2681, %v2666
    %v2685 = vsel %vm211, %v2682, %v2669
    %v2686 = vsel %vm960, %v2683, %v2672
    %v2687 = vsel %vm960, %v2684, %v2675
    %v2688 = vsel %vm960, %v2685, %v2678
    %v2690 = vperm.slane %v2061, 0
    %v2692 = vadd.f32 %v2686, %v2690
    %v2693 = vadd.f32 %v2687, %v2690
    %v2694 = vadd.f32 %v2688, %v2690
    %vm2695 = vcmp.ge.f32.partialorder %v2692, 0.0
    %vm2696 = vcmp.ge.f32.partialorder %v2693, 0.0
    %vm2697 = vcmp.ge.f32.partialorder %v2694, 0.0
    %v2698 = vmul.f32 %v2692, 0.01
    %v2699 = vmul.f32 %v2693, 0.01
    %v2700 = vmul.f32 %v2694, 0.01
    %v2701 = vsel %vm2695, %v2692, %v2698
    %v2702 = vsel %vm2696, %v2693, %v2699
    %v2703 = vsel %vm2697, %v2694, %v2700
    %v2704 = vld [vmem:[%s73] sm:$0xff]
    %v2705 = vld [vmem:[%s73 + $0x8] sm:$0xff]
    %v2706 = vld [vmem:[%s73 + $0x10] sm:$0xff]
    %v2707 = vld [vmem:[%s73 + $0x18] sm:$0xff]
    %v2708 = vld [vmem:[%s75] sm:$0xff]
    %v2709 = vld [vmem:[%s75 + $0x8] sm:$0xff]
    %v2710 = vld [vmem:[%s75 + $0x10] sm:$0xff]
    %v2711 = vld [vmem:[%s75 + $0x18] sm:$0xff]
    %v2712 = vld [vmem:[%s75 + $0x20] sm:$0xff]
    %v2713 = vld [vmem:[%s75 + $0x28] sm:$0xff]
    %v2714 = vld [vmem:[%s75 + $0x30] sm:$0xff]
    %v2715 = vld [vmem:[%s75 + $0x38] sm:$0xff]
    %v2716 = vld [vmem:[%s75 + $0x40] sm:$0xff]
    %v2717 = vld [vmem:[%s75 + $0x48] sm:$0xff]
    %v2718 = vld [vmem:[%s75 + $0x50] sm:$0xff]
    %v2719 = vld [vmem:[%s75 + $0x58] sm:$0xff]
    %v2720 = vld [vmem:[%s77] sm:$0xff]
    %v2721 = vld [vmem:[%s77 + $0x8] sm:$0xff]
    %v2722 = vld [vmem:[%s77 + $0x10] sm:$0xff]
    %v2723 = vld [vmem:[%s77 + $0x18] sm:$0xff]
    %v2724 = vld [vmem:[%s77 + $0x20] sm:$0xff]
    %v2725 = vld [vmem:[%s77 + $0x28] sm:$0xff]
    %v2726 = vld [vmem:[%s77 + $0x30] sm:$0xff]
    %v2727 = vld [vmem:[%s77 + $0x38] sm:$0xff]
    %v2728 = vld [vmem:[%s77 + $0x40] sm:$0xff]
    %v2729 = vld [vmem:[%s77 + $0x48] sm:$0xff]
    %v2730 = vld [vmem:[%s77 + $0x50] sm:$0xff]
    %v2731 = vld [vmem:[%s77 + $0x58] sm:$0xff]
    %v2732 = vld [vmem:[%s79] sm:$0x1]
    %v2734 = vsel %vm510, %v2701, 0
    %v2737 = vsel %vm510, %v2702, 0
    %v2740 = vsel %vm510, %v2703, 0
    %2742 = vmatpush.msra.mxu0 0.0
    %2743 = vmatpush.msra.mxu0 0.0
    %2744 = vmatpush.msra.mxu0 0.0
    %2745 = vmatpush.msra.mxu0 0.0
    %2746 = vmatpush.msra.mxu0 0.0
    %2747 = vmatpush.msra.mxu0 0.0
    %2748 = vmatpush.msra.mxu0 0.0
    %2749 = vmatpush.msra.mxu0 0.0
    %2750 = vmatpush.msra.mxu0 0.0
    %2751 = vmatpush.msra.mxu0 0.0
    %2752 = vmatpush.msra.mxu0 0.0
    %2753 = vmatpush.msra.mxu0 0.0
    %2754 = vmatpush.msra.mxu0 %v2707
    %2755 = vmatpush.msra.mxu0 %v2706
    %2756 = vmatpush.msra.mxu0 %v2705
    %2757 = vmatpush.msra.mxu0 %v2704
    %2758 = vmatmul.f32.gmra.mxu0 %v2734
    %v2759 = vpop.f32.mrf.mxu0
    %v2760 = vadd.f32 0.0, %v2759
    %2761 = vmatmul.f32.gmra.mxu0 %v2737
    %v2762 = vpop.f32.mrf.mxu0
    %v2763 = vadd.f32 0.0, %v2762
    %2764 = vmatmul.f32.gmra.mxu0 %v2740
    %v2765 = vpop.f32.mrf.mxu0
    %v2766 = vadd.f32 0.0, %v2765
    %2767 = vdwg.mxu0
    %v2768 = vmul.f32 %v2760, %v2708
    %v2769 = vmul.f32 %v2763, %v2709
    %v2770 = vmul.f32 %v2766, %v2710
    %v2771 = vmul.f32 %v2760, %v2711
    %v2772 = vmul.f32 %v2763, %v2712
    %v2773 = vmul.f32 %v2766, %v2713
    %v2774 = vmul.f32 %v2760, %v2714
    %v2775 = vmul.f32 %v2763, %v2715
    %v2776 = vmul.f32 %v2766, %v2716
    %v2777 = vmul.f32 %v2760, %v2717
    %v2778 = vmul.f32 %v2763, %v2718
    %v2779 = vmul.f32 %v2766, %v2719
    %v2780 = vsel %vm510, %v2768, 0.0
    %2781 = vadd.xlane.f32.xlu0 %v2780
    %v2782 = vpop.xlane.xlu0 %2781
    %v2783 = vsel %vm510, %v2769, 0.0
    %2784 = vadd.xlane.f32.xlu0 %v2783
    %v2785 = vpop.xlane.xlu0 %2784
    %v2786 = vsel %vm510, %v2770, 0.0
    %2787 = vadd.xlane.f32.xlu0 %v2786
    %v2788 = vpop.xlane.xlu0 %2787
    %v2789 = vsel %vm510, %v2771, 0.0
    %2790 = vadd.xlane.f32.xlu0 %v2789
    %v2791 = vpop.xlane.xlu0 %2790
    %v2792 = vsel %vm510, %v2772, 0.0
    %2793 = vadd.xlane.f32.xlu0 %v2792
    %v2794 = vpop.xlane.xlu0 %2793
    %v2795 = vsel %vm510, %v2773, 0.0
    %2796 = vadd.xlane.f32.xlu0 %v2795
    %v2797 = vpop.xlane.xlu0 %2796
    %v2798 = vsel %vm510, %v2774, 0.0
    %2799 = vadd.xlane.f32.xlu0 %v2798
    %v2800 = vpop.xlane.xlu0 %2799
    %v2801 = vsel %vm510, %v2775, 0.0
    %2802 = vadd.xlane.f32.xlu0 %v2801
    %v2803 = vpop.xlane.xlu0 %2802
    %v2804 = vsel %vm510, %v2776, 0.0
    %2805 = vadd.xlane.f32.xlu0 %v2804
    %v2806 = vpop.xlane.xlu0 %2805
    %v2807 = vsel %vm510, %v2777, 0.0
    %2808 = vadd.xlane.f32.xlu0 %v2807
    %v2809 = vpop.xlane.xlu0 %2808
    %v2810 = vsel %vm510, %v2778, 0.0
    %2811 = vadd.xlane.f32.xlu0 %v2810
    %v2812 = vpop.xlane.xlu0 %2811
    %v2813 = vsel %vm510, %v2779, 0.0
    %2814 = vadd.xlane.f32.xlu0 %v2813
    %v2815 = vpop.xlane.xlu0 %2814
    %v2817 = vsel %vm510, %v2720, 0
    %v2820 = vsel %vm510, %v2721, 0
    %v2823 = vsel %vm510, %v2722, 0
    %v2826 = vsel %vm510, %v2723, 0
    %v2829 = vsel %vm510, %v2724, 0
    %v2832 = vsel %vm510, %v2725, 0
    %v2835 = vsel %vm510, %v2726, 0
    %v2838 = vsel %vm510, %v2727, 0
    %v2841 = vsel %vm510, %v2728, 0
    %v2844 = vsel %vm510, %v2729, 0
    %v2847 = vsel %vm510, %v2730, 0
    %v2850 = vsel %vm510, %v2731, 0
    %v2853 = vsel %vm510, %v2760, 0
    %v2856 = vsel %vm510, %v2763, 0
    %v2859 = vsel %vm510, %v2766, 0
    %2861 = vmatpush.xpose.msra.mxu0 0.0
    %2862 = vmatpush.xpose.msra.mxu0 0.0
    %2863 = vmatpush.xpose.msra.mxu0 0.0
    %2864 = vmatpush.xpose.msra.mxu0 0.0
    %2865 = vmatpush.xpose.msra.mxu0 0.0
    %2866 = vmatpush.xpose.msra.mxu0 0.0
    %2867 = vmatpush.xpose.msra.mxu0 0.0
    %2868 = vmatpush.xpose.msra.mxu0 0.0
    %2869 = vmatpush.xpose.msra.mxu0 0.0
    %2870 = vmatpush.xpose.msra.mxu0 0.0
    %2871 = vmatpush.xpose.msra.mxu0 0.0
    %2872 = vmatpush.xpose.msra.mxu0 0.0
    %2873 = vmatpush.xpose.msra.mxu0 0.0
    %2874 = vmatpush.xpose.msra.mxu0 %v2859
    %2875 = vmatpush.xpose.msra.mxu0 %v2856
    %2876 = vmatpush.xpose.msra.mxu0 %v2853
    %2877 = vmatmul.f32.gmra.mxu0 %v2817
    %v2878 = vpop.f32.mrf.mxu0
    %v2879 = vadd.f32 0.0, %v2878
    %2880 = vmatmul.f32.gmra.mxu0 %v2820
    %v2881 = vpop.f32.mrf.mxu0
    %v2882 = vadd.f32 0.0, %v2881
    %2883 = vmatmul.f32.gmra.mxu0 %v2823
    %v2884 = vpop.f32.mrf.mxu0
    %v2885 = vadd.f32 0.0, %v2884
    %2886 = vmatmul.f32.gmra.mxu0 %v2826
    %v2887 = vpop.f32.mrf.mxu0
    %v2888 = vadd.f32 0.0, %v2887
    %2889 = vmatmul.f32.gmra.mxu0 %v2829
    %v2890 = vpop.f32.mrf.mxu0
    %v2891 = vadd.f32 0.0, %v2890
    %2892 = vmatmul.f32.gmra.mxu0 %v2832
    %v2893 = vpop.f32.mrf.mxu0
    %v2894 = vadd.f32 0.0, %v2893
    %2895 = vmatmul.f32.gmra.mxu0 %v2835
    %v2896 = vpop.f32.mrf.mxu0
    %v2897 = vadd.f32 0.0, %v2896
    %2898 = vmatmul.f32.gmra.mxu0 %v2838
    %v2899 = vpop.f32.mrf.mxu0
    %v2900 = vadd.f32 0.0, %v2899
    %2901 = vmatmul.f32.gmra.mxu0 %v2841
    %v2902 = vpop.f32.mrf.mxu0
    %v2903 = vadd.f32 0.0, %v2902
    %2904 = vmatmul.f32.gmra.mxu0 %v2844
    %v2905 = vpop.f32.mrf.mxu0
    %v2906 = vadd.f32 0.0, %v2905
    %2907 = vmatmul.f32.gmra.mxu0 %v2847
    %v2908 = vpop.f32.mrf.mxu0
    %v2909 = vadd.f32 0.0, %v2908
    %2910 = vmatmul.f32.gmra.mxu0 %v2850
    %v2911 = vpop.f32.mrf.mxu0
    %v2912 = vadd.f32 0.0, %v2911
    %2913 = vdwg.mxu0
    %v2914 = vadd.f32 %v2782, %v2879
    %v2915 = vadd.f32 %v2785, %v2882
    %v2916 = vadd.f32 %v2788, %v2885
    %v2917 = vadd.f32 %v2791, %v2888
    %v2918 = vadd.f32 %v2794, %v2891
    %v2919 = vadd.f32 %v2797, %v2894
    %v2920 = vadd.f32 %v2800, %v2897
    %v2921 = vadd.f32 %v2803, %v2900
    %v2922 = vadd.f32 %v2806, %v2903
    %v2923 = vadd.f32 %v2809, %v2906
    %v2924 = vadd.f32 %v2812, %v2909
    %v2925 = vadd.f32 %v2815, %v2912
    %vm2926 = vcmp.ge.f32.partialorder %v2914, 0.0
    %vm2927 = vcmp.ge.f32.partialorder %v2915, 0.0
    %vm2928 = vcmp.ge.f32.partialorder %v2916, 0.0
    %vm2929 = vcmp.ge.f32.partialorder %v2917, 0.0
    %vm2930 = vcmp.ge.f32.partialorder %v2918, 0.0
    %vm2931 = vcmp.ge.f32.partialorder %v2919, 0.0
    %vm2932 = vcmp.ge.f32.partialorder %v2920, 0.0
    %vm2933 = vcmp.ge.f32.partialorder %v2921, 0.0
    %vm2934 = vcmp.ge.f32.partialorder %v2922, 0.0
    %vm2935 = vcmp.ge.f32.partialorder %v2923, 0.0
    %vm2936 = vcmp.ge.f32.partialorder %v2924, 0.0
    %vm2937 = vcmp.ge.f32.partialorder %v2925, 0.0
    %v2938 = vmul.f32 %v2914, 0.2
    %v2939 = vmul.f32 %v2915, 0.2
    %v2940 = vmul.f32 %v2916, 0.2
    %v2941 = vmul.f32 %v2917, 0.2
    %v2942 = vmul.f32 %v2918, 0.2
    %v2943 = vmul.f32 %v2919, 0.2
    %v2944 = vmul.f32 %v2920, 0.2
    %v2945 = vmul.f32 %v2921, 0.2
    %v2946 = vmul.f32 %v2922, 0.2
    %v2947 = vmul.f32 %v2923, 0.2
    %v2948 = vmul.f32 %v2924, 0.2
    %v2949 = vmul.f32 %v2925, 0.2
    %v2950 = vsel %vm2926, %v2914, %v2938
    %v2951 = vsel %vm2927, %v2915, %v2939
    %v2952 = vsel %vm2928, %v2916, %v2940
    %v2953 = vsel %vm2929, %v2917, %v2941
    %v2954 = vsel %vm2930, %v2918, %v2942
    %v2955 = vsel %vm2931, %v2919, %v2943
    %v2956 = vsel %vm2932, %v2920, %v2944
    %v2957 = vsel %vm2933, %v2921, %v2945
    %v2958 = vsel %vm2934, %v2922, %v2946
    %v2959 = vsel %vm2935, %v2923, %v2947
    %v2960 = vsel %vm2936, %v2924, %v2948
    %v2961 = vsel %vm2937, %v2925, %v2949
    %v2962 = vadd.f32 %v2950, %v675
    %v2963 = vadd.f32 %v2951, %v676
    %v2964 = vadd.f32 %v2952, %v677
    %v2965 = vadd.f32 %v2953, %v678
    %v2966 = vadd.f32 %v2954, %v679
    %v2967 = vadd.f32 %v2955, %v680
    %v2968 = vadd.f32 %v2956, %v681
    %v2969 = vadd.f32 %v2957, %v682
    %v2970 = vadd.f32 %v2958, %v683
    %v2971 = vadd.f32 %v2959, %v684
    %v2972 = vadd.f32 %v2960, %v685
    %v2973 = vadd.f32 %v2961, %v686
    %v2974 = vsel %vm960, %v2962, -inf
    %2975 = vmax.xlane.f32.xlu0 %v2974
    %v2976 = vpop.xlane.xlu0 %2975
    %v2977 = vsel %vm960, %v2963, -inf
    %2978 = vmax.xlane.f32.xlu0 %v2977
    %v2979 = vpop.xlane.xlu0 %2978
    %v2980 = vsel %vm960, %v2964, -inf
    %2981 = vmax.xlane.f32.xlu0 %v2980
    %v2982 = vpop.xlane.xlu0 %2981
    %v2983 = vsel %vm960, %v2965, -inf
    %2984 = vmax.xlane.f32.xlu0 %v2983
    %v2985 = vpop.xlane.xlu0 %2984
    %v2986 = vsel %vm960, %v2966, -inf
    %2987 = vmax.xlane.f32.xlu0 %v2986
    %v2988 = vpop.xlane.xlu0 %2987
    %v2989 = vsel %vm960, %v2967, -inf
    %2990 = vmax.xlane.f32.xlu0 %v2989
    %v2991 = vpop.xlane.xlu0 %2990
    %v2992 = vsel %vm960, %v2968, -inf
    %2993 = vmax.xlane.f32.xlu0 %v2992
    %v2994 = vpop.xlane.xlu0 %2993
    %v2995 = vsel %vm960, %v2969, -inf
    %2996 = vmax.xlane.f32.xlu0 %v2995
    %v2997 = vpop.xlane.xlu0 %2996
    %v2998 = vsel %vm960, %v2970, -inf
    %2999 = vmax.xlane.f32.xlu0 %v2998
    %v3000 = vpop.xlane.xlu0 %2999
    %v3001 = vsel %vm960, %v2971, -inf
    %3002 = vmax.xlane.f32.xlu0 %v3001
    %v3003 = vpop.xlane.xlu0 %3002
    %v3004 = vsel %vm960, %v2972, -inf
    %3005 = vmax.xlane.f32.xlu0 %v3004
    %v3006 = vpop.xlane.xlu0 %3005
    %v3007 = vsel %vm960, %v2973, -inf
    %3008 = vmax.xlane.f32.xlu0 %v3007
    %v3009 = vpop.xlane.xlu0 %3008
    %v3010 = vsub.f32 %v2962, %v2976
    %v3011 = vsub.f32 %v2963, %v2979
    %v3012 = vsub.f32 %v2964, %v2982
    %v3013 = vsub.f32 %v2965, %v2985
    %v3014 = vsub.f32 %v2966, %v2988
    %v3015 = vsub.f32 %v2967, %v2991
    %v3016 = vsub.f32 %v2968, %v2994
    %v3017 = vsub.f32 %v2969, %v2997
    %v3018 = vsub.f32 %v2970, %v3000
    %v3019 = vsub.f32 %v2971, %v3003
    %v3020 = vsub.f32 %v2972, %v3006
    %v3021 = vsub.f32 %v2973, %v3009
    %v3022 = vmul.f32 %v3010, 1.442695
    %v3023 = vpow.pop %v3022
    %v3024 = vmul.f32 %v3011, 1.442695
    %v3025 = vpow.pop %v3024
    %v3026 = vmul.f32 %v3012, 1.442695
    %v3027 = vpow.pop %v3026
    %v3028 = vmul.f32 %v3013, 1.442695
    %v3029 = vpow.pop %v3028
    %v3030 = vmul.f32 %v3014, 1.442695
    %v3031 = vpow.pop %v3030
    %v3032 = vmul.f32 %v3015, 1.442695
    %v3033 = vpow.pop %v3032
    %v3034 = vmul.f32 %v3016, 1.442695
    %v3035 = vpow.pop %v3034
    %v3036 = vmul.f32 %v3017, 1.442695
    %v3037 = vpow.pop %v3036
    %v3038 = vmul.f32 %v3018, 1.442695
    %v3039 = vpow.pop %v3038
    %v3040 = vmul.f32 %v3019, 1.442695
    %v3041 = vpow.pop %v3040
    %v3042 = vmul.f32 %v3020, 1.442695
    %v3043 = vpow.pop %v3042
    %v3044 = vmul.f32 %v3021, 1.442695
    %v3045 = vpow.pop %v3044
    %v3046 = vsel %vm960, %v3023, 0.0
    %3047 = vadd.xlane.f32.xlu0 %v3046
    %v3048 = vpop.xlane.xlu0 %3047
    %v3049 = vsel %vm960, %v3025, 0.0
    %3050 = vadd.xlane.f32.xlu0 %v3049
    %v3051 = vpop.xlane.xlu0 %3050
    %v3052 = vsel %vm960, %v3027, 0.0
    %3053 = vadd.xlane.f32.xlu0 %v3052
    %v3054 = vpop.xlane.xlu0 %3053
    %v3055 = vsel %vm960, %v3029, 0.0
    %3056 = vadd.xlane.f32.xlu0 %v3055
    %v3057 = vpop.xlane.xlu0 %3056
    %v3058 = vsel %vm960, %v3031, 0.0
    %3059 = vadd.xlane.f32.xlu0 %v3058
    %v3060 = vpop.xlane.xlu0 %3059
    %v3061 = vsel %vm960, %v3033, 0.0
    %3062 = vadd.xlane.f32.xlu0 %v3061
    %v3063 = vpop.xlane.xlu0 %3062
    %v3064 = vsel %vm960, %v3035, 0.0
    %3065 = vadd.xlane.f32.xlu0 %v3064
    %v3066 = vpop.xlane.xlu0 %3065
    %v3067 = vsel %vm960, %v3037, 0.0
    %3068 = vadd.xlane.f32.xlu0 %v3067
    %v3069 = vpop.xlane.xlu0 %3068
    %v3070 = vsel %vm960, %v3039, 0.0
    %3071 = vadd.xlane.f32.xlu0 %v3070
    %v3072 = vpop.xlane.xlu0 %3071
    %v3073 = vsel %vm960, %v3041, 0.0
    %3074 = vadd.xlane.f32.xlu0 %v3073
    %v3075 = vpop.xlane.xlu0 %3074
    %v3076 = vsel %vm960, %v3043, 0.0
    %3077 = vadd.xlane.f32.xlu0 %v3076
    %v3078 = vpop.xlane.xlu0 %3077
    %v3079 = vsel %vm960, %v3045, 0.0
    %3080 = vadd.xlane.f32.xlu0 %v3079
    %v3081 = vpop.xlane.xlu0 %3080
    %v3082 = vrcp.pop %v3048
    %v3083 = vmul.f32 %v3048, %v3082
    %v3084 = vsub.f32 1.0, %v3083
    %v3085 = vmul.f32 %v3082, %v3084
    %v3086 = vadd.f32 %v3082, %v3085
    %vm3087 = vweird.f32 %v3048
    %vm3088 = vweird.f32 %v3082
    %vm3089 = vmor %vm3087, %vm3088
    %v3090 = vsel %vm3089, %v3082, %v3086
    %v3091 = vand.u32 2147483647, %v3048
    %vm3092 = vcmp.eq.f32.partialorder %v3091, 8.507059e+37
    %v3093 = vand.u32 %v3048, 2147483648
    %v3094 = vor.u32 1.1754944e-38, %v3093
    %v3095 = vsel %vm3092, %v3094, %v3090
    %v3096 = vmul.f32 %v3023, %v3095
    %v3097 = vrcp.pop %v3051
    %v3098 = vmul.f32 %v3051, %v3097
    %v3099 = vsub.f32 1.0, %v3098
    %v3100 = vmul.f32 %v3097, %v3099
    %v3101 = vadd.f32 %v3097, %v3100
    %vm3102 = vweird.f32 %v3051
    %vm3103 = vweird.f32 %v3097
    %vm3104 = vmor %vm3102, %vm3103
    %v3105 = vsel %vm3104, %v3097, %v3101
    %v3106 = vand.u32 2147483647, %v3051
    %vm3107 = vcmp.eq.f32.partialorder %v3106, 8.507059e+37
    %v3108 = vand.u32 %v3051, 2147483648
    %v3109 = vor.u32 1.1754944e-38, %v3108
    %v3110 = vsel %vm3107, %v3109, %v3105
    %v3111 = vmul.f32 %v3025, %v3110
    %v3112 = vrcp.pop %v3054
    %v3113 = vmul.f32 %v3054, %v3112
    %v3114 = vsub.f32 1.0, %v3113
    %v3115 = vmul.f32 %v3112, %v3114
    %v3116 = vadd.f32 %v3112, %v3115
    %vm3117 = vweird.f32 %v3054
    %vm3118 = vweird.f32 %v3112
    %vm3119 = vmor %vm3117, %vm3118
    %v3120 = vsel %vm3119, %v3112, %v3116
    %v3121 = vand.u32 2147483647, %v3054
    %vm3122 = vcmp.eq.f32.partialorder %v3121, 8.507059e+37
    %v3123 = vand.u32 %v3054, 2147483648
    %v3124 = vor.u32 1.1754944e-38, %v3123
    %v3125 = vsel %vm3122, %v3124, %v3120
    %v3126 = vmul.f32 %v3027, %v3125
    %v3127 = vrcp.pop %v3057
    %v3128 = vmul.f32 %v3057, %v3127
    %v3129 = vsub.f32 1.0, %v3128
    %v3130 = vmul.f32 %v3127, %v3129
    %v3131 = vadd.f32 %v3127, %v3130
    %vm3132 = vweird.f32 %v3057
    %vm3133 = vweird.f32 %v3127
    %vm3134 = vmor %vm3132, %vm3133
    %v3135 = vsel %vm3134, %v3127, %v3131
    %v3136 = vand.u32 2147483647, %v3057
    %vm3137 = vcmp.eq.f32.partialorder %v3136, 8.507059e+37
    %v3138 = vand.u32 %v3057, 2147483648
    %v3139 = vor.u32 1.1754944e-38, %v3138
    %v3140 = vsel %vm3137, %v3139, %v3135
    %v3141 = vmul.f32 %v3029, %v3140
    %v3142 = vrcp.pop %v3060
    %v3143 = vmul.f32 %v3060, %v3142
    %v3144 = vsub.f32 1.0, %v3143
    %v3145 = vmul.f32 %v3142, %v3144
    %v3146 = vadd.f32 %v3142, %v3145
    %vm3147 = vweird.f32 %v3060
    %vm3148 = vweird.f32 %v3142
    %vm3149 = vmor %vm3147, %vm3148
    %v3150 = vsel %vm3149, %v3142, %v3146
    %v3151 = vand.u32 2147483647, %v3060
    %vm3152 = vcmp.eq.f32.partialorder %v3151, 8.507059e+37
    %v3153 = vand.u32 %v3060, 2147483648
    %v3154 = vor.u32 1.1754944e-38, %v3153
    %v3155 = vsel %vm3152, %v3154, %v3150
    %v3156 = vmul.f32 %v3031, %v3155
    %v3157 = vrcp.pop %v3063
    %v3158 = vmul.f32 %v3063, %v3157
    %v3159 = vsub.f32 1.0, %v3158
    %v3160 = vmul.f32 %v3157, %v3159
    %v3161 = vadd.f32 %v3157, %v3160
    %vm3162 = vweird.f32 %v3063
    %vm3163 = vweird.f32 %v3157
    %vm3164 = vmor %vm3162, %vm3163
    %v3165 = vsel %vm3164, %v3157, %v3161
    %v3166 = vand.u32 2147483647, %v3063
    %vm3167 = vcmp.eq.f32.partialorder %v3166, 8.507059e+37
    %v3168 = vand.u32 %v3063, 2147483648
    %v3169 = vor.u32 1.1754944e-38, %v3168
    %v3170 = vsel %vm3167, %v3169, %v3165
    %v3171 = vmul.f32 %v3033, %v3170
    %v3172 = vrcp.pop %v3066
    %v3173 = vmul.f32 %v3066, %v3172
    %v3174 = vsub.f32 1.0, %v3173
    %v3175 = vmul.f32 %v3172, %v3174
    %v3176 = vadd.f32 %v3172, %v3175
    %vm3177 = vweird.f32 %v3066
    %vm3178 = vweird.f32 %v3172
    %vm3179 = vmor %vm3177, %vm3178
    %v3180 = vsel %vm3179, %v3172, %v3176
    %v3181 = vand.u32 2147483647, %v3066
    %vm3182 = vcmp.eq.f32.partialorder %v3181, 8.507059e+37
    %v3183 = vand.u32 %v3066, 2147483648
    %v3184 = vor.u32 1.1754944e-38, %v3183
    %v3185 = vsel %vm3182, %v3184, %v3180
    %v3186 = vmul.f32 %v3035, %v3185
    %v3187 = vrcp.pop %v3069
    %v3188 = vmul.f32 %v3069, %v3187
    %v3189 = vsub.f32 1.0, %v3188
    %v3190 = vmul.f32 %v3187, %v3189
    %v3191 = vadd.f32 %v3187, %v3190
    %vm3192 = vweird.f32 %v3069
    %vm3193 = vweird.f32 %v3187
    %vm3194 = vmor %vm3192, %vm3193
    %v3195 = vsel %vm3194, %v3187, %v3191
    %v3196 = vand.u32 2147483647, %v3069
    %vm3197 = vcmp.eq.f32.partialorder %v3196, 8.507059e+37
    %v3198 = vand.u32 %v3069, 2147483648
    %v3199 = vor.u32 1.1754944e-38, %v3198
    %v3200 = vsel %vm3197, %v3199, %v3195
    %v3201 = vmul.f32 %v3037, %v3200
    %v3202 = vrcp.pop %v3072
    %v3203 = vmul.f32 %v3072, %v3202
    %v3204 = vsub.f32 1.0, %v3203
    %v3205 = vmul.f32 %v3202, %v3204
    %v3206 = vadd.f32 %v3202, %v3205
    %vm3207 = vweird.f32 %v3072
    %vm3208 = vweird.f32 %v3202
    %vm3209 = vmor %vm3207, %vm3208
    %v3210 = vsel %vm3209, %v3202, %v3206
    %v3211 = vand.u32 2147483647, %v3072
    %vm3212 = vcmp.eq.f32.partialorder %v3211, 8.507059e+37
    %v3213 = vand.u32 %v3072, 2147483648
    %v3214 = vor.u32 1.1754944e-38, %v3213
    %v3215 = vsel %vm3212, %v3214, %v3210
    %v3216 = vmul.f32 %v3039, %v3215
    %v3217 = vrcp.pop %v3075
    %v3218 = vmul.f32 %v3075, %v3217
    %v3219 = vsub.f32 1.0, %v3218
    %v3220 = vmul.f32 %v3217, %v3219
    %v3221 = vadd.f32 %v3217, %v3220
    %vm3222 = vweird.f32 %v3075
    %vm3223 = vweird.f32 %v3217
    %vm3224 = vmor %vm3222, %vm3223
    %v3225 = vsel %vm3224, %v3217, %v3221
    %v3226 = vand.u32 2147483647, %v3075
    %vm3227 = vcmp.eq.f32.partialorder %v3226, 8.507059e+37
    %v3228 = vand.u32 %v3075, 2147483648
    %v3229 = vor.u32 1.1754944e-38, %v3228
    %v3230 = vsel %vm3227, %v3229, %v3225
    %v3231 = vmul.f32 %v3041, %v3230
    %v3232 = vrcp.pop %v3078
    %v3233 = vmul.f32 %v3078, %v3232
    %v3234 = vsub.f32 1.0, %v3233
    %v3235 = vmul.f32 %v3232, %v3234
    %v3236 = vadd.f32 %v3232, %v3235
    %vm3237 = vweird.f32 %v3078
    %vm3238 = vweird.f32 %v3232
    %vm3239 = vmor %vm3237, %vm3238
    %v3240 = vsel %vm3239, %v3232, %v3236
    %v3241 = vand.u32 2147483647, %v3078
    %vm3242 = vcmp.eq.f32.partialorder %v3241, 8.507059e+37
    %v3243 = vand.u32 %v3078, 2147483648
    %v3244 = vor.u32 1.1754944e-38, %v3243
    %v3245 = vsel %vm3242, %v3244, %v3240
    %v3246 = vmul.f32 %v3043, %v3245
    %v3247 = vrcp.pop %v3081
    %v3248 = vmul.f32 %v3081, %v3247
    %v3249 = vsub.f32 1.0, %v3248
    %v3250 = vmul.f32 %v3247, %v3249
    %v3251 = vadd.f32 %v3247, %v3250
    %vm3252 = vweird.f32 %v3081
    %vm3253 = vweird.f32 %v3247
    %vm3254 = vmor %vm3252, %vm3253
    %v3255 = vsel %vm3254, %v3247, %v3251
    %v3256 = vand.u32 2147483647, %v3081
    %vm3257 = vcmp.eq.f32.partialorder %v3256, 8.507059e+37
    %v3258 = vand.u32 %v3081, 2147483648
    %v3259 = vor.u32 1.1754944e-38, %v3258
    %v3260 = vsel %vm3257, %v3259, %v3255
    %v3261 = vmul.f32 %v3045, %v3260
    %v3263 = vsel %vm960, %v3096, 0
    %v3266 = vsel %vm960, %v3111, 0
    %v3269 = vsel %vm960, %v3126, 0
    %v3272 = vsel %vm960, %v3141, 0
    %v3275 = vsel %vm960, %v3156, 0
    %v3278 = vsel %vm960, %v3171, 0
    %v3281 = vsel %vm960, %v3186, 0
    %v3284 = vsel %vm960, %v3201, 0
    %v3287 = vsel %vm960, %v3216, 0
    %v3290 = vsel %vm960, %v3231, 0
    %v3293 = vsel %vm960, %v3246, 0
    %v3296 = vsel %vm960, %v3261, 0
    %3298 = vmatpush.msra.mxu0 0.0
    %3299 = vmatpush.msra.mxu0 0.0
    %3300 = vmatpush.msra.mxu0 0.0
    %3301 = vmatpush.msra.mxu0 0.0
    %3302 = vmatpush.msra.mxu0 0.0
    %3303 = vmatpush.msra.mxu0 0.0
    %3304 = vmatpush.msra.mxu0 0.0
    %3305 = vmatpush.msra.mxu0 0.0
    %3306 = vmatpush.msra.mxu0 0.0
    %3307 = vmatpush.msra.mxu0 0.0
    %3308 = vmatpush.msra.mxu0 0.0
    %3309 = vmatpush.msra.mxu0 0.0
    %3310 = vmatpush.msra.mxu0 0.0
    %3311 = vmatpush.msra.mxu0 %v2766
    %3312 = vmatpush.msra.mxu0 %v2763
    %3313 = vmatpush.msra.mxu0 %v2760
    %3314 = vmatmul.f32.gmra.mxu0 %v3263
    %v3315 = vpop.f32.mrf.mxu0
    %v3316 = vadd.f32 0.0, %v3315
    %3317 = vmatmul.f32.gmra.mxu0 %v3266
    %v3318 = vpop.f32.mrf.mxu0
    %v3319 = vadd.f32 0.0, %v3318
    %3320 = vmatmul.f32.gmra.mxu0 %v3269
    %v3321 = vpop.f32.mrf.mxu0
    %v3322 = vadd.f32 0.0, %v3321
    %3323 = vmatmul.f32.gmra.mxu0 %v3272
    %v3324 = vpop.f32.mrf.mxu0
    %v3325 = vadd.f32 0.0, %v3324
    %3326 = vmatmul.f32.gmra.mxu0 %v3275
    %v3327 = vpop.f32.mrf.mxu0
    %v3328 = vadd.f32 0.0, %v3327
    %3329 = vmatmul.f32.gmra.mxu0 %v3278
    %v3330 = vpop.f32.mrf.mxu0
    %v3331 = vadd.f32 0.0, %v3330
    %3332 = vmatmul.f32.gmra.mxu0 %v3281
    %v3333 = vpop.f32.mrf.mxu0
    %v3334 = vadd.f32 0.0, %v3333
    %3335 = vmatmul.f32.gmra.mxu0 %v3284
    %v3336 = vpop.f32.mrf.mxu0
    %v3337 = vadd.f32 0.0, %v3336
    %3338 = vmatmul.f32.gmra.mxu0 %v3287
    %v3339 = vpop.f32.mrf.mxu0
    %v3340 = vadd.f32 0.0, %v3339
    %3341 = vmatmul.f32.gmra.mxu0 %v3290
    %v3342 = vpop.f32.mrf.mxu0
    %v3343 = vadd.f32 0.0, %v3342
    %3344 = vmatmul.f32.gmra.mxu0 %v3293
    %v3345 = vpop.f32.mrf.mxu0
    %v3346 = vadd.f32 0.0, %v3345
    %3347 = vmatmul.f32.gmra.mxu0 %v3296
    %v3348 = vpop.f32.mrf.mxu0
    %v3349 = vadd.f32 0.0, %v3348
    %3350 = vdwg.mxu0
    %3354 = vrot.lane.b32.xlu0 %v3325, 120
    %v3355 = vpop.permute.xlu0 %3354
    %3356 = vrot.lane.b32.xlu0 %v3328, 120
    %v3357 = vpop.permute.xlu0 %3356
    %3358 = vrot.lane.b32.xlu0 %v3331, 120
    %v3359 = vpop.permute.xlu0 %3358
    %v3363 = vadd.f32 %v3316, %v3355
    %v3364 = vadd.f32 %v3319, %v3357
    %v3365 = vadd.f32 %v3322, %v3359
    %3369 = vrot.lane.b32.xlu0 %v3334, 112
    %v3370 = vpop.permute.xlu0 %3369
    %3371 = vrot.lane.b32.xlu0 %v3337, 112
    %v3372 = vpop.permute.xlu0 %3371
    %3373 = vrot.lane.b32.xlu0 %v3340, 112
    %v3374 = vpop.permute.xlu0 %3373
    %v3378 = vadd.f32 %v3363, %v3370
    %v3379 = vadd.f32 %v3364, %v3372
    %v3380 = vadd.f32 %v3365, %v3374
    %3384 = vrot.lane.b32.xlu0 %v3343, 104
    %v3385 = vpop.permute.xlu0 %3384
    %3386 = vrot.lane.b32.xlu0 %v3346, 104
    %v3387 = vpop.permute.xlu0 %3386
    %3388 = vrot.lane.b32.xlu0 %v3349, 104
    %v3389 = vpop.permute.xlu0 %3388
    %v3393 = vadd.f32 %v3378, %v3385
    %v3394 = vadd.f32 %v3379, %v3387
    %v3395 = vadd.f32 %v3380, %v3389
    %v3396 = vmul.f32 %v3393, 0.25
    %v3397 = vmul.f32 %v3394, 0.25
    %v3398 = vmul.f32 %v3395, 0.25
    %v3400 = vperm.slane %v2732, 0
    %v3402 = vadd.f32 %v3396, %v3400
    %v3403 = vadd.f32 %v3397, %v3400
    %v3404 = vadd.f32 %v3398, %v3400
    %vm3405 = vcmp.ge.f32.partialorder %v3402, 0.0
    %vm3406 = vcmp.ge.f32.partialorder %v3403, 0.0
    %vm3407 = vcmp.ge.f32.partialorder %v3404, 0.0
    %v3408 = vmul.f32 %v3402, 0.01
    %v3409 = vmul.f32 %v3403, 0.01
    %v3410 = vmul.f32 %v3404, 0.01
    %v3411 = vsel %vm3405, %v3402, %v3408
    %v3412 = vsel %vm3406, %v3403, %v3409
    %v3413 = vsel %vm3407, %v3404, %v3410
    %v3414 = vld [vmem:[%s81] sm:$0xff]
    %v3416 = vsel %vm406, %v3411, 0
    %v3419 = vsel %vm406, %v3412, 0
    %v3422 = vsel %vm406, %v3413, 0
    %3424 = vmatpush.msra.mxu0 0.0
    %3425 = vmatpush.msra.mxu0 0.0
    %3426 = vmatpush.msra.mxu0 0.0
    %3427 = vmatpush.msra.mxu0 0.0
    %3428 = vmatpush.msra.mxu0 0.0
    %3429 = vmatpush.msra.mxu0 0.0
    %3430 = vmatpush.msra.mxu0 0.0
    %3431 = vmatpush.msra.mxu0 0.0
    %3432 = vmatpush.msra.mxu0 0.0
    %3433 = vmatpush.msra.mxu0 0.0
    %3434 = vmatpush.msra.mxu0 0.0
    %3435 = vmatpush.msra.mxu0 0.0
    %3436 = vmatpush.msra.mxu0 0.0
    %3437 = vmatpush.msra.mxu0 0.0
    %3438 = vmatpush.msra.mxu0 0.0
    %3439 = vmatpush.msra.mxu0 %v3414
    %3440 = vmatmul.f32.gmra.mxu0 %v3416
    %v3441 = vpop.f32.mrf.mxu0
    %v3442 = vadd.f32 0.0, %v3441
    %3443 = vmatmul.f32.gmra.mxu0 %v3419
    %v3444 = vpop.f32.mrf.mxu0
    %v3445 = vadd.f32 0.0, %v3444
    %3446 = vmatmul.f32.gmra.mxu0 %v3422
    %v3447 = vpop.f32.mrf.mxu0
    %v3448 = vadd.f32 0.0, %v3447
    %3449 = vdwg.mxu0
    %v3450 = vld [vmem:[%s29] sm:$0xff]
    %v3451 = vld [vmem:[%s29 + $0x8] sm:$0xff]
    %v3452 = vld [vmem:[%s29 + $0x10] sm:$0xff]
    %v3454 = vsel %vm960, %v3450, 0
    %v3457 = vsel %vm960, %v3451, 0
    %v3460 = vsel %vm960, %v3452, 0
    %3462 = vmatpush.msra.mxu0 0.0
    %3463 = vmatpush.msra.mxu0 0.0
    %3464 = vmatpush.msra.mxu0 0.0
    %3465 = vmatpush.msra.mxu0 0.0
    %3466 = vmatpush.msra.mxu0 0.0
    %3467 = vmatpush.msra.mxu0 0.0
    %3468 = vmatpush.msra.mxu0 0.0
    %3469 = vmatpush.msra.mxu0 0.0
    %3470 = vmatpush.msra.mxu0 0.0
    %3471 = vmatpush.msra.mxu0 0.0
    %3472 = vmatpush.msra.mxu0 0.0
    %3473 = vmatpush.msra.mxu0 0.0
    %3474 = vmatpush.msra.mxu0 0.0
    %3475 = vmatpush.msra.mxu0 %v3448
    %3476 = vmatpush.msra.mxu0 %v3445
    %3477 = vmatpush.msra.mxu0 %v3442
    %3478 = vmatmul.f32.gmra.mxu0 %v3454
    %v3479 = vpop.f32.mrf.mxu0
    %v3480 = vadd.f32 0.0, %v3479
    %3481 = vmatmul.f32.gmra.mxu0 %v3457
    %v3482 = vpop.f32.mrf.mxu0
    %v3483 = vadd.f32 0.0, %v3482
    %3484 = vmatmul.f32.gmra.mxu0 %v3460
    %v3485 = vpop.f32.mrf.mxu0
    %v3486 = vadd.f32 0.0, %v3485
    %3487 = vdwg.mxu0
    %v3488 = vld [vmem:[#allocation2] sm:$0x1]
    %v3490 = vperm.slane %v3488, 0
    %3491 = vrot.lane.b32.xlu0 %v3490, 2
    %v3492 = vpop.permute.xlu0 %3491
    %v3494 = vadd.f32 %v3486, %v3492
    %v3495 = vxor.u32 %v3494, 2147483648
    %v3496 = vmul.f32 %v3495, 1.442695
    %v3497 = vpow.pop %v3496
    %v3498 = vadd.f32 %v3497, 1.0
    %v3499 = vrcp.pop %v3498
    %v3500 = vmul.f32 %v3498, %v3499
    %v3501 = vsub.f32 1.0, %v3500
    %v3502 = vmul.f32 %v3499, %v3501
    %v3503 = vadd.f32 %v3499, %v3502
    %vm3504 = vweird.f32 %v3498
    %vm3505 = vweird.f32 %v3499
    %vm3506 = vmor %vm3504, %vm3505
    %v3507 = vsel %vm3506, %v3499, %v3503
    %v3508 = vand.u32 2147483647, %v3498
    %vm3509 = vcmp.eq.f32.partialorder %v3508, 8.507059e+37
    %v3510 = vand.u32 %v3498, 2147483648
    %v3511 = vor.u32 1.1754944e-38, %v3510
    %v3512 = vsel %vm3509, %v3511, %v3507
    %v3513 = vmul.f32 1.0, %v3512
    %v3514 = vld [vmem:[%s31] sm:$0xff]
    %v3515 = vld [vmem:[%s31 + $0x8] sm:$0xff]
    %3517 = vrot.lane.b32.xlu0 %v3486, 127
    %v3518 = vpop.permute.xlu0 %3517
    %v3521 = vsel %vm406, %v3514, 0
    %v3524 = vsel %vm406, %v3515, 0
    %3526 = vmatpush.msra.mxu0 0.0
    %3527 = vmatpush.msra.mxu0 0.0
    %3528 = vmatpush.msra.mxu0 0.0
    %3529 = vmatpush.msra.mxu0 0.0
    %3530 = vmatpush.msra.mxu0 0.0
    %3531 = vmatpush.msra.mxu0 0.0
    %3532 = vmatpush.msra.mxu0 0.0
    %3533 = vmatpush.msra.mxu0 0.0
    %3534 = vmatpush.msra.mxu0 0.0
    %3535 = vmatpush.msra.mxu0 0.0
    %3536 = vmatpush.msra.mxu0 0.0
    %3537 = vmatpush.msra.mxu0 0.0
    %3538 = vmatpush.msra.mxu0 0.0
    %3539 = vmatpush.msra.mxu0 0.0
    %3540 = vmatpush.msra.mxu0 0.0
    %3541 = vmatpush.msra.mxu0 %v3518
    %3542 = vmatmul.f32.gmra.mxu0 %v3521
    %v3543 = vpop.f32.mrf.mxu0
    %v3544 = vadd.f32 %v3480, %v3543
    %3545 = vmatmul.f32.gmra.mxu0 %v3524
    %v3546 = vpop.f32.mrf.mxu0
    %v3547 = vadd.f32 %v3483, %v3546
    %3548 = vdwg.mxu0
    %v3550 = vadd.f32 %v3544, %v3490
    %v3551 = vadd.f32 %v3547, %v3490
    %v3552 = vxor.u32 %v3550, 2147483648
    %v3553 = vxor.u32 %v3551, 2147483648
    %v3554 = vmul.f32 %v3552, 1.442695
    %v3555 = vpow.pop %v3554
    %v3556 = vmul.f32 %v3553, 1.442695
    %v3557 = vpow.pop %v3556
    %v3558 = vadd.f32 %v3555, 1.0
    %v3559 = vadd.f32 %v3557, 1.0
    %v3560 = vrcp.pop %v3558
    %v3561 = vmul.f32 %v3558, %v3560
    %v3562 = vsub.f32 1.0, %v3561
    %v3563 = vmul.f32 %v3560, %v3562
    %v3564 = vadd.f32 %v3560, %v3563
    %vm3565 = vweird.f32 %v3558
    %vm3566 = vweird.f32 %v3560
    %vm3567 = vmor %vm3565, %vm3566
    %v3568 = vsel %vm3567, %v3560, %v3564
    %v3569 = vand.u32 2147483647, %v3558
    %vm3570 = vcmp.eq.f32.partialorder %v3569, 8.507059e+37
    %v3571 = vand.u32 %v3558, 2147483648
    %v3572 = vor.u32 1.1754944e-38, %v3571
    %v3573 = vsel %vm3570, %v3572, %v3568
    %v3574 = vmul.f32 1.0, %v3573
    %v3575 = vrcp.pop %v3559
    %v3576 = vmul.f32 %v3559, %v3575
    %v3577 = vsub.f32 1.0, %v3576
    %v3578 = vmul.f32 %v3575, %v3577
    %v3579 = vadd.f32 %v3575, %v3578
    %vm3580 = vweird.f32 %v3559
    %vm3581 = vweird.f32 %v3575
    %vm3582 = vmor %vm3580, %vm3581
    %v3583 = vsel %vm3582, %v3575, %v3579
    %v3584 = vand.u32 2147483647, %v3559
    %vm3585 = vcmp.eq.f32.partialorder %v3584, 8.507059e+37
    %v3586 = vand.u32 %v3559, 2147483648
    %v3587 = vor.u32 1.1754944e-38, %v3586
    %v3588 = vsel %vm3585, %v3587, %v3583
    %v3589 = vmul.f32 1.0, %v3588
    %v3590 = vmul.f32 %v3574, 1.442695
    %v3591 = vpow.pop %v3590
    %v3592 = vmul.f32 %v3589, 1.442695
    %v3593 = vpow.pop %v3592
    %3596 = vrot.lane.b32.xlu0 %v3574, 1
    %v3597 = vpop.permute.xlu0 %3596
    %3598 = vrot.lane.b32.xlu0 %v3589, 1
    %v3599 = vpop.permute.xlu0 %3598
    %vm3602 = vcmask 7168
    %v3603 = vsel %vm3602, %v3591, %v3597
    %v3604 = vsel %vm3602, %v3593, %v3599
    %v3605 = vld [vmem:[%s33] sm:$0xff]
    %v3607 = vsel %vm211, %v3605, 0
    %3609 = vmatpush.msra.mxu0 0.0
    %3610 = vmatpush.msra.mxu0 0.0
    %3611 = vmatpush.msra.mxu0 0.0
    %3612 = vmatpush.msra.mxu0 0.0
    %3613 = vmatpush.msra.mxu0 0.0
    %3614 = vmatpush.msra.mxu0 0.0
    %3615 = vmatpush.msra.mxu0 0.0
    %3616 = vmatpush.msra.mxu0 0.0
    %3617 = vmatpush.msra.mxu0 0.0
    %3618 = vmatpush.msra.mxu0 0.0
    %3619 = vmatpush.msra.mxu0 0.0
    %3620 = vmatpush.msra.mxu0 0.0
    %3621 = vmatpush.msra.mxu0 0.0
    %3622 = vmatpush.msra.mxu0 0.0
    %3623 = vmatpush.msra.mxu0 %v3604
    %3624 = vmatpush.msra.mxu0 %v3603
    %3625 = vmatmul.f32.gmra.mxu0 %v3607
    %v3626 = vpop.f32.mrf.mxu0
    %v3627 = vadd.f32 0.0, %v3626
    %3628 = vdwg.mxu0
    %v3629 = vld [vmem:[%s37] sm:$0xff]
    %3631 = vrot.lane.b32.xlu0 %v3629, 1
    %v3632 = vpop.permute.xlu0 %3631
    %v3634 = vmul.f32 %v3627, %v3632
    %3635 = vmatpush.msra.mxu0 0.0
    %3636 = vmatpush.msra.mxu0 0.0
    %3637 = vmatpush.msra.mxu0 0.0
    %3638 = vmatpush.msra.mxu0 0.0
    %3639 = vmatpush.msra.mxu0 0.0
    %3640 = vmatpush.msra.mxu0 0.0
    %3641 = vmatpush.msra.mxu0 0.0
    %3642 = vmatpush.msra.mxu0 0.0
    %3643 = vmatpush.msra.mxu0 0.0
    %3644 = vmatpush.msra.mxu0 0.0
    %3645 = vmatpush.msra.mxu0 0.0
    %3646 = vmatpush.msra.mxu0 0.0
    %3647 = vmatpush.msra.mxu0 0.0
    %3648 = vmatpush.msra.mxu0 0.0
    %3649 = vmatpush.msra.mxu0 0.0
    %3650 = vmatpush.msra.mxu0 %v3627
    %3651 = vmatmul.f32.gmra.mxu0 %v3521
    %v3652 = vpop.f32.mrf.mxu0
    %v3653 = vadd.f32 0.0, %v3652
    %3654 = vmatmul.f32.gmra.mxu0 %v3524
    %v3655 = vpop.f32.mrf.mxu0
    %v3656 = vadd.f32 0.0, %v3655
    %3657 = vdwg.mxu0
    %v3658 = vrcp.pop %v3653
    %v3659 = vmul.f32 %v3653, %v3658
    %v3660 = vsub.f32 1.0, %v3659
    %v3661 = vmul.f32 %v3658, %v3660
    %v3662 = vadd.f32 %v3658, %v3661
    %vm3663 = vweird.f32 %v3653
    %vm3664 = vweird.f32 %v3658
    %vm3665 = vmor %vm3663, %vm3664
    %v3666 = vsel %vm3665, %v3658, %v3662
    %v3667 = vand.u32 2147483647, %v3653
    %vm3668 = vcmp.eq.f32.partialorder %v3667, 8.507059e+37
    %v3669 = vand.u32 %v3653, 2147483648
    %v3670 = vor.u32 1.1754944e-38, %v3669
    %v3671 = vsel %vm3668, %v3670, %v3666
    %v3672 = vmul.f32 %v3591, %v3671
    %v3673 = vrcp.pop %v3656
    %v3674 = vmul.f32 %v3656, %v3673
    %v3675 = vsub.f32 1.0, %v3674
    %v3676 = vmul.f32 %v3673, %v3675
    %v3677 = vadd.f32 %v3673, %v3676
    %vm3678 = vweird.f32 %v3656
    %vm3679 = vweird.f32 %v3673
    %vm3680 = vmor %vm3678, %vm3679
    %v3681 = vsel %vm3680, %v3673, %v3677
    %v3682 = vand.u32 2147483647, %v3656
    %vm3683 = vcmp.eq.f32.partialorder %v3682, 8.507059e+37
    %v3684 = vand.u32 %v3656, 2147483648
    %v3685 = vor.u32 1.1754944e-38, %v3684
    %v3686 = vsel %vm3683, %v3685, %v3681
    %v3687 = vmul.f32 %v3593, %v3686
    %v3688 = vld [vmem:[%s35] sm:$0xff]
    %3690 = vset.pattern.permute.xlu0 0
    %3691 = vperm.xlu0 %3690, %v3672
    %v3692 = vpop.permute.xlu0 %3691
    %3695 = vset.pattern.permute.xlu0 0
    %3696 = vperm.xlu0 %3695, %v3687
    %v3697 = vpop.permute.xlu0 %3696
    %v3699 = vmul.f32 %v486, %v3692
    %v3700 = vmul.f32 %v489, %v3697
    %v3702 = vsel %vm211, %v3688, 0
    %3704 = vmatpush.msra.mxu0 0.0
    %3705 = vmatpush.msra.mxu0 0.0
    %3706 = vmatpush.msra.mxu0 0.0
    %3707 = vmatpush.msra.mxu0 0.0
    %3708 = vmatpush.msra.mxu0 0.0
    %3709 = vmatpush.msra.mxu0 0.0
    %3710 = vmatpush.msra.mxu0 0.0
    %3711 = vmatpush.msra.mxu0 0.0
    %3712 = vmatpush.msra.mxu0 0.0
    %3713 = vmatpush.msra.mxu0 0.0
    %3714 = vmatpush.msra.mxu0 0.0
    %3715 = vmatpush.msra.mxu0 0.0
    %3716 = vmatpush.msra.mxu0 0.0
    %3717 = vmatpush.msra.mxu0 0.0
    %3718 = vmatpush.msra.mxu0 %v3700
    %3719 = vmatpush.msra.mxu0 %v3699
    %3720 = vmatmul.f32.gmra.mxu0 %v3702
    %v3721 = vpop.f32.mrf.mxu0
    %v3722 = vadd.f32 0.0, %v3721
    %3723 = vdwg.mxu0
    %3725 = vrot.lane.b32.xlu0 %v3513, 127
    %v3726 = vpop.permute.xlu0 %3725
    %v3728 = vmax.f32 %v3634, %v3726
    %v3729 = vsub.f32 %v3634, %v3728
    %v3730 = vmul.f32 %v3729, 1.442695
    %v3731 = vpow.pop %v3730
    %3733 = vrot.lane.b32.xlu0 %v3728, 1
    %v3734 = vpop.permute.xlu0 %3733
    %v3736 = vsub.f32 %v3513, %v3734
    %v3737 = vmul.f32 %v3736, 1.442695
    %v3738 = vpow.pop %v3737
    %3740 = vrot.lane.b32.xlu0 %v3738, 127
    %v3741 = vpop.permute.xlu0 %3740
    %v3743 = vadd.f32 %v3731, %v3741
    %v3744 = vrcp.pop %v3743
    %v3745 = vmul.f32 %v3743, %v3744
    %v3746 = vsub.f32 1.0, %v3745
    %v3747 = vmul.f32 %v3744, %v3746
    %v3748 = vadd.f32 %v3744, %v3747
    %vm3749 = vweird.f32 %v3743
    %vm3750 = vweird.f32 %v3744
    %vm3751 = vmor %vm3749, %vm3750
    %v3752 = vsel %vm3751, %v3744, %v3748
    %v3753 = vand.u32 2147483647, %v3743
    %vm3754 = vcmp.eq.f32.partialorder %v3753, 8.507059e+37
    %v3755 = vand.u32 %v3743, 2147483648
    %v3756 = vor.u32 1.1754944e-38, %v3755
    %v3757 = vsel %vm3754, %v3756, %v3752
    %v3758 = vmul.f32 1.0, %v3757
    %v3759 = vmul.f32 %v3731, %v3758
    %3761 = vset.pattern.permute.xlu0 1
    %3762 = vperm.xlu0 %3761, %v3759
    %v3763 = vpop.permute.xlu0 %3762
    %v3765 = vmul.f32 %v3722, %v3763
    %3767 = vrot.lane.b32.xlu0 %v3758, 1
    %v3768 = vpop.permute.xlu0 %3767
    %v3770 = vmul.f32 %v3738, %v3768
    %3772 = vset.pattern.permute.xlu0 2
    %3773 = vperm.xlu0 %3772, %v3770
    %v3774 = vpop.permute.xlu0 %3773
    %v3776 = vmul.f32 %v492, %v3774
    %v3777 = vadd.f32 %v3765, %v3776
    %v3778 = vsel %vm329, %v3777, 1e+09
    %v3779 = vsel %vm211, %v3778, inf
    %3780 = vmin.xlane.f32.xlu0 %v3779
    %v3781 = vpop.xlane.xlu0 %3780
    %v3782 = vsub.f32 %v3777, %v3781
    %v3783 = vsel %vm329, %v3782, 0.0
    %v3784 = vld [vmem:[%s27] sm:$0xff]
    %v3785 = vld [vmem:[%s27 + $0x8] sm:$0xff]
    %3787 = vset.pattern.permute.xlu0 0
    %3788 = vperm.xlu0 %3787, %v3784
    %v3789 = vpop.permute.xlu0 %3788
    %3792 = vset.pattern.permute.xlu0 0
    %3793 = vperm.xlu0 %3792, %v3785
    %v3794 = vpop.permute.xlu0 %3793
    %v3796 = vmul.f32 %v436, %v3789
    %v3797 = vmul.f32 %v437, %v3794
    %v3798 = vld [vmem:[%s25] sm:$0xff]
    %v3799 = vld [vmem:[%s25 + $0x8] sm:$0xff]
    %v3801 = vsel %vm406, %v3798, 0
    %v3804 = vsel %vm406, %v3799, 0
    %3806 = vmatpush.msra.mxu0 0.0
    %3807 = vmatpush.msra.mxu0 0.0
    %3808 = vmatpush.msra.mxu0 0.0
    %3809 = vmatpush.msra.mxu0 0.0
    %3810 = vmatpush.msra.mxu0 0.0
    %3811 = vmatpush.msra.mxu0 0.0
    %3812 = vmatpush.msra.mxu0 0.0
    %3813 = vmatpush.msra.mxu0 0.0
    %3814 = vmatpush.msra.mxu0 0.0
    %3815 = vmatpush.msra.mxu0 0.0
    %3816 = vmatpush.msra.mxu0 0.0
    %3817 = vmatpush.msra.mxu0 0.0
    %3818 = vmatpush.msra.mxu0 0.0
    %3819 = vmatpush.msra.mxu0 0.0
    %3820 = vmatpush.msra.mxu0 0.0
    %3821 = vmatpush.msra.mxu0 %v3783
    %3822 = vmatmul.f32.gmra.mxu0 %v3801
    %v3823 = vpop.f32.mrf.mxu0
    %v3824 = vadd.f32 0.0, %v3823
    %3825 = vmatmul.f32.gmra.mxu0 %v3804
    %v3826 = vpop.f32.mrf.mxu0
    %v3827 = vadd.f32 0.0, %v3826
    %3828 = vdwg.mxu0
    %v3829 = vadd.f32 %v3796, %v3824
    %v3830 = vadd.f32 %v3797, %v3827
    %v3831 = vsub.f32 0.0, %v495
    %v3832 = vsel %vm329, %v3831, -1e+30
    %vm3833 = vcmask 125952
    %v3834 = vsel %vm3833, %v3832, -inf
    %3835 = vmax.xlane.f32.xlu0 %v3834
    %v3836 = vpop.xlane.xlu0 %3835
    %v3837 = vsub.f32 %v3832, %v3836
    %v3838 = vmul.f32 %v3837, 1.442695
    %v3839 = vpow.pop %v3838
    %v3840 = vsel %vm3833, %v3839, 0.0
    %3841 = vadd.xlane.f32.xlu0 %v3840
    %v3842 = vpop.xlane.xlu0 %3841
    %v3843 = vrcp.pop %v3842
    %v3844 = vmul.f32 %v3842, %v3843
    %v3845 = vsub.f32 1.0, %v3844
    %v3846 = vmul.f32 %v3843, %v3845
    %v3847 = vadd.f32 %v3843, %v3846
    %vm3848 = vweird.f32 %v3842
    %vm3849 = vweird.f32 %v3843
    %vm3850 = vmor %vm3848, %vm3849
    %v3851 = vsel %vm3850, %v3843, %v3847
    %v3852 = vand.u32 2147483647, %v3842
    %vm3853 = vcmp.eq.f32.partialorder %v3852, 8.507059e+37
    %v3854 = vand.u32 %v3842, 2147483648
    %v3855 = vor.u32 1.1754944e-38, %v3854
    %v3856 = vsel %vm3853, %v3855, %v3851
    %v3857 = vmul.f32 %v3839, %v3856
    %v3858 = vadd.f32 %v3857, 1e-06
    %v3859 = vlog2.pop %v3858
    %v3860 = vmul.f32 %v3859, 0.6931472
    %v3861 = vmul.f32 %v3860, 1.442695
    %v3862 = vmul.f32 %v3857, %v3861
    %v3863 = vsel %vm3833, %v3862, 0.0
    %3864 = vadd.xlane.f32.xlu0 %v3863
    %v3865 = vpop.xlane.xlu0 %3864
    %v3866 = vsub.f32 0.0, %v3865
    %v3867 = vsel %vm388, %v3866, 0.0
    %v3868 = vrot.slane %v3867, 4
    %v3869 = vadd.f32 %v3867, %v3868
    %v3870 = vrot.slane %v3869, 2
    %v3871 = vadd.f32 %v3869, %v3870
    %v3872 = vrot.slane %v3871, 1
    %v3873 = vadd.f32 %v3871, %v3872
    %v3874 = vrcp.pop 4.0
    %v3875 = vmul.f32 4.0, %v3874
    %v3876 = vsub.f32 1.0, %v3875
    %v3877 = vmul.f32 %v3874, %v3876
    %v3878 = vadd.f32 %v3874, %v3877
    %vm3879 = vweird.f32 %v3874
    %v3880 = vsel %vm3879, %v3874, %v3878
    %v3881 = vmul.f32 %v3873, %v3880
    %v3882 = vld [vmem:[%s39] sm:$0xff]
    %vm3883 = vcmask 31744
    %v3885 = vsel %vm3883, %v3882, 0
    %v3888 = vsel %vm388, %v3857, 0
    %3890 = vmatpush.msra.mxu0 0.0
    %3891 = vmatpush.msra.mxu0 0.0
    %3892 = vmatpush.msra.mxu0 0.0
    %3893 = vmatpush.msra.mxu0 0.0
    %3894 = vmatpush.msra.mxu0 0.0
    %3895 = vmatpush.msra.mxu0 0.0
    %3896 = vmatpush.msra.mxu0 0.0
    %3897 = vmatpush.msra.mxu0 0.0
    %3898 = vmatpush.msra.mxu0 0.0
    %3899 = vmatpush.msra.mxu0 0.0
    %3900 = vmatpush.msra.mxu0 0.0
    %3901 = vmatpush.msra.mxu0 0.0
    %3902 = vmatpush.msra.mxu0 0.0
    %3903 = vmatpush.msra.mxu0 0.0
    %3904 = vmatpush.msra.mxu0 0.0
    %3905 = vmatpush.msra.mxu0 %v3888
    %3906 = vmatmul.f32.gmra.mxu0 %v3885
    %v3907 = vpop.f32.mrf.mxu0
    %v3908 = vadd.f32 0.0, %v3907
    %3909 = vdwg.mxu0
    %3911 = vst [vmem:[#allocation1] sm:$0xff] %v3908
    %s3912 = scalar_lea.vmem [#allocation1], 4
    %v3913 = vld [vmem:[%s3912] ss:$9 sm:$0xff]
    %s3914 = scalar_lea.vmem [#allocation1], 5
    %v3915 = vld [vmem:[%s3914] ss:$9 sm:$0xff]
    %s3916 = scalar_lea.vmem [#allocation1], 6
    %v3917 = vld [vmem:[%s3916] ss:$9 sm:$0xff]
    %s3918 = scalar_lea.vmem [#allocation1], 7
    %v3919 = vld [vmem:[%s3918] ss:$9 sm:$0xff]
    %v3920 = vperm.slane %v3913, 0
    %v3921 = vperm.slane %v3915, 0
    %v3922 = vperm.slane %v3917, 0
    %v3923 = vperm.slane %v3919, 0
    %v3928 = vmul.f32 %v194, %v3920
    %v3929 = vmul.f32 %v195, %v3920
    %v3930 = vmul.f32 %v196, %v3921
    %v3931 = vmul.f32 %v197, %v3921
    %v3932 = vmul.f32 %v198, %v3922
    %v3933 = vmul.f32 %v199, %v3922
    %v3934 = vmul.f32 %v200, %v3923
    %v3935 = vmul.f32 %v201, %v3923
    %v3936 = vsel %vm211, %v3928, 0.0
    %3937 = vadd.xlane.f32.xlu0 %v3936
    %v3938 = vpop.xlane.xlu0 %3937
    %v3939 = vsel %vm211, %v3929, 0.0
    %3940 = vadd.xlane.f32.xlu0 %v3939
    %v3941 = vpop.xlane.xlu0 %3940
    %v3942 = vsel %vm211, %v3930, 0.0
    %3943 = vadd.xlane.f32.xlu0 %v3942
    %v3944 = vpop.xlane.xlu0 %3943
    %v3945 = vsel %vm211, %v3931, 0.0
    %3946 = vadd.xlane.f32.xlu0 %v3945
    %v3947 = vpop.xlane.xlu0 %3946
    %v3948 = vsel %vm211, %v3932, 0.0
    %3949 = vadd.xlane.f32.xlu0 %v3948
    %v3950 = vpop.xlane.xlu0 %3949
    %v3951 = vsel %vm211, %v3933, 0.0
    %3952 = vadd.xlane.f32.xlu0 %v3951
    %v3953 = vpop.xlane.xlu0 %3952
    %v3954 = vsel %vm211, %v3934, 0.0
    %3955 = vadd.xlane.f32.xlu0 %v3954
    %v3956 = vpop.xlane.xlu0 %3955
    %v3957 = vsel %vm211, %v3935, 0.0
    %3958 = vadd.xlane.f32.xlu0 %v3957
    %v3959 = vpop.xlane.xlu0 %3958
    %v3960 = vperm.slane %v3908, 0
    %v3961 = vlaneseq
    %v3962 = vshrl.u32 %v3961, 7
    %3964 = vset.pattern.permute.xlu0 %v3962
    %3965 = vperm.xlu0 %3964, %v3960
    %v3966 = vpop.permute.xlu0 %3965
    %v3967 = vlaneseq
    %v3968 = vshrl.u32 %v3967, 7
    %v3969 = vadd.s32 %v3968, 8
    %3970 = vset.pattern.permute.xlu0 %v3969
    %3971 = vperm.xlu0 %3970, %v3960
    %v3972 = vpop.permute.xlu0 %3971
    %v3973 = vperm.slane %v3908, 1
    %v3974 = vlaneseq
    %v3975 = vshrl.u32 %v3974, 7
    %3977 = vset.pattern.permute.xlu0 %v3975
    %3978 = vperm.xlu0 %3977, %v3973
    %v3979 = vpop.permute.xlu0 %3978
    %v3980 = vlaneseq
    %v3981 = vshrl.u32 %v3980, 7
    %v3982 = vadd.s32 %v3981, 8
    %3983 = vset.pattern.permute.xlu0 %v3982
    %3984 = vperm.xlu0 %3983, %v3973
    %v3985 = vpop.permute.xlu0 %3984
    %v3986 = vperm.slane %v3908, 2
    %v3987 = vlaneseq
    %v3988 = vshrl.u32 %v3987, 7
    %3990 = vset.pattern.permute.xlu0 %v3988
    %3991 = vperm.xlu0 %3990, %v3986
    %v3992 = vpop.permute.xlu0 %3991
    %v3993 = vlaneseq
    %v3994 = vshrl.u32 %v3993, 7
    %v3995 = vadd.s32 %v3994, 8
    %3996 = vset.pattern.permute.xlu0 %v3995
    %3997 = vperm.xlu0 %3996, %v3986
    %v3998 = vpop.permute.xlu0 %3997
    %v3999 = vperm.slane %v3908, 3
    %v4000 = vlaneseq
    %v4001 = vshrl.u32 %v4000, 7
    %4003 = vset.pattern.permute.xlu0 %v4001
    %4004 = vperm.xlu0 %4003, %v3999
    %v4005 = vpop.permute.xlu0 %4004
    %v4006 = vlaneseq
    %v4007 = vshrl.u32 %v4006, 7
    %v4008 = vadd.s32 %v4007, 8
    %4009 = vset.pattern.permute.xlu0 %v4008
    %4010 = vperm.xlu0 %4009, %v3999
    %v4011 = vpop.permute.xlu0 %4010
    %v4020 = vmul.f32 %v3938, %v3966
    %v4021 = vmul.f32 %v3941, %v3972
    %v4022 = vmul.f32 %v3944, %v3979
    %v4023 = vmul.f32 %v3947, %v3985
    %v4024 = vmul.f32 %v3950, %v3992
    %v4025 = vmul.f32 %v3953, %v3998
    %v4026 = vmul.f32 %v3956, %v4005
    %v4027 = vmul.f32 %v3959, %v4011
    %4036 = vset.pattern.permute.xlu0 0
    %4037 = vperm.xlu0 %4036, %v4020
    %v4038 = vpop.permute.xlu0 %4037
    %4039 = vset.pattern.permute.xlu0 0
    %4040 = vperm.xlu0 %4039, %v4021
    %v4041 = vpop.permute.xlu0 %4040
    %4042 = vset.pattern.permute.xlu0 0
    %4043 = vperm.xlu0 %4042, %v4022
    %v4044 = vpop.permute.xlu0 %4043
    %4045 = vset.pattern.permute.xlu0 0
    %4046 = vperm.xlu0 %4045, %v4023
    %v4047 = vpop.permute.xlu0 %4046
    %4048 = vset.pattern.permute.xlu0 0
    %4049 = vperm.xlu0 %4048, %v4024
    %v4050 = vpop.permute.xlu0 %4049
    %4051 = vset.pattern.permute.xlu0 0
    %4052 = vperm.xlu0 %4051, %v4025
    %v4053 = vpop.permute.xlu0 %4052
    %4054 = vset.pattern.permute.xlu0 0
    %4055 = vperm.xlu0 %4054, %v4026
    %v4056 = vpop.permute.xlu0 %4055
    %4057 = vset.pattern.permute.xlu0 0
    %4058 = vperm.xlu0 %4057, %v4027
    %v4059 = vpop.permute.xlu0 %4058
    %v4060 = vperm.slane %v4038, %v177
    %v4061 = vperm.slane %v4041, %v339
    %v4062 = vsel %vm341, %v4061, %v4060
    %v4063 = vperm.slane %v4044, %v177
    %v4064 = vperm.slane %v4047, %v339
    %v4065 = vsel %vm341, %v4064, %v4063
    %v4066 = vperm.slane %v4050, %v177
    %v4067 = vperm.slane %v4053, %v339
    %v4068 = vsel %vm341, %v4067, %v4066
    %v4069 = vperm.slane %v4056, %v177
    %v4070 = vperm.slane %v4059, %v339
    %v4071 = vsel %vm341, %v4070, %v4069
    %v4072 = vsel %vm352, %v4065, %v4062
    %v4073 = vsel %vm354, %v4068, %v4072
    %v4074 = vsel %vm356, %v4071, %v4073
    %v4076 = vsel %vm3833, %v4074, 0.0
    %4077 = vadd.xlane.f32.xlu0 %v4076
    %v4078 = vpop.xlane.xlu0 %4077
    %v4079 = vsel %vm388, %v4078, 0.0
    %v4080 = vrot.slane %v4079, 4
    %v4081 = vadd.f32 %v4079, %v4080
    %v4082 = vrot.slane %v4081, 2
    %v4083 = vadd.f32 %v4081, %v4082
    %v4084 = vrot.slane %v4083, 1
    %v4085 = vadd.f32 %v4083, %v4084
    %v4086 = vmul.f32 %v3881, 0.1
    %v4087 = vadd.f32 %v4085, %v4086
    %v4088 = vsel %vm3833, %v3908, -inf
    %4089 = vmax.xlane.f32.xlu0 %v4088
    %v4090 = vpop.xlane.xlu0 %4089
    %vm4091 = vcmp.ge.f32.partialorder %v3908, %v4090
    %v4092 = vsel %vm4091, %v179, 16.0
    %v4093 = vsel %vm3833, %v4092, inf
    %4094 = vmin.xlane.f32.xlu0 %v4093
    %v4095 = vpop.xlane.xlu0 %4094
    %vm4096 = vcmp.eq.f32.partialorder %v179, %v4095
    %v4097 = vsel %vm4096, 1, 0
    %v4098 = vcvt.s32.f32 %v4097
    %vm4099 = vcmask 130052
    %v4100 = vsel %vm4099, %v3908, -inf
    %4101 = vmax.xlane.f32.xlu0 %v4100
    %v4102 = vpop.xlane.xlu0 %4101
    %vm4103 = vcmp.ge.f32.partialorder %v3908, %v4102
    %v4104 = vsel %vm4103, %v179, 16.0
    %v4105 = vsel %vm4099, %v4104, inf
    %4106 = vmin.xlane.f32.xlu0 %v4105
    %v4107 = vpop.xlane.xlu0 %4106
    %vm4108 = vcmp.eq.f32.partialorder %v179, %v4107
    %v4109 = vsel %vm4108, 1, 0
    %v4110 = vcvt.s32.f32 %v4109
    %4112 = vst [vmem:[#allocation1] sm:$0xff] %v4110
    %s4113 = scalar_lea.vmem [#allocation1], 4
    %v4114 = vld [vmem:[%s4113] ss:$9 sm:$0xff]
    %s4115 = scalar_lea.vmem [#allocation1], 5
    %v4116 = vld [vmem:[%s4115] ss:$9 sm:$0xff]
    %s4117 = scalar_lea.vmem [#allocation1], 6
    %v4118 = vld [vmem:[%s4117] ss:$9 sm:$0xff]
    %s4119 = scalar_lea.vmem [#allocation1], 7
    %v4120 = vld [vmem:[%s4119] ss:$9 sm:$0xff]
    %v4121 = vperm.slane %v4114, 0
    %v4122 = vperm.slane %v4116, 0
    %v4123 = vperm.slane %v4118, 0
    %v4124 = vperm.slane %v4120, 0
    %v4129 = vmul.f32 %v194, %v4121
    %v4130 = vmul.f32 %v195, %v4121
    %v4131 = vmul.f32 %v196, %v4122
    %v4132 = vmul.f32 %v197, %v4122
    %v4133 = vmul.f32 %v198, %v4123
    %v4134 = vmul.f32 %v199, %v4123
    %v4135 = vmul.f32 %v200, %v4124
    %v4136 = vmul.f32 %v201, %v4124
    %v4137 = vsel %vm211, %v4129, 0.0
    %4138 = vadd.xlane.f32.xlu0 %v4137
    %v4139 = vpop.xlane.xlu0 %4138
    %v4140 = vsel %vm211, %v4130, 0.0
    %4141 = vadd.xlane.f32.xlu0 %v4140
    %v4142 = vpop.xlane.xlu0 %4141
    %v4143 = vsel %vm211, %v4131, 0.0
    %4144 = vadd.xlane.f32.xlu0 %v4143
    %v4145 = vpop.xlane.xlu0 %4144
    %v4146 = vsel %vm211, %v4132, 0.0
    %4147 = vadd.xlane.f32.xlu0 %v4146
    %v4148 = vpop.xlane.xlu0 %4147
    %v4149 = vsel %vm211, %v4133, 0.0
    %4150 = vadd.xlane.f32.xlu0 %v4149
    %v4151 = vpop.xlane.xlu0 %4150
    %v4152 = vsel %vm211, %v4134, 0.0
    %4153 = vadd.xlane.f32.xlu0 %v4152
    %v4154 = vpop.xlane.xlu0 %4153
    %v4155 = vsel %vm211, %v4135, 0.0
    %4156 = vadd.xlane.f32.xlu0 %v4155
    %v4157 = vpop.xlane.xlu0 %4156
    %v4158 = vsel %vm211, %v4136, 0.0
    %4159 = vadd.xlane.f32.xlu0 %v4158
    %v4160 = vpop.xlane.xlu0 %4159
    %v4162 = vperm.slane %v4098, 0
    %v4163 = vlaneseq
    %v4164 = vshrl.u32 %v4163, 7
    %4166 = vset.pattern.permute.xlu0 %v4164
    %4167 = vperm.xlu0 %4166, %v4162
    %v4168 = vpop.permute.xlu0 %4167
    %v4169 = vlaneseq
    %v4170 = vshrl.u32 %v4169, 7
    %v4171 = vadd.s32 %v4170, 8
    %4172 = vset.pattern.permute.xlu0 %v4171
    %4173 = vperm.xlu0 %4172, %v4162
    %v4174 = vpop.permute.xlu0 %4173
    %v4175 = vperm.slane %v4098, 1
    %v4176 = vlaneseq
    %v4177 = vshrl.u32 %v4176, 7
    %4179 = vset.pattern.permute.xlu0 %v4177
    %4180 = vperm.xlu0 %4179, %v4175
    %v4181 = vpop.permute.xlu0 %4180
    %v4182 = vlaneseq
    %v4183 = vshrl.u32 %v4182, 7
    %v4184 = vadd.s32 %v4183, 8
    %4185 = vset.pattern.permute.xlu0 %v4184
    %4186 = vperm.xlu0 %4185, %v4175
    %v4187 = vpop.permute.xlu0 %4186
    %v4188 = vperm.slane %v4098, 2
    %v4189 = vlaneseq
    %v4190 = vshrl.u32 %v4189, 7
    %4192 = vset.pattern.permute.xlu0 %v4190
    %4193 = vperm.xlu0 %4192, %v4188
    %v4194 = vpop.permute.xlu0 %4193
    %v4195 = vlaneseq
    %v4196 = vshrl.u32 %v4195, 7
    %v4197 = vadd.s32 %v4196, 8
    %4198 = vset.pattern.permute.xlu0 %v4197
    %4199 = vperm.xlu0 %4198, %v4188
    %v4200 = vpop.permute.xlu0 %4199
    %v4201 = vperm.slane %v4098, 3
    %v4202 = vlaneseq
    %v4203 = vshrl.u32 %v4202, 7
    %4205 = vset.pattern.permute.xlu0 %v4203
    %4206 = vperm.xlu0 %4205, %v4201
    %v4207 = vpop.permute.xlu0 %4206
    %v4208 = vlaneseq
    %v4209 = vshrl.u32 %v4208, 7
    %v4210 = vadd.s32 %v4209, 8
    %4211 = vset.pattern.permute.xlu0 %v4210
    %4212 = vperm.xlu0 %4211, %v4201
    %v4213 = vpop.permute.xlu0 %4212
    %v4222 = vmul.f32 %v4139, %v4168
    %v4223 = vmul.f32 %v4142, %v4174
    %v4224 = vmul.f32 %v4145, %v4181
    %v4225 = vmul.f32 %v4148, %v4187
    %v4226 = vmul.f32 %v4151, %v4194
    %v4227 = vmul.f32 %v4154, %v4200
    %v4228 = vmul.f32 %v4157, %v4207
    %v4229 = vmul.f32 %v4160, %v4213
    %4238 = vset.pattern.permute.xlu0 0
    %4239 = vperm.xlu0 %4238, %v4222
    %v4240 = vpop.permute.xlu0 %4239
    %4241 = vset.pattern.permute.xlu0 0
    %4242 = vperm.xlu0 %4241, %v4223
    %v4243 = vpop.permute.xlu0 %4242
    %4244 = vset.pattern.permute.xlu0 0
    %4245 = vperm.xlu0 %4244, %v4224
    %v4246 = vpop.permute.xlu0 %4245
    %4247 = vset.pattern.permute.xlu0 0
    %4248 = vperm.xlu0 %4247, %v4225
    %v4249 = vpop.permute.xlu0 %4248
    %4250 = vset.pattern.permute.xlu0 0
    %4251 = vperm.xlu0 %4250, %v4226
    %v4252 = vpop.permute.xlu0 %4251
    %4253 = vset.pattern.permute.xlu0 0
    %4254 = vperm.xlu0 %4253, %v4227
    %v4255 = vpop.permute.xlu0 %4254
    %4256 = vset.pattern.permute.xlu0 0
    %4257 = vperm.xlu0 %4256, %v4228
    %v4258 = vpop.permute.xlu0 %4257
    %4259 = vset.pattern.permute.xlu0 0
    %4260 = vperm.xlu0 %4259, %v4229
    %v4261 = vpop.permute.xlu0 %4260
    %v4262 = vperm.slane %v4240, %v177
    %v4263 = vperm.slane %v4243, %v339
    %v4264 = vsel %vm341, %v4263, %v4262
    %v4265 = vperm.slane %v4246, %v177
    %v4266 = vperm.slane %v4249, %v339
    %v4267 = vsel %vm341, %v4266, %v4265
    %v4268 = vperm.slane %v4252, %v177
    %v4269 = vperm.slane %v4255, %v339
    %v4270 = vsel %vm341, %v4269, %v4268
    %v4271 = vperm.slane %v4258, %v177
    %v4272 = vperm.slane %v4261, %v339
    %v4273 = vsel %vm341, %v4272, %v4271
    %v4274 = vsel %vm352, %v4267, %v4264
    %v4275 = vsel %vm354, %v4270, %v4274
    %v4276 = vsel %vm356, %v4273, %v4275
    %v4278 = vsel %vm3833, %v4276, 0.0
    %4279 = vadd.xlane.f32.xlu0 %v4278
    %v4280 = vpop.xlane.xlu0 %4279
    %v4281 = vsel %vm388, %v4280, 0.0
    %v4282 = vrot.slane %v4281, 4
    %v4283 = vadd.f32 %v4281, %v4282
    %v4284 = vrot.slane %v4283, 2
    %v4285 = vadd.f32 %v4283, %v4284
    %v4286 = vrot.slane %v4285, 1
    %v4287 = vadd.f32 %v4285, %v4286
    %v4288 = vsel %vm3602, %v4087, %v4287
    %s4289 = scalar_lea.vmem %s85, %s185
    %vm4290 = vcmask 8192
    %4291 = vst.msk [vmem:[%s4289] sm:$0x1] %vm4290, %v4288
  $region174: #{tpu_custom_call.1} parent=0 // loop_footer
    %s189 = sadd.s32 1, %s185
  $region175: #{tpu_custom_call.1} parent=0 // loop_footer_branch
    %184 = sbr.rel target = $region171
  $region176: #{tpu_custom_call.1} parent=0 // loop_exit
    _
  // Predicated region
  $region177: #{tpu_custom_call.1} parent=0 // pred_check
    _
  $region178: #{tpu_custom_call.1} parent=0 // pred_check_branch
    %4293 = sbr.rel (0) target = $region180
  $region179: #{tpu_custom_call.1} parent=0 // pred_region
    _
  $region180: #{tpu_custom_call.1} parent=0 // pred_fallthru
    _
  // Predicated region
  $region181: #{tpu_custom_call.1} parent=0 // pred_check
    _
  $region182: #{tpu_custom_call.1} parent=0 // pred_check_branch
    %4295 = sbr.rel (0) target = $region184
  $region183: #{tpu_custom_call.1} parent=0 // pred_region
    _
  $region184: #{tpu_custom_call.1} parent=0 // pred_fallthru
    _

</llo_original>
